<compile_context>
chip_gen: v7x
topology: tpu7x:2x2x1
jax: 0.10.0
libtpu: 0.0.40
codegen_flags: <defaults>
</compile_context>

<pallas_src>
import functools
import math

import jax
import jax.numpy as jnp
import numpy as np
from jax import lax
from jax.experimental import pallas as pl
from jax.experimental.pallas import tpu as pltpu

_BIG = 1e30                                   # plain Python literal, not a traced const
_NT_DIMS = (((1,), (1,)), ((), ()))           # contract last dim of both operands (q@k^T)


# --------------------------------------------------------------------------- #
# Fused kernel: one batch element per grid step, channels-first (C, Np) layout
# --------------------------------------------------------------------------- #
def _fused_refinement_kernel(*refs, num_layers, k_nn, n_valid, tq, n_strips):
    n_in = 3 + 5 * num_layers + 3
    loc_ref, loct_ref, feat_ref = refs[0], refs[1], refs[2]
    layer_refs = refs[3:3 + 5 * num_layers]
    wll_ref, wlf_ref, bl_ref = refs[3 + 5 * num_layers:n_in]
    out_loc_ref, out_feat_ref = refs[n_in], refs[n_in + 1]
    sel_scratch = refs[n_in + 2] if n_strips > 1 else None

    loc = loc_ref[0]                           # (3, Np)   channels-first, points on lanes
    loct = loct_ref[0]                         # (Np, 3)   query coords (sublane-major)
    feat = feat_ref[0]                         # (Cin, Np)
    n_pad = loc.shape[1]

    # ||loc_j||^2 per candidate column (explicit 3-term sum -> bitwise-stable vs ref).
    sq = (loc[0:1, :] * loc[0:1, :]
          + loc[1:2, :] * loc[1:2, :]
          + loc[2:3, :] * loc[2:3, :])                              # (1, Np)
    col = lax.broadcasted_iota(jnp.int32, (1, n_pad), 1)            # (1, Np)   [R1]
    col_invalid = col >= n_valid                                    # padding never selected

    def _knn_strip(s):
        # queries i in [s*tq, (s+1)*tq), candidates j in [0, Np)
        lts = loct[s * tq:(s + 1) * tq, :]                          # (tq, 3)
        # gram[i, j] = <loc_i, loc_j> as 3 broadcast multiply-adds on the VPU  [R5]
        gram = (lts[:, 0:1] * loc[0:1, :]
                + lts[:, 1:2] * loc[1:2, :]
                + lts[:, 2:3] * loc[2:3, :])                        # (tq, Np)
        # row-constant ||loc_i||^2 dropped (argmin over j only)
        key = sq - 2.0 * gram                                       # (tq, Np) f32
        row = lax.broadcasted_iota(jnp.int32, (tq, 1), 0) + s * tq  # (tq, 1)  [R1]
        key = jnp.where((col == row) | col_invalid, _BIG, key)      # loop=False + pad mask

        sel_s = jnp.zeros((tq, n_pad), jnp.float32)
        for _ in range(k_nn):                                       # k static -> unrolled
            mn = jnp.min(key, axis=-1, keepdims=True)               # ONE XLU reduction [R2]
            # guard (mn < _BIG/2): if k >= n_valid nothing bogus is selected
            hit = (key <= mn) & (mn < _BIG * 0.5)
            sel_s = sel_s + hit.astype(jnp.float32)
            key = jnp.where(hit, _BIG, key)
        return sel_s

    # sel[i, j] = 1  <=>  j in kNN(i); built strip-by-strip, stored once in bf16  [R6]
    if n_strips == 1:
        sel = _knn_strip(0).astype(jnp.bfloat16)
    else:
        # TODO(synk): for very large Np switch this static Python loop to a
        # lax.fori_loop over pl.ds strips to bound unrolled code size.
        for s in range(n_strips):
            sel_scratch[s * tq:(s + 1) * tq, :] = _knn_strip(s).astype(jnp.bfloat16)
        sel = sel_scratch[...]

    # ---- PCDConv stack; feat stays resident in VMEM ------------------------ #
    loc_bf = loc.astype(jnp.bfloat16)
    # hoisted: loc never changes across layers  [R4]
    agg_loc = lax.dot_general(loc_bf, sel, _NT_DIMS,
                              preferred_element_type=jnp.float32)   # (3, Np)
    agg_loc_bf = agg_loc.astype(jnp.bfloat16)

    for li in range(num_layers):
        wrl, wrf, wtl, wtf, bb = (r[...] for r in layer_refs[5 * li:5 * li + 5])
        feat_bf = feat.astype(jnp.bfloat16)
        # neighbour aggregation: agg[:, i] = sum_{j in kNN(i)} feat[:, j]   (NT, no transpose) [R3]
        agg_feat = lax.dot_general(feat_bf, sel, _NT_DIMS,
                                   preferred_element_type=jnp.float32)
        # GraphConv: W_rel @ [agg_loc; agg_feat] + W_root @ [loc; feat] + b   (no concats) [R4]
        out = (jnp.dot(wrl, agg_loc_bf, preferred_element_type=jnp.float32)
               + jnp.dot(wrf, agg_feat.astype(jnp.bfloat16),
                         preferred_element_type=jnp.float32)
               + jnp.dot(wtl, loc_bf, preferred_element_type=jnp.float32)
               + jnp.dot(wtf, feat_bf, preferred_element_type=jnp.float32)
               + bb)
        feat = jnp.maximum(out, 0.0)                                # ReLU

    # ---- final 1x1 conv over [loc | feat] + tanh + residual on loc ---------- #
    feat_bf = feat.astype(jnp.bfloat16)
    logits = (jnp.dot(wll_ref[...], loc_bf, preferred_element_type=jnp.float32)
              + jnp.dot(wlf_ref[...], feat_bf, preferred_element_type=jnp.float32)
              + bl_ref[...])
    out_loc_ref[0] = loc + jnp.tanh(logits)
    out_feat_ref[0] = feat


# --------------------------------------------------------------------------- #
# Wrapper (padding + pallas_call plumbing)
# --------------------------------------------------------------------------- #
def _pick_vmem_limit():
    try:                                                            # [R8]
        cap = int(pltpu.get_tpu_info().vmem_capacity_bytes)
    except Exception:
        cap = 64 * 1024 * 1024
    return int(min(max(cap * 3 // 4, 32 << 20), 100 << 20))


def pcd_refinement_forward(x_loc, x_feat, layer_params, loc_params, k, tq=None):
    """x_loc: (B, 3, N), x_feat: (B, Cin, N)  (native PyTorch NCW layout).
    Returns (x_new_loc (B, 3, N), x_new_feat (B, Cout, N))."""
    B, _, N = x_loc.shape
    Cin = x_feat.shape[1]
    num_layers = len(layer_params)
    wll, wlf, bl = loc_params
    Cout = wlf.shape[1]

    n_pad = ((N + 127) // 128) * 128                 # lane-dense last dim
    if tq is None:
        tq = math.gcd(n_pad, 512)                    # query-strip height  [R6]
    assert n_pad % tq == 0 and tq % 128 == 0
    n_strips = n_pad // tq

    def pad(a):
        return jnp.pad(a.astype(jnp.float32),
                       ((0, 0), (0, 0), (0, n_pad - a.shape[-1])))

    loc = pad(x_loc)                                 # (B, 3, Np)
    feat = pad(x_feat)                               # (B, Cin, Np)
    loc_t = jnp.transpose(loc, (0, 2, 1))            # (B, Np, 3)   see TODO [R5]

    inputs = [loc, loc_t, feat]
    in_specs = [
        pl.BlockSpec((1, 3, n_pad), lambda b: (b, 0, 0)),
        pl.BlockSpec((1, n_pad, 3), lambda b: (b, 0, 0)),
        pl.BlockSpec((1, Cin, n_pad), lambda b: (b, 0, 0)),
    ]
    for wrl, wrf, wtl, wtf, bb in layer_params:
        for w in (wrl, wrf, wtl, wtf):
            inputs.append(w.astype(jnp.bfloat16))                   # [R9]
            in_specs.append(pl.BlockSpec(w.shape, lambda b: (0, 0)))
        inputs.append(bb.astype(jnp.float32))
        in_specs.append(pl.BlockSpec(bb.shape, lambda b: (0, 0)))
    for w in (wll, wlf):
        inputs.append(w.astype(jnp.bfloat16))
        in_specs.append(pl.BlockSpec(w.shape, lambda b: (0, 0)))
    inputs.append(bl.astype(jnp.float32))
    in_specs.append(pl.BlockSpec(bl.shape, lambda b: (0, 0)))

    out_shape = (jax.ShapeDtypeStruct((B, 3, n_pad), jnp.float32),
                 jax.ShapeDtypeStruct((B, Cout, n_pad), jnp.float32))
    out_specs = (pl.BlockSpec((1, 3, n_pad), lambda b: (b, 0, 0)),
                 pl.BlockSpec((1, Cout, n_pad), lambda b: (b, 0, 0)))

    scratch_shapes = ([pltpu.VMEM((n_pad, n_pad), jnp.bfloat16)]
                      if n_strips > 1 else [])

    # advisory cost estimate  [R8]
    cins = [wrf.shape[1] for (_, wrf, _, _, _) in layer_params]
    couts = [wrf.shape[0] for (_, wrf, _, _, _) in layer_params]
    flops = B * n_pad * n_pad * (2 * 3 + (k + 3) + 2 * (3 + sum(cins)))
    flops += B * n_pad * sum(2 * co * (2 * ci + 6) for ci, co in zip(cins, couts))
    flops += B * n_pad * 2 * 3 * (Cout + 3)
    bytes_accessed = sum(int(a.size) * a.dtype.itemsize for a in inputs)
    bytes_accessed += B * n_pad * (3 + Cout) * 4
    cost = pl.CostEstimate(flops=int(flops),
                           transcendentals=int(B * 3 * n_pad),
                           bytes_accessed=int(bytes_accessed))

    new_loc, new_feat = pl.pallas_call(
        functools.partial(_fused_refinement_kernel, num_layers=num_layers,
                          k_nn=k, n_valid=N, tq=tq, n_strips=n_strips),
        out_shape=out_shape,
        grid=(B,),
        in_specs=in_specs,
        out_specs=out_specs,
        scratch_shapes=scratch_shapes,
        compiler_params=pltpu.CompilerParams(
            dimension_semantics=("parallel",),       # batch sharded over v7x TCs
            vmem_limit_bytes=_pick_vmem_limit()),
        cost_estimate=cost,
    )(*inputs)

    return new_loc[:, :, :N], new_feat[:, :, :N]


# --------------------------------------------------------------------------- #
# Parameter construction (deterministic, mirrors PCDRefinement.__init__)
# --------------------------------------------------------------------------- #
def init_params(key, in_channels, out_channels, num_conv_layers):
    # NOTE: the PyTorch code extends the list with [PCDConv(...)] * (L-2), i.e. the
    # SAME module instance repeated, so middle layers intentionally share weights.
    middle = (in_channels + out_channels) // 2

    def make_graph_conv(k_, cin, cout):
        ks = jax.random.split(k_, 5)
        scale = 1.0 / math.sqrt(cin + 3)
        w_rel_loc = jax.random.normal(ks[0], (cout, 3), jnp.float32) * scale
        w_rel_feat = jax.random.normal(ks[1], (cout, cin), jnp.float32) * scale
        w_root_loc = jax.random.normal(ks[2], (cout, 3), jnp.float32) * scale
        w_root_feat = jax.random.normal(ks[3], (cout, cin), jnp.float32) * scale
        b = jax.random.normal(ks[4], (cout, 1), jnp.float32) * scale
        return (w_rel_loc, w_rel_feat, w_root_loc, w_root_feat, b)

    k0, k1, k2, k3 = jax.random.split(key, 4)
    first = make_graph_conv(k0, in_channels, middle)
    mid = make_graph_conv(k1, middle, middle)
    last = make_graph_conv(k2, middle, out_channels)
    layers = [first] + [mid] * (num_conv_layers - 2) + [last]

    kw1, kw2, kb = jax.random.split(k3, 3)
    scale = 1.0 / math.sqrt(out_channels + 3)
    w_loc_loc = jax.random.normal(kw1, (3, 3), jnp.float32) * scale
    w_loc_feat = jax.random.normal(kw2, (3, out_channels), jnp.float32) * scale
    b_loc = jax.random.normal(kb, (3, 1), jnp.float32) * scale
    return layers, (w_loc_loc, w_loc_feat, b_loc)


# --------------------------------------------------------------------------- #
# Pure-jnp reference (same math / same bf16 choices) for a plumbing sanity check
# --------------------------------------------------------------------------- #
def _reference_forward(x_loc, x_feat, layer_params, loc_params, k):
    loc = x_loc.astype(jnp.float32)      # (B, 3, N)
    feat = x_feat.astype(jnp.float32)    # (B, Cin, N)
    _, _, N = loc.shape

    def knn_sel(loc_b):                  # (3, N) -> (N, N)
        lt = loc_b.T
        gram = (lt[:, 0:1] * loc_b[0:1, :]
                + lt[:, 1:2] * loc_b[1:2, :]
                + lt[:, 2:3] * loc_b[2:3, :])
        sq = (loc_b[0:1, :] * loc_b[0:1, :]
              + loc_b[1:2, :] * loc_b[1:2, :]
              + loc_b[2:3, :] * loc_b[2:3, :])
        key = sq - 2.0 * gram
        row = jnp.arange(N)[:, None]
        col = jnp.arange(N)[None, :]
        key = jnp.where(row == col, _BIG, key)
        sel_b = jnp.zeros((N, N), jnp.float32)
        for _ in range(k):
            mn = jnp.min(key, axis=-1, keepdims=True)
            hit = (key <= mn) & (mn < _BIG * 0.5)
            sel_b = sel_b + hit.astype(jnp.float32)
            key = jnp.where(hit, _BIG, key)
        return sel_b

    sel = jax.vmap(knn_sel)(loc).astype(jnp.bfloat16)               # (B, N, N)
    loc_bf = loc.astype(jnp.bfloat16)
    agg_loc = jnp.einsum('bcn,bin->bci', loc_bf, sel,
                         preferred_element_type=jnp.float32)
    agg_loc_bf = agg_loc.astype(jnp.bfloat16)

    f = feat
    for wrl, wrf, wtl, wtf, bb in layer_params:
        f_bf = f.astype(jnp.bfloat16)
        agg_f = jnp.einsum('bcn,bin->bci', f_bf, sel,
                           preferred_element_type=jnp.float32)
        out = (jnp.einsum('oc,bcn->bon', wrl.astype(jnp.bfloat16), agg_loc_bf,
                          preferred_element_type=jnp.float32)
               + jnp.einsum('oc,bcn->bon', wrf.astype(jnp.bfloat16),
                            agg_f.astype(jnp.bfloat16),
                            preferred_element_type=jnp.float32)
               + jnp.einsum('oc,bcn->bon', wtl.astype(jnp.bfloat16), loc_bf,
                            preferred_element_type=jnp.float32)
               + jnp.einsum('oc,bcn->bon', wtf.astype(jnp.bfloat16), f_bf,
                            preferred_element_type=jnp.float32)
               + bb[None])
        f = jnp.maximum(out, 0.0)

    wll, wlf, bl = loc_params
    f_bf = f.astype(jnp.bfloat16)
    logits = (jnp.einsum('oc,bcn->bon', wll.astype(jnp.bfloat16), loc_bf,
                         preferred_element_type=jnp.float32)
              + jnp.einsum('oc,bcn->bon', wlf.astype(jnp.bfloat16), f_bf,
                           preferred_element_type=jnp.float32)
              + bl[None])
    return loc + jnp.tanh(logits), f


# --------------------------------------------------------------------------- #
if __name__ == "__main__":
    in_channels, out_channels, num_conv_layers, k = 4, 8, 3, 4
    key = jax.random.PRNGKey(0)
    k_loc, k_feat, k_par, k_loc2, k_feat2 = jax.random.split(key, 5)
    layer_params, loc_params = init_params(k_par, in_channels, out_channels,
                                           num_conv_layers)

    # Case 1: B=2, N=48 (N deliberately not a multiple of 128; single query strip)
    B, N = 2, 48
    x_loc = jax.random.normal(k_loc, (B, 3, N), jnp.float32)
    x_feat = jax.random.normal(k_feat, (B, in_channels, N), jnp.float32)
    new_loc, new_feat = pcd_refinement_forward(x_loc, x_feat,
                                               layer_params, loc_params, k)
    jax.block_until_ready((new_loc, new_feat))
    assert new_loc.shape == (B, 3, N), new_loc.shape
    assert new_feat.shape == (B, out_channels, N), new_feat.shape
    ref_loc, ref_feat = _reference_forward(x_loc, x_feat,
                                           layer_params, loc_params, k)
    np.testing.assert_allclose(np.asarray(new_loc), np.asarray(ref_loc),
                               rtol=5e-2, atol=5e-2)
    np.testing.assert_allclose(np.asarray(new_feat), np.asarray(ref_feat),
                               rtol=5e-2, atol=5e-2)

    # Case 2: B=1, N=200 with tq=128 -> exercises the 2-strip kNN path + sel scratch
    B2, N2 = 1, 200
    x_loc2 = jax.random.normal(k_loc2, (B2, 3, N2), jnp.float32)
    x_feat2 = jax.random.normal(k_feat2, (B2, in_channels, N2), jnp.float32)
    new_loc2, new_feat2 = pcd_refinement_forward(x_loc2, x_feat2,
                                                 layer_params, loc_params, k,
                                                 tq=128)
    jax.block_until_ready((new_loc2, new_feat2))
    ref_loc2, ref_feat2 = _reference_forward(x_loc2, x_feat2,
                                             layer_params, loc_params, k)
    np.testing.assert_allclose(np.asarray(new_loc2), np.asarray(ref_loc2),
                               rtol=5e-2, atol=5e-2)
    np.testing.assert_allclose(np.asarray(new_feat2), np.asarray(ref_feat2),
                               rtol=5e-2, atol=5e-2)

    print("KERNEL_OK")
</pallas_src>

<mosaic_0001>
module attributes {stable_mosaic.version = 11 : i64} {
  func.func @_fused_refinement_kernel(%arg0: i32, %arg1: memref<1x3x128xf32, #tpu.memory_space<vmem>>, %arg2: memref<1x128x3xf32, #tpu.memory_space<vmem>>, %arg3: memref<1x4x128xf32, #tpu.memory_space<vmem>>, %arg4: memref<6x3xbf16, #tpu.memory_space<vmem>>, %arg5: memref<6x4xbf16, #tpu.memory_space<vmem>>, %arg6: memref<6x3xbf16, #tpu.memory_space<vmem>>, %arg7: memref<6x4xbf16, #tpu.memory_space<vmem>>, %arg8: memref<6x1xf32, #tpu.memory_space<vmem>>, %arg9: memref<6x3xbf16, #tpu.memory_space<vmem>>, %arg10: memref<6x6xbf16, #tpu.memory_space<vmem>>, %arg11: memref<6x3xbf16, #tpu.memory_space<vmem>>, %arg12: memref<6x6xbf16, #tpu.memory_space<vmem>>, %arg13: memref<6x1xf32, #tpu.memory_space<vmem>>, %arg14: memref<8x3xbf16, #tpu.memory_space<vmem>>, %arg15: memref<8x6xbf16, #tpu.memory_space<vmem>>, %arg16: memref<8x3xbf16, #tpu.memory_space<vmem>>, %arg17: memref<8x6xbf16, #tpu.memory_space<vmem>>, %arg18: memref<8x1xf32, #tpu.memory_space<vmem>>, %arg19: memref<3x3xbf16, #tpu.memory_space<vmem>>, %arg20: memref<3x8xbf16, #tpu.memory_space<vmem>>, %arg21: memref<3x1xf32, #tpu.memory_space<vmem>>, %arg22: memref<1x3x128xf32, #tpu.memory_space<vmem>>, %arg23: memref<1x8x128xf32, #tpu.memory_space<vmem>>) attributes {dimension_semantics = [#tpu.dimension_semantics<parallel>], iteration_bounds = array<i64: 2>, scalar_prefetch = 0 : i64, scratch_operands = 0 : i64, tpu.core_type = #tpu.core_type<tc>, window_params = [{transform_indices = @transform_0, window_bounds = array<i64: 1, 3, 128>}, {transform_indices = @transform_1, window_bounds = array<i64: 1, 128, 3>}, {transform_indices = @transform_2, window_bounds = array<i64: 1, 4, 128>}, {pipeline_mode = #tpu.pipeline_mode<synchronous>, transform_indices = @transform_3, window_bounds = array<i64: 6, 3>}, {pipeline_mode = #tpu.pipeline_mode<synchronous>, transform_indices = @transform_4, window_bounds = array<i64: 6, 4>}, {pipeline_mode = #tpu.pipeline_mode<synchronous>, transform_indices = @transform_5, window_bounds = array<i64: 6, 3>}, {pipeline_mode = #tpu.pipeline_mode<synchronous>, transform_indices = @transform_6, window_bounds = array<i64: 6, 4>}, {pipeline_mode = #tpu.pipeline_mode<synchronous>, transform_indices = @transform_7, window_bounds = array<i64: 6, 1>}, {pipeline_mode = #tpu.pipeline_mode<synchronous>, transform_indices = @transform_8, window_bounds = array<i64: 6, 3>}, {pipeline_mode = #tpu.pipeline_mode<synchronous>, transform_indices = @transform_9, window_bounds = array<i64: 6, 6>}, {pipeline_mode = #tpu.pipeline_mode<synchronous>, transform_indices = @transform_10, window_bounds = array<i64: 6, 3>}, {pipeline_mode = #tpu.pipeline_mode<synchronous>, transform_indices = @transform_11, window_bounds = array<i64: 6, 6>}, {pipeline_mode = #tpu.pipeline_mode<synchronous>, transform_indices = @transform_12, window_bounds = array<i64: 6, 1>}, {pipeline_mode = #tpu.pipeline_mode<synchronous>, transform_indices = @transform_13, window_bounds = array<i64: 8, 3>}, {pipeline_mode = #tpu.pipeline_mode<synchronous>, transform_indices = @transform_14, window_bounds = array<i64: 8, 6>}, {pipeline_mode = #tpu.pipeline_mode<synchronous>, transform_indices = @transform_15, window_bounds = array<i64: 8, 3>}, {pipeline_mode = #tpu.pipeline_mode<synchronous>, transform_indices = @transform_16, window_bounds = array<i64: 8, 6>}, {pipeline_mode = #tpu.pipeline_mode<synchronous>, transform_indices = @transform_17, window_bounds = array<i64: 8, 1>}, {pipeline_mode = #tpu.pipeline_mode<synchronous>, transform_indices = @transform_18, window_bounds = array<i64: 3, 3>}, {pipeline_mode = #tpu.pipeline_mode<synchronous>, transform_indices = @transform_19, window_bounds = array<i64: 3, 8>}, {pipeline_mode = #tpu.pipeline_mode<synchronous>, transform_indices = @transform_20, window_bounds = array<i64: 3, 1>}, {transform_indices = @transform_21, window_bounds = array<i64: 1, 3, 128>}, {transform_indices = @transform_22, window_bounds = array<i64: 1, 8, 128>}]} {
    %c0 = arith.constant 0 : index
    %c0_0 = arith.constant 0 : index
    %c0_1 = arith.constant 0 : index
    %0 = vector.load %arg1[%c0, %c0_0, %c0_1] : memref<1x3x128xf32, #tpu.memory_space<vmem>>, vector<1x3x128xf32>
    %1 = vector.shape_cast %0 : vector<1x3x128xf32> to vector<3x128xf32>
    %c0_2 = arith.constant 0 : index
    %c0_3 = arith.constant 0 : index
    %c0_4 = arith.constant 0 : index
    %2 = vector.load %arg2[%c0_2, %c0_3, %c0_4] : memref<1x128x3xf32, #tpu.memory_space<vmem>>, vector<1x128x3xf32>
    %3 = vector.shape_cast %2 : vector<1x128x3xf32> to vector<128x3xf32>
    %c0_5 = arith.constant 0 : index
    %c0_6 = arith.constant 0 : index
    %c0_7 = arith.constant 0 : index
    %4 = vector.load %arg3[%c0_5, %c0_6, %c0_7] : memref<1x4x128xf32, #tpu.memory_space<vmem>>, vector<1x4x128xf32>
    %5 = vector.shape_cast %4 : vector<1x4x128xf32> to vector<4x128xf32>
    %6 = vector.extract_strided_slice %1 {offsets = [0, 0], sizes = [1, 128], strides = [1, 1]} : vector<3x128xf32> to vector<1x128xf32>
    %7 = vector.extract_strided_slice %1 {offsets = [0, 0], sizes = [1, 128], strides = [1, 1]} : vector<3x128xf32> to vector<1x128xf32>
    %8 = arith.mulf %6, %7 : vector<1x128xf32>
    %9 = vector.extract_strided_slice %1 {offsets = [1, 0], sizes = [1, 128], strides = [1, 1]} : vector<3x128xf32> to vector<1x128xf32>
    %10 = vector.extract_strided_slice %1 {offsets = [1, 0], sizes = [1, 128], strides = [1, 1]} : vector<3x128xf32> to vector<1x128xf32>
    %11 = arith.mulf %9, %10 : vector<1x128xf32>
    %12 = arith.addf %8, %11 : vector<1x128xf32>
    %13 = vector.extract_strided_slice %1 {offsets = [2, 0], sizes = [1, 128], strides = [1, 1]} : vector<3x128xf32> to vector<1x128xf32>
    %14 = vector.extract_strided_slice %1 {offsets = [2, 0], sizes = [1, 128], strides = [1, 1]} : vector<3x128xf32> to vector<1x128xf32>
    %15 = arith.mulf %13, %14 : vector<1x128xf32>
    %16 = arith.addf %12, %15 : vector<1x128xf32>
    %17 = tpu.iota {dimensions = array<i32: 1>} : vector<1x128xi32>
    %c48_i32 = arith.constant 48 : i32
    %18 = vector.broadcast %c48_i32 : i32 to vector<1x128xi32>
    %19 = arith.cmpi sge, %17, %18 : vector<1x128xi32>
    %20 = vector.extract_strided_slice %3 {offsets = [0, 0], sizes = [128, 1], strides = [1, 1]} : vector<128x3xf32> to vector<128x1xf32>
    %21 = vector.extract_strided_slice %1 {offsets = [0, 0], sizes = [1, 128], strides = [1, 1]} : vector<3x128xf32> to vector<1x128xf32>
    %22 = vector.broadcast %20 : vector<128x1xf32> to vector<128x128xf32>
    %23 = vector.broadcast %21 : vector<1x128xf32> to vector<128x128xf32>
    %24 = arith.mulf %22, %23 : vector<128x128xf32>
    %25 = vector.extract_strided_slice %3 {offsets = [0, 1], sizes = [128, 1], strides = [1, 1]} : vector<128x3xf32> to vector<128x1xf32>
    %26 = vector.extract_strided_slice %1 {offsets = [1, 0], sizes = [1, 128], strides = [1, 1]} : vector<3x128xf32> to vector<1x128xf32>
    %27 = vector.broadcast %25 : vector<128x1xf32> to vector<128x128xf32>
    %28 = vector.broadcast %26 : vector<1x128xf32> to vector<128x128xf32>
    %29 = arith.mulf %27, %28 : vector<128x128xf32>
    %30 = arith.addf %24, %29 : vector<128x128xf32>
    %31 = vector.extract_strided_slice %3 {offsets = [0, 2], sizes = [128, 1], strides = [1, 1]} : vector<128x3xf32> to vector<128x1xf32>
    %32 = vector.extract_strided_slice %1 {offsets = [2, 0], sizes = [1, 128], strides = [1, 1]} : vector<3x128xf32> to vector<1x128xf32>
    %33 = vector.broadcast %31 : vector<128x1xf32> to vector<128x128xf32>
    %34 = vector.broadcast %32 : vector<1x128xf32> to vector<128x128xf32>
    %35 = arith.mulf %33, %34 : vector<128x128xf32>
    %36 = arith.addf %30, %35 : vector<128x128xf32>
    %cst = arith.constant 2.000000e+00 : f32
    %37 = vector.broadcast %cst : f32 to vector<128x128xf32>
    %38 = arith.mulf %37, %36 : vector<128x128xf32>
    %39 = vector.broadcast %16 : vector<1x128xf32> to vector<128x128xf32>
    %40 = arith.subf %39, %38 : vector<128x128xf32>
    %41 = tpu.iota {dimensions = array<i32: 0>} : vector<128x1xi32>
    %c0_i32 = arith.constant 0 : i32
    %42 = vector.broadcast %c0_i32 : i32 to vector<128x1xi32>
    %43 = arith.addi %41, %42 : vector<128x1xi32>
    %44 = vector.broadcast %17 : vector<1x128xi32> to vector<128x128xi32>
    %45 = vector.broadcast %43 : vector<128x1xi32> to vector<128x128xi32>
    %46 = arith.cmpi eq, %44, %45 : vector<128x128xi32>
    %47 = vector.broadcast %19 : vector<1x128xi1> to vector<128x128xi1>
    %48 = arith.ori %46, %47 : vector<128x128xi1>
    %cst_8 = arith.constant 1.000000e+30 : f32
    %49 = vector.broadcast %cst_8 : f32 to vector<128x128xf32>
    %50 = arith.select %48, %49, %40 : vector<128x128xi1>, vector<128x128xf32>
    %cst_9 = arith.constant 0.000000e+00 : f32
    %51 = vector.broadcast %cst_9 : f32 to vector<128x128xf32>
    %cst_10 = arith.constant dense<0x7F800000> : vector<128xf32>
    %52 = vector.multi_reduction <minimumf>, %50, %cst_10 [1] : vector<128x128xf32> to vector<128xf32>
    %53 = vector.shape_cast %52 : vector<128xf32> to vector<128x1xf32>
    %54 = vector.broadcast %53 : vector<128x1xf32> to vector<128x128xf32>
    %55 = arith.cmpf ole, %50, %54 : vector<128x128xf32>
    %cst_11 = arith.constant 5.000000e+29 : f32
    %56 = vector.broadcast %cst_11 : f32 to vector<128x1xf32>
    %57 = arith.cmpf olt, %53, %56 : vector<128x1xf32>
    %58 = vector.broadcast %57 : vector<128x1xi1> to vector<128x128xi1>
    %59 = arith.andi %55, %58 : vector<128x128xi1>
    %60 = arith.extui %59 : vector<128x128xi1> to vector<128x128xi32>
    %61 = arith.sitofp %60 : vector<128x128xi32> to vector<128x128xf32>
    %62 = arith.addf %51, %61 : vector<128x128xf32>
    %cst_12 = arith.constant 1.000000e+30 : f32
    %63 = vector.broadcast %cst_12 : f32 to vector<128x128xf32>
    %64 = arith.select %59, %63, %50 : vector<128x128xi1>, vector<128x128xf32>
    %cst_13 = arith.constant dense<0x7F800000> : vector<128xf32>
    %65 = vector.multi_reduction <minimumf>, %64, %cst_13 [1] : vector<128x128xf32> to vector<128xf32>
    %66 = vector.shape_cast %65 : vector<128xf32> to vector<128x1xf32>
    %67 = vector.broadcast %66 : vector<128x1xf32> to vector<128x128xf32>
    %68 = arith.cmpf ole, %64, %67 : vector<128x128xf32>
    %cst_14 = arith.constant 5.000000e+29 : f32
    %69 = vector.broadcast %cst_14 : f32 to vector<128x1xf32>
    %70 = arith.cmpf olt, %66, %69 : vector<128x1xf32>
    %71 = vector.broadcast %70 : vector<128x1xi1> to vector<128x128xi1>
    %72 = arith.andi %68, %71 : vector<128x128xi1>
    %73 = arith.extui %72 : vector<128x128xi1> to vector<128x128xi32>
    %74 = arith.sitofp %73 : vector<128x128xi32> to vector<128x128xf32>
    %75 = arith.addf %62, %74 : vector<128x128xf32>
    %cst_15 = arith.constant 1.000000e+30 : f32
    %76 = vector.broadcast %cst_15 : f32 to vector<128x128xf32>
    %77 = arith.select %72, %76, %64 : vector<128x128xi1>, vector<128x128xf32>
    %cst_16 = arith.constant dense<0x7F800000> : vector<128xf32>
    %78 = vector.multi_reduction <minimumf>, %77, %cst_16 [1] : vector<128x128xf32> to vector<128xf32>
    %79 = vector.shape_cast %78 : vector<128xf32> to vector<128x1xf32>
    %80 = vector.broadcast %79 : vector<128x1xf32> to vector<128x128xf32>
    %81 = arith.cmpf ole, %77, %80 : vector<128x128xf32>
    %cst_17 = arith.constant 5.000000e+29 : f32
    %82 = vector.broadcast %cst_17 : f32 to vector<128x1xf32>
    %83 = arith.cmpf olt, %79, %82 : vector<128x1xf32>
    %84 = vector.broadcast %83 : vector<128x1xi1> to vector<128x128xi1>
    %85 = arith.andi %81, %84 : vector<128x128xi1>
    %86 = arith.extui %85 : vector<128x128xi1> to vector<128x128xi32>
    %87 = arith.sitofp %86 : vector<128x128xi32> to vector<128x128xf32>
    %88 = arith.addf %75, %87 : vector<128x128xf32>
    %cst_18 = arith.constant 1.000000e+30 : f32
    %89 = vector.broadcast %cst_18 : f32 to vector<128x128xf32>
    %90 = arith.select %85, %89, %77 : vector<128x128xi1>, vector<128x128xf32>
    %cst_19 = arith.constant dense<0x7F800000> : vector<128xf32>
    %91 = vector.multi_reduction <minimumf>, %90, %cst_19 [1] : vector<128x128xf32> to vector<128xf32>
    %92 = vector.shape_cast %91 : vector<128xf32> to vector<128x1xf32>
    %93 = vector.broadcast %92 : vector<128x1xf32> to vector<128x128xf32>
    %94 = arith.cmpf ole, %90, %93 : vector<128x128xf32>
    %cst_20 = arith.constant 5.000000e+29 : f32
    %95 = vector.broadcast %cst_20 : f32 to vector<128x1xf32>
    %96 = arith.cmpf olt, %92, %95 : vector<128x1xf32>
    %97 = vector.broadcast %96 : vector<128x1xi1> to vector<128x128xi1>
    %98 = arith.andi %94, %97 : vector<128x128xi1>
    %99 = arith.extui %98 : vector<128x128xi1> to vector<128x128xi32>
    %100 = arith.sitofp %99 : vector<128x128xi32> to vector<128x128xf32>
    %101 = arith.addf %88, %100 : vector<128x128xf32>
    %102 = arith.truncf %101 : vector<128x128xf32> to vector<128x128xbf16>
    %103 = arith.truncf %1 : vector<3x128xf32> to vector<3x128xbf16>
    %cst_21 = arith.constant dense<0.000000e+00> : vector<3x128xf32>
    %104 = tpu.matmul %103, %102, %cst_21 {dimension_numbers = #tpu.dot_dimension_numbers<[1], [1], [0], [0], [0, 0, 1, 0], [], []>} : vector<3x128xbf16>, vector<128x128xbf16>, vector<3x128xf32> -> vector<3x128xf32>
    %105 = arith.truncf %104 : vector<3x128xf32> to vector<3x128xbf16>
    %c0_22 = arith.constant 0 : index
    %c0_23 = arith.constant 0 : index
    %106 = vector.load %arg4[%c0_22, %c0_23] : memref<6x3xbf16, #tpu.memory_space<vmem>>, vector<6x3xbf16>
    %c0_24 = arith.constant 0 : index
    %c0_25 = arith.constant 0 : index
    %107 = vector.load %arg5[%c0_24, %c0_25] : memref<6x4xbf16, #tpu.memory_space<vmem>>, vector<6x4xbf16>
    %c0_26 = arith.constant 0 : index
    %c0_27 = arith.constant 0 : index
    %108 = vector.load %arg6[%c0_26, %c0_27] : memref<6x3xbf16, #tpu.memory_space<vmem>>, vector<6x3xbf16>
    %c0_28 = arith.constant 0 : index
    %c0_29 = arith.constant 0 : index
    %109 = vector.load %arg7[%c0_28, %c0_29] : memref<6x4xbf16, #tpu.memory_space<vmem>>, vector<6x4xbf16>
    %c0_30 = arith.constant 0 : index
    %c0_31 = arith.constant 0 : index
    %110 = vector.load %arg8[%c0_30, %c0_31] : memref<6x1xf32, #tpu.memory_space<vmem>>, vector<6x1xf32>
    %111 = arith.truncf %5 : vector<4x128xf32> to vector<4x128xbf16>
    %cst_32 = arith.constant dense<0.000000e+00> : vector<4x128xf32>
    %112 = tpu.matmul %111, %102, %cst_32 {dimension_numbers = #tpu.dot_dimension_numbers<[1], [1], [0], [0], [0, 0, 1, 0], [], []>} : vector<4x128xbf16>, vector<128x128xbf16>, vector<4x128xf32> -> vector<4x128xf32>
    %cst_33 = arith.constant dense<0.000000e+00> : vector<6x128xf32>
    %113 = tpu.matmul %106, %105, %cst_33 {dimension_numbers = #tpu.dot_dimension_numbers<[1], [0], [0], [1], [0, 0, 1, 1], [], []>} : vector<6x3xbf16>, vector<3x128xbf16>, vector<6x128xf32> -> vector<6x128xf32>
    %114 = arith.truncf %112 : vector<4x128xf32> to vector<4x128xbf16>
    %cst_34 = arith.constant dense<0.000000e+00> : vector<6x128xf32>
    %115 = tpu.matmul %107, %114, %cst_34 {dimension_numbers = #tpu.dot_dimension_numbers<[1], [0], [0], [1], [0, 0, 1, 1], [], []>} : vector<6x4xbf16>, vector<4x128xbf16>, vector<6x128xf32> -> vector<6x128xf32>
    %116 = arith.addf %113, %115 : vector<6x128xf32>
    %cst_35 = arith.constant dense<0.000000e+00> : vector<6x128xf32>
    %117 = tpu.matmul %108, %103, %cst_35 {dimension_numbers = #tpu.dot_dimension_numbers<[1], [0], [0], [1], [0, 0, 1, 1], [], []>} : vector<6x3xbf16>, vector<3x128xbf16>, vector<6x128xf32> -> vector<6x128xf32>
    %118 = arith.addf %116, %117 : vector<6x128xf32>
    %cst_36 = arith.constant dense<0.000000e+00> : vector<6x128xf32>
    %119 = tpu.matmul %109, %111, %cst_36 {dimension_numbers = #tpu.dot_dimension_numbers<[1], [0], [0], [1], [0, 0, 1, 1], [], []>} : vector<6x4xbf16>, vector<4x128xbf16>, vector<6x128xf32> -> vector<6x128xf32>
    %120 = arith.addf %118, %119 : vector<6x128xf32>
    %121 = vector.broadcast %110 : vector<6x1xf32> to vector<6x128xf32>
    %122 = arith.addf %120, %121 : vector<6x128xf32>
    %cst_37 = arith.constant 0.000000e+00 : f32
    %123 = vector.broadcast %cst_37 : f32 to vector<6x128xf32>
    %124 = arith.maximumf %122, %123 : vector<6x128xf32>
    %c0_38 = arith.constant 0 : index
    %c0_39 = arith.constant 0 : index
    %125 = vector.load %arg9[%c0_38, %c0_39] : memref<6x3xbf16, #tpu.memory_space<vmem>>, vector<6x3xbf16>
    %c0_40 = arith.constant 0 : index
    %c0_41 = arith.constant 0 : index
    %126 = vector.load %arg10[%c0_40, %c0_41] : memref<6x6xbf16, #tpu.memory_space<vmem>>, vector<6x6xbf16>
    %c0_42 = arith.constant 0 : index
    %c0_43 = arith.constant 0 : index
    %127 = vector.load %arg11[%c0_42, %c0_43] : memref<6x3xbf16, #tpu.memory_space<vmem>>, vector<6x3xbf16>
    %c0_44 = arith.constant 0 : index
    %c0_45 = arith.constant 0 : index
    %128 = vector.load %arg12[%c0_44, %c0_45] : memref<6x6xbf16, #tpu.memory_space<vmem>>, vector<6x6xbf16>
    %c0_46 = arith.constant 0 : index
    %c0_47 = arith.constant 0 : index
    %129 = vector.load %arg13[%c0_46, %c0_47] : memref<6x1xf32, #tpu.memory_space<vmem>>, vector<6x1xf32>
    %130 = arith.truncf %124 : vector<6x128xf32> to vector<6x128xbf16>
    %cst_48 = arith.constant dense<0.000000e+00> : vector<6x128xf32>
    %131 = tpu.matmul %130, %102, %cst_48 {dimension_numbers = #tpu.dot_dimension_numbers<[1], [1], [0], [0], [0, 0, 1, 0], [], []>} : vector<6x128xbf16>, vector<128x128xbf16>, vector<6x128xf32> -> vector<6x128xf32>
    %cst_49 = arith.constant dense<0.000000e+00> : vector<6x128xf32>
    %132 = tpu.matmul %125, %105, %cst_49 {dimension_numbers = #tpu.dot_dimension_numbers<[1], [0], [0], [1], [0, 0, 1, 1], [], []>} : vector<6x3xbf16>, vector<3x128xbf16>, vector<6x128xf32> -> vector<6x128xf32>
    %133 = arith.truncf %131 : vector<6x128xf32> to vector<6x128xbf16>
    %cst_50 = arith.constant dense<0.000000e+00> : vector<6x128xf32>
    %134 = tpu.matmul %126, %133, %cst_50 {dimension_numbers = #tpu.dot_dimension_numbers<[1], [0], [0], [1], [0, 0, 1, 1], [], []>} : vector<6x6xbf16>, vector<6x128xbf16>, vector<6x128xf32> -> vector<6x128xf32>
    %135 = arith.addf %132, %134 : vector<6x128xf32>
    %cst_51 = arith.constant dense<0.000000e+00> : vector<6x128xf32>
    %136 = tpu.matmul %127, %103, %cst_51 {dimension_numbers = #tpu.dot_dimension_numbers<[1], [0], [0], [1], [0, 0, 1, 1], [], []>} : vector<6x3xbf16>, vector<3x128xbf16>, vector<6x128xf32> -> vector<6x128xf32>
    %137 = arith.addf %135, %136 : vector<6x128xf32>
    %cst_52 = arith.constant dense<0.000000e+00> : vector<6x128xf32>
    %138 = tpu.matmul %128, %130, %cst_52 {dimension_numbers = #tpu.dot_dimension_numbers<[1], [0], [0], [1], [0, 0, 1, 1], [], []>} : vector<6x6xbf16>, vector<6x128xbf16>, vector<6x128xf32> -> vector<6x128xf32>
    %139 = arith.addf %137, %138 : vector<6x128xf32>
    %140 = vector.broadcast %129 : vector<6x1xf32> to vector<6x128xf32>
    %141 = arith.addf %139, %140 : vector<6x128xf32>
    %cst_53 = arith.constant 0.000000e+00 : f32
    %142 = vector.broadcast %cst_53 : f32 to vector<6x128xf32>
    %143 = arith.maximumf %141, %142 : vector<6x128xf32>
    %c0_54 = arith.constant 0 : index
    %c0_55 = arith.constant 0 : index
    %144 = vector.load %arg14[%c0_54, %c0_55] : memref<8x3xbf16, #tpu.memory_space<vmem>>, vector<8x3xbf16>
    %c0_56 = arith.constant 0 : index
    %c0_57 = arith.constant 0 : index
    %145 = vector.load %arg15[%c0_56, %c0_57] : memref<8x6xbf16, #tpu.memory_space<vmem>>, vector<8x6xbf16>
    %c0_58 = arith.constant 0 : index
    %c0_59 = arith.constant 0 : index
    %146 = vector.load %arg16[%c0_58, %c0_59] : memref<8x3xbf16, #tpu.memory_space<vmem>>, vector<8x3xbf16>
    %c0_60 = arith.constant 0 : index
    %c0_61 = arith.constant 0 : index
    %147 = vector.load %arg17[%c0_60, %c0_61] : memref<8x6xbf16, #tpu.memory_space<vmem>>, vector<8x6xbf16>
    %c0_62 = arith.constant 0 : index
    %c0_63 = arith.constant 0 : index
    %148 = vector.load %arg18[%c0_62, %c0_63] : memref<8x1xf32, #tpu.memory_space<vmem>>, vector<8x1xf32>
    %149 = arith.truncf %143 : vector<6x128xf32> to vector<6x128xbf16>
    %cst_64 = arith.constant dense<0.000000e+00> : vector<6x128xf32>
    %150 = tpu.matmul %149, %102, %cst_64 {dimension_numbers = #tpu.dot_dimension_numbers<[1], [1], [0], [0], [0, 0, 1, 0], [], []>} : vector<6x128xbf16>, vector<128x128xbf16>, vector<6x128xf32> -> vector<6x128xf32>
    %cst_65 = arith.constant dense<0.000000e+00> : vector<8x128xf32>
    %151 = tpu.matmul %144, %105, %cst_65 {dimension_numbers = #tpu.dot_dimension_numbers<[1], [0], [0], [1], [0, 0, 1, 1], [], []>} : vector<8x3xbf16>, vector<3x128xbf16>, vector<8x128xf32> -> vector<8x128xf32>
    %152 = arith.truncf %150 : vector<6x128xf32> to vector<6x128xbf16>
    %cst_66 = arith.constant dense<0.000000e+00> : vector<8x128xf32>
    %153 = tpu.matmul %145, %152, %cst_66 {dimension_numbers = #tpu.dot_dimension_numbers<[1], [0], [0], [1], [0, 0, 1, 1], [], []>} : vector<8x6xbf16>, vector<6x128xbf16>, vector<8x128xf32> -> vector<8x128xf32>
    %154 = arith.addf %151, %153 : vector<8x128xf32>
    %cst_67 = arith.constant dense<0.000000e+00> : vector<8x128xf32>
    %155 = tpu.matmul %146, %103, %cst_67 {dimension_numbers = #tpu.dot_dimension_numbers<[1], [0], [0], [1], [0, 0, 1, 1], [], []>} : vector<8x3xbf16>, vector<3x128xbf16>, vector<8x128xf32> -> vector<8x128xf32>
    %156 = arith.addf %154, %155 : vector<8x128xf32>
    %cst_68 = arith.constant dense<0.000000e+00> : vector<8x128xf32>
    %157 = tpu.matmul %147, %149, %cst_68 {dimension_numbers = #tpu.dot_dimension_numbers<[1], [0], [0], [1], [0, 0, 1, 1], [], []>} : vector<8x6xbf16>, vector<6x128xbf16>, vector<8x128xf32> -> vector<8x128xf32>
    %158 = arith.addf %156, %157 : vector<8x128xf32>
    %159 = vector.broadcast %148 : vector<8x1xf32> to vector<8x128xf32>
    %160 = arith.addf %158, %159 : vector<8x128xf32>
    %cst_69 = arith.constant 0.000000e+00 : f32
    %161 = vector.broadcast %cst_69 : f32 to vector<8x128xf32>
    %162 = arith.maximumf %160, %161 : vector<8x128xf32>
    %163 = arith.truncf %162 : vector<8x128xf32> to vector<8x128xbf16>
    %c0_70 = arith.constant 0 : index
    %c0_71 = arith.constant 0 : index
    %164 = vector.load %arg19[%c0_70, %c0_71] : memref<3x3xbf16, #tpu.memory_space<vmem>>, vector<3x3xbf16>
    %cst_72 = arith.constant dense<0.000000e+00> : vector<3x128xf32>
    %165 = tpu.matmul %164, %103, %cst_72 {dimension_numbers = #tpu.dot_dimension_numbers<[1], [0], [0], [1], [0, 0, 1, 1], [], []>} : vector<3x3xbf16>, vector<3x128xbf16>, vector<3x128xf32> -> vector<3x128xf32>
    %c0_73 = arith.constant 0 : index
    %c0_74 = arith.constant 0 : index
    %166 = vector.load %arg20[%c0_73, %c0_74] : memref<3x8xbf16, #tpu.memory_space<vmem>>, vector<3x8xbf16>
    %cst_75 = arith.constant dense<0.000000e+00> : vector<3x128xf32>
    %167 = tpu.matmul %166, %163, %cst_75 {dimension_numbers = #tpu.dot_dimension_numbers<[1], [0], [0], [1], [0, 0, 1, 1], [], []>} : vector<3x8xbf16>, vector<8x128xbf16>, vector<3x128xf32> -> vector<3x128xf32>
    %168 = arith.addf %165, %167 : vector<3x128xf32>
    %c0_76 = arith.constant 0 : index
    %c0_77 = arith.constant 0 : index
    %169 = vector.load %arg21[%c0_76, %c0_77] : memref<3x1xf32, #tpu.memory_space<vmem>>, vector<3x1xf32>
    %170 = vector.broadcast %169 : vector<3x1xf32> to vector<3x128xf32>
    %171 = arith.addf %168, %170 : vector<3x128xf32>
    %172 = math.tanh %171 : vector<3x128xf32>
    %173 = arith.addf %1, %172 : vector<3x128xf32>
    %c0_78 = arith.constant 0 : index
    %c0_79 = arith.constant 0 : index
    %c0_80 = arith.constant 0 : index
    %174 = vector.load %arg22[%c0_78, %c0_79, %c0_80] : memref<1x3x128xf32, #tpu.memory_space<vmem>>, vector<1x3x128xf32>
    %175 = vector.shape_cast %174 : vector<1x3x128xf32> to vector<3x128xf32>
    %176 = vector.shape_cast %173 : vector<3x128xf32> to vector<1x3x128xf32>
    tpu.vector_store %arg22[%c0_78, %c0_79, %c0_80], %176 {strides = array<i32>} : memref<1x3x128xf32, #tpu.memory_space<vmem>>, vector<1x3x128xf32>,
    %c0_81 = arith.constant 0 : index
    %c0_82 = arith.constant 0 : index
    %c0_83 = arith.constant 0 : index
    %177 = vector.load %arg23[%c0_81, %c0_82, %c0_83] : memref<1x8x128xf32, #tpu.memory_space<vmem>>, vector<1x8x128xf32>
    %178 = vector.shape_cast %177 : vector<1x8x128xf32> to vector<8x128xf32>
    %179 = vector.shape_cast %162 : vector<8x128xf32> to vector<1x8x128xf32>
    tpu.vector_store %arg23[%c0_81, %c0_82, %c0_83], %179 {strides = array<i32>} : memref<1x8x128xf32, #tpu.memory_space<vmem>>, vector<1x8x128xf32>,
    return
  }
  func.func @transform_0(%arg0: i32) -> (i32, i32, i32) {
    %c0_i32 = arith.constant 0 : i32
    %c0_i32_0 = arith.constant 0 : i32
    %c0_i32_1 = arith.constant 0 : i32
    return %arg0, %c0_i32, %c0_i32_0 : i32, i32, i32
  }
  func.func @transform_1(%arg0: i32) -> (i32, i32, i32) {
    %c0_i32 = arith.constant 0 : i32
    %c0_i32_0 = arith.constant 0 : i32
    %c0_i32_1 = arith.constant 0 : i32
    return %arg0, %c0_i32, %c0_i32_0 : i32, i32, i32
  }
  func.func @transform_2(%arg0: i32) -> (i32, i32, i32) {
    %c0_i32 = arith.constant 0 : i32
    %c0_i32_0 = arith.constant 0 : i32
    %c0_i32_1 = arith.constant 0 : i32
    return %arg0, %c0_i32, %c0_i32_0 : i32, i32, i32
  }
  func.func @transform_3(%arg0: i32) -> (i32, i32) {
    %c0_i32 = arith.constant 0 : i32
    %c0_i32_0 = arith.constant 0 : i32
    %c0_i32_1 = arith.constant 0 : i32
    return %c0_i32, %c0_i32_0 : i32, i32
  }
  func.func @transform_4(%arg0: i32) -> (i32, i32) {
    %c0_i32 = arith.constant 0 : i32
    %c0_i32_0 = arith.constant 0 : i32
    %c0_i32_1 = arith.constant 0 : i32
    return %c0_i32, %c0_i32_0 : i32, i32
  }
  func.func @transform_5(%arg0: i32) -> (i32, i32) {
    %c0_i32 = arith.constant 0 : i32
    %c0_i32_0 = arith.constant 0 : i32
    %c0_i32_1 = arith.constant 0 : i32
    return %c0_i32, %c0_i32_0 : i32, i32
  }
  func.func @transform_6(%arg0: i32) -> (i32, i32) {
    %c0_i32 = arith.constant 0 : i32
    %c0_i32_0 = arith.constant 0 : i32
    %c0_i32_1 = arith.constant 0 : i32
    return %c0_i32, %c0_i32_0 : i32, i32
  }
  func.func @transform_7(%arg0: i32) -> (i32, i32) {
    %c0_i32 = arith.constant 0 : i32
    %c0_i32_0 = arith.constant 0 : i32
    %c0_i32_1 = arith.constant 0 : i32
    return %c0_i32, %c0_i32_0 : i32, i32
  }
  func.func @transform_8(%arg0: i32) -> (i32, i32) {
    %c0_i32 = arith.constant 0 : i32
    %c0_i32_0 = arith.constant 0 : i32
    %c0_i32_1 = arith.constant 0 : i32
    return %c0_i32, %c0_i32_0 : i32, i32
  }
  func.func @transform_9(%arg0: i32) -> (i32, i32) {
    %c0_i32 = arith.constant 0 : i32
    %c0_i32_0 = arith.constant 0 : i32
    %c0_i32_1 = arith.constant 0 : i32
    return %c0_i32, %c0_i32_0 : i32, i32
  }
  func.func @transform_10(%arg0: i32) -> (i32, i32) {
    %c0_i32 = arith.constant 0 : i32
    %c0_i32_0 = arith.constant 0 : i32
    %c0_i32_1 = arith.constant 0 : i32
    return %c0_i32, %c0_i32_0 : i32, i32
  }
  func.func @transform_11(%arg0: i32) -> (i32, i32) {
    %c0_i32 = arith.constant 0 : i32
    %c0_i32_0 = arith.constant 0 : i32
    %c0_i32_1 = arith.constant 0 : i32
    return %c0_i32, %c0_i32_0 : i32, i32
  }
  func.func @transform_12(%arg0: i32) -> (i32, i32) {
    %c0_i32 = arith.constant 0 : i32
    %c0_i32_0 = arith.constant 0 : i32
    %c0_i32_1 = arith.constant 0 : i32
    return %c0_i32, %c0_i32_0 : i32, i32
  }
  func.func @transform_13(%arg0: i32) -> (i32, i32) {
    %c0_i32 = arith.constant 0 : i32
    %c0_i32_0 = arith.constant 0 : i32
    %c0_i32_1 = arith.constant 0 : i32
    return %c0_i32, %c0_i32_0 : i32, i32
  }
  func.func @transform_14(%arg0: i32) -> (i32, i32) {
    %c0_i32 = arith.constant 0 : i32
    %c0_i32_0 = arith.constant 0 : i32
    %c0_i32_1 = arith.constant 0 : i32
    return %c0_i32, %c0_i32_0 : i32, i32
  }
  func.func @transform_15(%arg0: i32) -> (i32, i32) {
    %c0_i32 = arith.constant 0 : i32
    %c0_i32_0 = arith.constant 0 : i32
    %c0_i32_1 = arith.constant 0 : i32
    return %c0_i32, %c0_i32_0 : i32, i32
  }
  func.func @transform_16(%arg0: i32) -> (i32, i32) {
    %c0_i32 = arith.constant 0 : i32
    %c0_i32_0 = arith.constant 0 : i32
    %c0_i32_1 = arith.constant 0 : i32
    return %c0_i32, %c0_i32_0 : i32, i32
  }
  func.func @transform_17(%arg0: i32) -> (i32, i32) {
    %c0_i32 = arith.constant 0 : i32
    %c0_i32_0 = arith.constant 0 : i32
    %c0_i32_1 = arith.constant 0 : i32
    return %c0_i32, %c0_i32_0 : i32, i32
  }
  func.func @transform_18(%arg0: i32) -> (i32, i32) {
    %c0_i32 = arith.constant 0 : i32
    %c0_i32_0 = arith.constant 0 : i32
    %c0_i32_1 = arith.constant 0 : i32
    return %c0_i32, %c0_i32_0 : i32, i32
  }
  func.func @transform_19(%arg0: i32) -> (i32, i32) {
    %c0_i32 = arith.constant 0 : i32
    %c0_i32_0 = arith.constant 0 : i32
    %c0_i32_1 = arith.constant 0 : i32
    return %c0_i32, %c0_i32_0 : i32, i32
  }
  func.func @transform_20(%arg0: i32) -> (i32, i32) {
    %c0_i32 = arith.constant 0 : i32
    %c0_i32_0 = arith.constant 0 : i32
    %c0_i32_1 = arith.constant 0 : i32
    return %c0_i32, %c0_i32_0 : i32, i32
  }
  func.func @transform_21(%arg0: i32) -> (i32, i32, i32) {
    %c0_i32 = arith.constant 0 : i32
    %c0_i32_0 = arith.constant 0 : i32
    %c0_i32_1 = arith.constant 0 : i32
    return %arg0, %c0_i32, %c0_i32_0 : i32, i32, i32
  }
  func.func @transform_22(%arg0: i32) -> (i32, i32, i32) {
    %c0_i32 = arith.constant 0 : i32
    %c0_i32_0 = arith.constant 0 : i32
    %c0_i32_1 = arith.constant 0 : i32
    return %arg0, %c0_i32, %c0_i32_0 : i32, i32, i32
  }
}

</mosaic_0001>

<llo_original>
// kernel: tpu_custom_call.1
$region0: #{tpu_custom_call.1}
  #allocation0 [shape = 'u32[]', space=smem, size = 0x4, offset = 0x4, fixed_abs, tag = 'smem constant byte address 0x4 - core index']
  #allocation1 [shape = 'u32[144,128]{1,0:T(1,128)}', space=vmem, size = 0x12000, scoped, tag = 'internal scratch']
  %s0 = inlined_call_operand.vmem [shape: f32[2,3,128], index: 0, kind: input, shape index: {}]
  %s1 = inlined_call_operand.vmem [shape: f32[2,128,3], index: 1, kind: input, shape index: {}]
  %s2 = inlined_call_operand.vmem [shape: f32[2,4,128], index: 2, kind: input, shape index: {}]
  %s3 = inlined_call_operand.vmem [shape: bf16[6,3], index: 3, kind: input, shape index: {}]
  %s4 = inlined_call_operand.vmem [shape: bf16[6,4], index: 4, kind: input, shape index: {}]
  %s5 = inlined_call_operand.vmem [shape: bf16[6,3], index: 5, kind: input, shape index: {}]
  %s6 = inlined_call_operand.vmem [shape: bf16[6,4], index: 6, kind: input, shape index: {}]
  %s7 = inlined_call_operand.vmem [shape: f32[6,1], index: 7, kind: input, shape index: {}]
  %s8 = inlined_call_operand.vmem [shape: bf16[6,3], index: 8, kind: input, shape index: {}]
  %s9 = inlined_call_operand.vmem [shape: bf16[6,6], index: 9, kind: input, shape index: {}]
  %s10 = inlined_call_operand.vmem [shape: bf16[6,3], index: 10, kind: input, shape index: {}]
  %s11 = inlined_call_operand.vmem [shape: bf16[6,6], index: 11, kind: input, shape index: {}]
  %s12 = inlined_call_operand.vmem [shape: f32[6,1], index: 12, kind: input, shape index: {}]
  %s13 = inlined_call_operand.vmem [shape: bf16[8,3], index: 13, kind: input, shape index: {}]
  %s14 = inlined_call_operand.vmem [shape: bf16[8,6], index: 14, kind: input, shape index: {}]
  %s15 = inlined_call_operand.vmem [shape: bf16[8,3], index: 15, kind: input, shape index: {}]
  %s16 = inlined_call_operand.vmem [shape: bf16[8,6], index: 16, kind: input, shape index: {}]
  %s17 = inlined_call_operand.vmem [shape: f32[8,1], index: 17, kind: input, shape index: {}]
  %s18 = inlined_call_operand.vmem [shape: bf16[3,3], index: 18, kind: input, shape index: {}]
  %s19 = inlined_call_operand.vmem [shape: bf16[3,8], index: 19, kind: input, shape index: {}]
  %s20 = inlined_call_operand.vmem [shape: f32[3,1], index: 20, kind: input, shape index: {}]
  %s21 = inlined_call_operand.vmem [shape: f32[2,3,128], index: 21, kind: output, shape index: {0}]
  %s22 = inlined_call_operand.hbm [shape: f32[2,8,128], index: 22, kind: output, shape index: {1}]
  %23 = xla_tuple %s21, %s22
  %s24 = sld [smem:[#allocation0]]
  $region125: #{tpu_custom_call.1} parent=0
    _
  %s26 = ssub.s32 1, %s24
  %s27 = scalar_select 0, %s26, %s24
  $region1: #{tpu_custom_call.1} parent=0
    #allocation2 [shape = 'u8[8192]{0}', space=vmem, size = 0x2000, scoped, tag = 'output window, operand 1']
    #allocation3 [shape = 's32[2]{0}', space=sflag, size = 0x8, scoped, tag = 'scoped memory for tpu_custom_call.1']
    %28 = vsyncpa [#allocation3], 0
    %s29 = scalar_lea.sflag [#allocation3], 1
    %30 = vsyncpa %s29, 0
    loop: start=0, step=1, limit=4
    $region2: #{tpu_custom_call.1} parent=1 // loop_pre_header
      _
    $region3: #{tpu_custom_call.1} parent=1 // loop_header
      %s32 = sphi 0, %s36
      %p33 = scmp.ge.s32.totalorder %s32, 4
      %s42 = sphi 0, %s44
      %s45 = sphi 0, %s42
      %s46 = sphi 0, %s45
      %s62 = sphi 0, %s46
      %s68 = sphi 0, %s70
      %s71 = sphi 0, %s68
      %s72 = sphi 0, %s71
      %s88 = sphi 0, %s72
      %s94 = sphi 0, %s96
      %s97 = sphi 0, %s94
      %s98 = sphi 0, %s97
      %s114 = sphi 0, %s98
      %s118 = sphi 0, %s118
      %s120 = sphi 0, %s118
      %s121 = sphi 0, %s120
      %s135 = sphi 0, %s121
      %s139 = sphi 0, %s139
      %s141 = sphi 0, %s139
      %s142 = sphi 0, %s141
      %s156 = sphi 0, %s142
      %s160 = sphi 0, %s160
      %s162 = sphi 0, %s160
      %s163 = sphi 0, %s162
      %s177 = sphi 0, %s163
      %s181 = sphi 0, %s181
      %s183 = sphi 0, %s181
      %s184 = sphi 0, %s183
      %s198 = sphi 0, %s184
      %s202 = sphi 0, %s202
      %s204 = sphi 0, %s202
      %s205 = sphi 0, %s204
      %s219 = sphi 0, %s205
      %s223 = sphi 0, %s223
      %s225 = sphi 0, %s223
      %s226 = sphi 0, %s225
      %s240 = sphi 0, %s226
      %s244 = sphi 0, %s244
      %s246 = sphi 0, %s244
      %s247 = sphi 0, %s246
      %s261 = sphi 0, %s247
      %s265 = sphi 0, %s265
      %s267 = sphi 0, %s265
      %s268 = sphi 0, %s267
      %s282 = sphi 0, %s268
      %s286 = sphi 0, %s286
      %s288 = sphi 0, %s286
      %s289 = sphi 0, %s288
      %s303 = sphi 0, %s289
      %s307 = sphi 0, %s307
      %s309 = sphi 0, %s307
      %s310 = sphi 0, %s309
      %s324 = sphi 0, %s310
      %s328 = sphi 0, %s328
      %s330 = sphi 0, %s328
      %s331 = sphi 0, %s330
      %s345 = sphi 0, %s331
      %s349 = sphi 0, %s349
      %s351 = sphi 0, %s349
      %s352 = sphi 0, %s351
      %s366 = sphi 0, %s352
      %s370 = sphi 0, %s370
      %s372 = sphi 0, %s370
      %s373 = sphi 0, %s372
      %s387 = sphi 0, %s373
      %s391 = sphi 0, %s391
      %s393 = sphi 0, %s391
      %s394 = sphi 0, %s393
      %s408 = sphi 0, %s394
      %s412 = sphi 0, %s412
      %s414 = sphi 0, %s412
      %s415 = sphi 0, %s414
      %s429 = sphi 0, %s415
      %s433 = sphi 0, %s433
      %s435 = sphi 0, %s433
      %s436 = sphi 0, %s435
      %s450 = sphi 0, %s436
      %s454 = sphi 0, %s454
      %s456 = sphi 0, %s454
      %s457 = sphi 0, %s456
      %s471 = sphi 0, %s457
      %s475 = sphi 0, %s475
      %s477 = sphi 0, %s475
      %s478 = sphi 0, %s477
      %s492 = sphi 0, %s478
      %s498 = sphi 0, %s500
      %s501 = sphi 0, %s498
      %s502 = sphi 0, %s501
      %s518 = sphi 0, %s502
      %s524 = sphi 0, %s526
      %s527 = sphi 0, %s524
      %s528 = sphi 0, %s527
      %s544 = sphi 0, %s528
    $region4: #{tpu_custom_call.1} parent=1 // loop_header_branch
      %35 = sbr.rel (%p33) target = $region8
    $region5: #{tpu_custom_call.1} parent=1 // loop_body
      %s37 = ssub.s32 %s32, 1
      %s38 = ssub.s32 %s32, 2
      %s39 = sadd.s32 %s32, 1
      %s40 = ssub.s32 %s32, %s39
      %p41 = scmp.eq.s32.totalorder %s40, 0
      %s43 = sadd.s32 %s42, 1
      %s44 = scalar_select %p41, %s42, %s43
      %p47 = pneg %p41
      %p48 = scmp.eq.s32.totalorder %s32, 1
      %p49 = por %p47, %p48
      %p50 = scmp.ne.s32.totalorder %s42, %s45
      %p51 = scmp.eq.s32.totalorder %s32, 0
      %p52 = por %p50, %p51
      %p53 = scmp.ne.s32.totalorder %s42, %s45
      %p54 = scmp.eq.s32.totalorder %s37, 1
      %p55 = por %p53, %p54
      %p56 = scmp.ne.s32.totalorder %s45, %s46
      %p57 = scmp.eq.s32.totalorder %s37, 0
      %p58 = por %p56, %p57
      %p59 = scmp.ne.s32.totalorder %s45, %s46
      %p60 = scmp.eq.s32.totalorder %s38, 1
      %p61 = por %p59, %p60
      %p63 = scmp.ne.s32.totalorder %s46, %s62
      %p64 = scmp.eq.s32.totalorder %s38, 0
      %p65 = por %p63, %p64
      %s66 = ssub.s32 %s32, %s39
      %p67 = scmp.eq.s32.totalorder %s66, 0
      %s69 = sadd.s32 %s68, 1
      %s70 = scalar_select %p67, %s68, %s69
      %p73 = pneg %p67
      %p74 = scmp.eq.s32.totalorder %s32, 1
      %p75 = por %p73, %p74
      %p76 = scmp.ne.s32.totalorder %s68, %s71
      %p77 = scmp.eq.s32.totalorder %s32, 0
      %p78 = por %p76, %p77
      %p79 = scmp.ne.s32.totalorder %s68, %s71
      %p80 = scmp.eq.s32.totalorder %s37, 1
      %p81 = por %p79, %p80
      %p82 = scmp.ne.s32.totalorder %s71, %s72
      %p83 = scmp.eq.s32.totalorder %s37, 0
      %p84 = por %p82, %p83
      %p85 = scmp.ne.s32.totalorder %s71, %s72
      %p86 = scmp.eq.s32.totalorder %s38, 1
      %p87 = por %p85, %p86
      %p89 = scmp.ne.s32.totalorder %s72, %s88
      %p90 = scmp.eq.s32.totalorder %s38, 0
      %p91 = por %p89, %p90
      %s92 = ssub.s32 %s32, %s39
      %p93 = scmp.eq.s32.totalorder %s92, 0
      %s95 = sadd.s32 %s94, 1
      %s96 = scalar_select %p93, %s94, %s95
      %p99 = pneg %p93
      %p100 = scmp.eq.s32.totalorder %s32, 1
      %p101 = por %p99, %p100
      %p102 = scmp.ne.s32.totalorder %s94, %s97
      %p103 = scmp.eq.s32.totalorder %s32, 0
      %p104 = por %p102, %p103
      %p105 = scmp.ne.s32.totalorder %s94, %s97
      %p106 = scmp.eq.s32.totalorder %s37, 1
      %p107 = por %p105, %p106
      %p108 = scmp.ne.s32.totalorder %s97, %s98
      %p109 = scmp.eq.s32.totalorder %s37, 0
      %p110 = por %p108, %p109
      %p111 = scmp.ne.s32.totalorder %s97, %s98
      %p112 = scmp.eq.s32.totalorder %s38, 1
      %p113 = por %p111, %p112
      %p115 = scmp.ne.s32.totalorder %s98, %s114
      %p116 = scmp.eq.s32.totalorder %s38, 0
      %p117 = por %p115, %p116
      %s119 = sadd.s32 %s118, 1
      %p122 = scmp.eq.s32.totalorder %s32, 1
      %p123 = scmp.ne.s32.totalorder %s118, %s120
      %p124 = scmp.eq.s32.totalorder %s32, 0
      %p125 = por %p123, %p124
      %p126 = scmp.ne.s32.totalorder %s118, %s120
      %p127 = scmp.eq.s32.totalorder %s37, 1
      %p128 = por %p126, %p127
      %p129 = scmp.ne.s32.totalorder %s120, %s121
      %p130 = scmp.eq.s32.totalorder %s37, 0
      %p131 = por %p129, %p130
      %p132 = scmp.ne.s32.totalorder %s120, %s121
      %p133 = scmp.eq.s32.totalorder %s38, 1
      %p134 = por %p132, %p133
      %p136 = scmp.ne.s32.totalorder %s121, %s135
      %p137 = scmp.eq.s32.totalorder %s38, 0
      %p138 = por %p136, %p137
      %s140 = sadd.s32 %s139, 1
      %p143 = scmp.eq.s32.totalorder %s32, 1
      %p144 = scmp.ne.s32.totalorder %s139, %s141
      %p145 = scmp.eq.s32.totalorder %s32, 0
      %p146 = por %p144, %p145
      %p147 = scmp.ne.s32.totalorder %s139, %s141
      %p148 = scmp.eq.s32.totalorder %s37, 1
      %p149 = por %p147, %p148
      %p150 = scmp.ne.s32.totalorder %s141, %s142
      %p151 = scmp.eq.s32.totalorder %s37, 0
      %p152 = por %p150, %p151
      %p153 = scmp.ne.s32.totalorder %s141, %s142
      %p154 = scmp.eq.s32.totalorder %s38, 1
      %p155 = por %p153, %p154
      %p157 = scmp.ne.s32.totalorder %s142, %s156
      %p158 = scmp.eq.s32.totalorder %s38, 0
      %p159 = por %p157, %p158
      %s161 = sadd.s32 %s160, 1
      %p164 = scmp.eq.s32.totalorder %s32, 1
      %p165 = scmp.ne.s32.totalorder %s160, %s162
      %p166 = scmp.eq.s32.totalorder %s32, 0
      %p167 = por %p165, %p166
      %p168 = scmp.ne.s32.totalorder %s160, %s162
      %p169 = scmp.eq.s32.totalorder %s37, 1
      %p170 = por %p168, %p169
      %p171 = scmp.ne.s32.totalorder %s162, %s163
      %p172 = scmp.eq.s32.totalorder %s37, 0
      %p173 = por %p171, %p172
      %p174 = scmp.ne.s32.totalorder %s162, %s163
      %p175 = scmp.eq.s32.totalorder %s38, 1
      %p176 = por %p174, %p175
      %p178 = scmp.ne.s32.totalorder %s163, %s177
      %p179 = scmp.eq.s32.totalorder %s38, 0
      %p180 = por %p178, %p179
      %s182 = sadd.s32 %s181, 1
      %p185 = scmp.eq.s32.totalorder %s32, 1
      %p186 = scmp.ne.s32.totalorder %s181, %s183
      %p187 = scmp.eq.s32.totalorder %s32, 0
      %p188 = por %p186, %p187
      %p189 = scmp.ne.s32.totalorder %s181, %s183
      %p190 = scmp.eq.s32.totalorder %s37, 1
      %p191 = por %p189, %p190
      %p192 = scmp.ne.s32.totalorder %s183, %s184
      %p193 = scmp.eq.s32.totalorder %s37, 0
      %p194 = por %p192, %p193
      %p195 = scmp.ne.s32.totalorder %s183, %s184
      %p196 = scmp.eq.s32.totalorder %s38, 1
      %p197 = por %p195, %p196
      %p199 = scmp.ne.s32.totalorder %s184, %s198
      %p200 = scmp.eq.s32.totalorder %s38, 0
      %p201 = por %p199, %p200
      %s203 = sadd.s32 %s202, 1
      %p206 = scmp.eq.s32.totalorder %s32, 1
      %p207 = scmp.ne.s32.totalorder %s202, %s204
      %p208 = scmp.eq.s32.totalorder %s32, 0
      %p209 = por %p207, %p208
      %p210 = scmp.ne.s32.totalorder %s202, %s204
      %p211 = scmp.eq.s32.totalorder %s37, 1
      %p212 = por %p210, %p211
      %p213 = scmp.ne.s32.totalorder %s204, %s205
      %p214 = scmp.eq.s32.totalorder %s37, 0
      %p215 = por %p213, %p214
      %p216 = scmp.ne.s32.totalorder %s204, %s205
      %p217 = scmp.eq.s32.totalorder %s38, 1
      %p218 = por %p216, %p217
      %p220 = scmp.ne.s32.totalorder %s205, %s219
      %p221 = scmp.eq.s32.totalorder %s38, 0
      %p222 = por %p220, %p221
      %s224 = sadd.s32 %s223, 1
      %p227 = scmp.eq.s32.totalorder %s32, 1
      %p228 = scmp.ne.s32.totalorder %s223, %s225
      %p229 = scmp.eq.s32.totalorder %s32, 0
      %p230 = por %p228, %p229
      %p231 = scmp.ne.s32.totalorder %s223, %s225
      %p232 = scmp.eq.s32.totalorder %s37, 1
      %p233 = por %p231, %p232
      %p234 = scmp.ne.s32.totalorder %s225, %s226
      %p235 = scmp.eq.s32.totalorder %s37, 0
      %p236 = por %p234, %p235
      %p237 = scmp.ne.s32.totalorder %s225, %s226
      %p238 = scmp.eq.s32.totalorder %s38, 1
      %p239 = por %p237, %p238
      %p241 = scmp.ne.s32.totalorder %s226, %s240
      %p242 = scmp.eq.s32.totalorder %s38, 0
      %p243 = por %p241, %p242
      %s245 = sadd.s32 %s244, 1
      %p248 = scmp.eq.s32.totalorder %s32, 1
      %p249 = scmp.ne.s32.totalorder %s244, %s246
      %p250 = scmp.eq.s32.totalorder %s32, 0
      %p251 = por %p249, %p250
      %p252 = scmp.ne.s32.totalorder %s244, %s246
      %p253 = scmp.eq.s32.totalorder %s37, 1
      %p254 = por %p252, %p253
      %p255 = scmp.ne.s32.totalorder %s246, %s247
      %p256 = scmp.eq.s32.totalorder %s37, 0
      %p257 = por %p255, %p256
      %p258 = scmp.ne.s32.totalorder %s246, %s247
      %p259 = scmp.eq.s32.totalorder %s38, 1
      %p260 = por %p258, %p259
      %p262 = scmp.ne.s32.totalorder %s247, %s261
      %p263 = scmp.eq.s32.totalorder %s38, 0
      %p264 = por %p262, %p263
      %s266 = sadd.s32 %s265, 1
      %p269 = scmp.eq.s32.totalorder %s32, 1
      %p270 = scmp.ne.s32.totalorder %s265, %s267
      %p271 = scmp.eq.s32.totalorder %s32, 0
      %p272 = por %p270, %p271
      %p273 = scmp.ne.s32.totalorder %s265, %s267
      %p274 = scmp.eq.s32.totalorder %s37, 1
      %p275 = por %p273, %p274
      %p276 = scmp.ne.s32.totalorder %s267, %s268
      %p277 = scmp.eq.s32.totalorder %s37, 0
      %p278 = por %p276, %p277
      %p279 = scmp.ne.s32.totalorder %s267, %s268
      %p280 = scmp.eq.s32.totalorder %s38, 1
      %p281 = por %p279, %p280
      %p283 = scmp.ne.s32.totalorder %s268, %s282
      %p284 = scmp.eq.s32.totalorder %s38, 0
      %p285 = por %p283, %p284
      %s287 = sadd.s32 %s286, 1
      %p290 = scmp.eq.s32.totalorder %s32, 1
      %p291 = scmp.ne.s32.totalorder %s286, %s288
      %p292 = scmp.eq.s32.totalorder %s32, 0
      %p293 = por %p291, %p292
      %p294 = scmp.ne.s32.totalorder %s286, %s288
      %p295 = scmp.eq.s32.totalorder %s37, 1
      %p296 = por %p294, %p295
      %p297 = scmp.ne.s32.totalorder %s288, %s289
      %p298 = scmp.eq.s32.totalorder %s37, 0
      %p299 = por %p297, %p298
      %p300 = scmp.ne.s32.totalorder %s288, %s289
      %p301 = scmp.eq.s32.totalorder %s38, 1
      %p302 = por %p300, %p301
      %p304 = scmp.ne.s32.totalorder %s289, %s303
      %p305 = scmp.eq.s32.totalorder %s38, 0
      %p306 = por %p304, %p305
      %s308 = sadd.s32 %s307, 1
      %p311 = scmp.eq.s32.totalorder %s32, 1
      %p312 = scmp.ne.s32.totalorder %s307, %s309
      %p313 = scmp.eq.s32.totalorder %s32, 0
      %p314 = por %p312, %p313
      %p315 = scmp.ne.s32.totalorder %s307, %s309
      %p316 = scmp.eq.s32.totalorder %s37, 1
      %p317 = por %p315, %p316
      %p318 = scmp.ne.s32.totalorder %s309, %s310
      %p319 = scmp.eq.s32.totalorder %s37, 0
      %p320 = por %p318, %p319
      %p321 = scmp.ne.s32.totalorder %s309, %s310
      %p322 = scmp.eq.s32.totalorder %s38, 1
      %p323 = por %p321, %p322
      %p325 = scmp.ne.s32.totalorder %s310, %s324
      %p326 = scmp.eq.s32.totalorder %s38, 0
      %p327 = por %p325, %p326
      %s329 = sadd.s32 %s328, 1
      %p332 = scmp.eq.s32.totalorder %s32, 1
      %p333 = scmp.ne.s32.totalorder %s328, %s330
      %p334 = scmp.eq.s32.totalorder %s32, 0
      %p335 = por %p333, %p334
      %p336 = scmp.ne.s32.totalorder %s328, %s330
      %p337 = scmp.eq.s32.totalorder %s37, 1
      %p338 = por %p336, %p337
      %p339 = scmp.ne.s32.totalorder %s330, %s331
      %p340 = scmp.eq.s32.totalorder %s37, 0
      %p341 = por %p339, %p340
      %p342 = scmp.ne.s32.totalorder %s330, %s331
      %p343 = scmp.eq.s32.totalorder %s38, 1
      %p344 = por %p342, %p343
      %p346 = scmp.ne.s32.totalorder %s331, %s345
      %p347 = scmp.eq.s32.totalorder %s38, 0
      %p348 = por %p346, %p347
      %s350 = sadd.s32 %s349, 1
      %p353 = scmp.eq.s32.totalorder %s32, 1
      %p354 = scmp.ne.s32.totalorder %s349, %s351
      %p355 = scmp.eq.s32.totalorder %s32, 0
      %p356 = por %p354, %p355
      %p357 = scmp.ne.s32.totalorder %s349, %s351
      %p358 = scmp.eq.s32.totalorder %s37, 1
      %p359 = por %p357, %p358
      %p360 = scmp.ne.s32.totalorder %s351, %s352
      %p361 = scmp.eq.s32.totalorder %s37, 0
      %p362 = por %p360, %p361
      %p363 = scmp.ne.s32.totalorder %s351, %s352
      %p364 = scmp.eq.s32.totalorder %s38, 1
      %p365 = por %p363, %p364
      %p367 = scmp.ne.s32.totalorder %s352, %s366
      %p368 = scmp.eq.s32.totalorder %s38, 0
      %p369 = por %p367, %p368
      %s371 = sadd.s32 %s370, 1
      %p374 = scmp.eq.s32.totalorder %s32, 1
      %p375 = scmp.ne.s32.totalorder %s370, %s372
      %p376 = scmp.eq.s32.totalorder %s32, 0
      %p377 = por %p375, %p376
      %p378 = scmp.ne.s32.totalorder %s370, %s372
      %p379 = scmp.eq.s32.totalorder %s37, 1
      %p380 = por %p378, %p379
      %p381 = scmp.ne.s32.totalorder %s372, %s373
      %p382 = scmp.eq.s32.totalorder %s37, 0
      %p383 = por %p381, %p382
      %p384 = scmp.ne.s32.totalorder %s372, %s373
      %p385 = scmp.eq.s32.totalorder %s38, 1
      %p386 = por %p384, %p385
      %p388 = scmp.ne.s32.totalorder %s373, %s387
      %p389 = scmp.eq.s32.totalorder %s38, 0
      %p390 = por %p388, %p389
      %s392 = sadd.s32 %s391, 1
      %p395 = scmp.eq.s32.totalorder %s32, 1
      %p396 = scmp.ne.s32.totalorder %s391, %s393
      %p397 = scmp.eq.s32.totalorder %s32, 0
      %p398 = por %p396, %p397
      %p399 = scmp.ne.s32.totalorder %s391, %s393
      %p400 = scmp.eq.s32.totalorder %s37, 1
      %p401 = por %p399, %p400
      %p402 = scmp.ne.s32.totalorder %s393, %s394
      %p403 = scmp.eq.s32.totalorder %s37, 0
      %p404 = por %p402, %p403
      %p405 = scmp.ne.s32.totalorder %s393, %s394
      %p406 = scmp.eq.s32.totalorder %s38, 1
      %p407 = por %p405, %p406
      %p409 = scmp.ne.s32.totalorder %s394, %s408
      %p410 = scmp.eq.s32.totalorder %s38, 0
      %p411 = por %p409, %p410
      %s413 = sadd.s32 %s412, 1
      %p416 = scmp.eq.s32.totalorder %s32, 1
      %p417 = scmp.ne.s32.totalorder %s412, %s414
      %p418 = scmp.eq.s32.totalorder %s32, 0
      %p419 = por %p417, %p418
      %p420 = scmp.ne.s32.totalorder %s412, %s414
      %p421 = scmp.eq.s32.totalorder %s37, 1
      %p422 = por %p420, %p421
      %p423 = scmp.ne.s32.totalorder %s414, %s415
      %p424 = scmp.eq.s32.totalorder %s37, 0
      %p425 = por %p423, %p424
      %p426 = scmp.ne.s32.totalorder %s414, %s415
      %p427 = scmp.eq.s32.totalorder %s38, 1
      %p428 = por %p426, %p427
      %p430 = scmp.ne.s32.totalorder %s415, %s429
      %p431 = scmp.eq.s32.totalorder %s38, 0
      %p432 = por %p430, %p431
      %s434 = sadd.s32 %s433, 1
      %p437 = scmp.eq.s32.totalorder %s32, 1
      %p438 = scmp.ne.s32.totalorder %s433, %s435
      %p439 = scmp.eq.s32.totalorder %s32, 0
      %p440 = por %p438, %p439
      %p441 = scmp.ne.s32.totalorder %s433, %s435
      %p442 = scmp.eq.s32.totalorder %s37, 1
      %p443 = por %p441, %p442
      %p444 = scmp.ne.s32.totalorder %s435, %s436
      %p445 = scmp.eq.s32.totalorder %s37, 0
      %p446 = por %p444, %p445
      %p447 = scmp.ne.s32.totalorder %s435, %s436
      %p448 = scmp.eq.s32.totalorder %s38, 1
      %p449 = por %p447, %p448
      %p451 = scmp.ne.s32.totalorder %s436, %s450
      %p452 = scmp.eq.s32.totalorder %s38, 0
      %p453 = por %p451, %p452
      %s455 = sadd.s32 %s454, 1
      %p458 = scmp.eq.s32.totalorder %s32, 1
      %p459 = scmp.ne.s32.totalorder %s454, %s456
      %p460 = scmp.eq.s32.totalorder %s32, 0
      %p461 = por %p459, %p460
      %p462 = scmp.ne.s32.totalorder %s454, %s456
      %p463 = scmp.eq.s32.totalorder %s37, 1
      %p464 = por %p462, %p463
      %p465 = scmp.ne.s32.totalorder %s456, %s457
      %p466 = scmp.eq.s32.totalorder %s37, 0
      %p467 = por %p465, %p466
      %p468 = scmp.ne.s32.totalorder %s456, %s457
      %p469 = scmp.eq.s32.totalorder %s38, 1
      %p470 = por %p468, %p469
      %p472 = scmp.ne.s32.totalorder %s457, %s471
      %p473 = scmp.eq.s32.totalorder %s38, 0
      %p474 = por %p472, %p473
      %s476 = sadd.s32 %s475, 1
      %p479 = scmp.eq.s32.totalorder %s32, 1
      %p480 = scmp.ne.s32.totalorder %s475, %s477
      %p481 = scmp.eq.s32.totalorder %s32, 0
      %p482 = por %p480, %p481
      %p483 = scmp.ne.s32.totalorder %s475, %s477
      %p484 = scmp.eq.s32.totalorder %s37, 1
      %p485 = por %p483, %p484
      %p486 = scmp.ne.s32.totalorder %s477, %s478
      %p487 = scmp.eq.s32.totalorder %s37, 0
      %p488 = por %p486, %p487
      %p489 = scmp.ne.s32.totalorder %s477, %s478
      %p490 = scmp.eq.s32.totalorder %s38, 1
      %p491 = por %p489, %p490
      %p493 = scmp.ne.s32.totalorder %s478, %s492
      %p494 = scmp.eq.s32.totalorder %s38, 0
      %p495 = por %p493, %p494
      %s496 = ssub.s32 %s32, %s39
      %p497 = scmp.eq.s32.totalorder %s496, 0
      %s499 = sadd.s32 %s498, 1
      %s500 = scalar_select %p497, %s498, %s499
      %p503 = pneg %p497
      %p504 = scmp.eq.s32.totalorder %s32, 1
      %p505 = por %p503, %p504
      %p506 = scmp.ne.s32.totalorder %s498, %s501
      %p507 = scmp.eq.s32.totalorder %s32, 0
      %p508 = por %p506, %p507
      %p509 = scmp.ne.s32.totalorder %s498, %s501
      %p510 = scmp.eq.s32.totalorder %s37, 1
      %p511 = por %p509, %p510
      %p512 = scmp.ne.s32.totalorder %s501, %s502
      %p513 = scmp.eq.s32.totalorder %s37, 0
      %p514 = por %p512, %p513
      %p515 = scmp.ne.s32.totalorder %s501, %s502
      %p516 = scmp.eq.s32.totalorder %s38, 1
      %p517 = por %p515, %p516
      %p519 = scmp.ne.s32.totalorder %s502, %s518
      %p520 = scmp.eq.s32.totalorder %s38, 0
      %p521 = por %p519, %p520
      %s522 = ssub.s32 %s32, %s39
      %p523 = scmp.eq.s32.totalorder %s522, 0
      %s525 = sadd.s32 %s524, 1
      %s526 = scalar_select %p523, %s524, %s525
      %p529 = pneg %p523
      %p530 = scmp.eq.s32.totalorder %s32, 1
      %p531 = por %p529, %p530
      %p532 = scmp.ne.s32.totalorder %s524, %s527
      %p533 = scmp.eq.s32.totalorder %s32, 0
      %p534 = por %p532, %p533
      %p535 = scmp.ne.s32.totalorder %s524, %s527
      %p536 = scmp.eq.s32.totalorder %s37, 1
      %p537 = por %p535, %p536
      %p538 = scmp.ne.s32.totalorder %s527, %s528
      %p539 = scmp.eq.s32.totalorder %s37, 0
      %p540 = por %p538, %p539
      %p541 = scmp.ne.s32.totalorder %s527, %s528
      %p542 = scmp.eq.s32.totalorder %s38, 1
      %p543 = por %p541, %p542
      %p545 = scmp.ne.s32.totalorder %s528, %s544
      %p546 = scmp.eq.s32.totalorder %s38, 0
      %p547 = por %p545, %p546
      %p548 = scmp.le.s32.totalorder 1, %s32
      %p549 = scmp.lt.s32.totalorder %s32, 3
      %p550 = pnand %p548, %p549
      %p551 = pneg %p550
      // Predicated region
      $region9: #{tpu_custom_call.1} parent=5 // pred_check
        _
      $region10: #{tpu_custom_call.1} parent=5 // pred_check_branch
        %553 = sbr.rel (%p550) target = $region12
      $region11: #{tpu_custom_call.1} parent=5 // pred_region
        %s554 = ssub.s32 %s32, 1
        // Predicated region
        $region13: #{tpu_custom_call.1} parent=11 // pred_check
          %p555 = pneg %p131
        $region14: #{tpu_custom_call.1} parent=11 // pred_check_branch
          %557 = sbr.rel (%p555) target = $region16
        $region15: #{tpu_custom_call.1} parent=11 // pred_region
          _
        $region16: #{tpu_custom_call.1} parent=11 // pred_fallthru
          _
        // Predicated region
        $region17: #{tpu_custom_call.1} parent=11 // pred_check
          %p558 = pneg %p152
        $region18: #{tpu_custom_call.1} parent=11 // pred_check_branch
          %560 = sbr.rel (%p558) target = $region20
        $region19: #{tpu_custom_call.1} parent=11 // pred_region
          _
        $region20: #{tpu_custom_call.1} parent=11 // pred_fallthru
          _
        // Predicated region
        $region21: #{tpu_custom_call.1} parent=11 // pred_check
          %p561 = pneg %p173
        $region22: #{tpu_custom_call.1} parent=11 // pred_check_branch
          %563 = sbr.rel (%p561) target = $region24
        $region23: #{tpu_custom_call.1} parent=11 // pred_region
          _
        $region24: #{tpu_custom_call.1} parent=11 // pred_fallthru
          _
        // Predicated region
        $region25: #{tpu_custom_call.1} parent=11 // pred_check
          %p564 = pneg %p194
        $region26: #{tpu_custom_call.1} parent=11 // pred_check_branch
          %566 = sbr.rel (%p564) target = $region28
        $region27: #{tpu_custom_call.1} parent=11 // pred_region
          _
        $region28: #{tpu_custom_call.1} parent=11 // pred_fallthru
          _
        // Predicated region
        $region29: #{tpu_custom_call.1} parent=11 // pred_check
          %p567 = pneg %p215
        $region30: #{tpu_custom_call.1} parent=11 // pred_check_branch
          %569 = sbr.rel (%p567) target = $region32
        $region31: #{tpu_custom_call.1} parent=11 // pred_region
          _
        $region32: #{tpu_custom_call.1} parent=11 // pred_fallthru
          _
        // Predicated region
        $region33: #{tpu_custom_call.1} parent=11 // pred_check
          %p570 = pneg %p236
        $region34: #{tpu_custom_call.1} parent=11 // pred_check_branch
          %572 = sbr.rel (%p570) target = $region36
        $region35: #{tpu_custom_call.1} parent=11 // pred_region
          _
        $region36: #{tpu_custom_call.1} parent=11 // pred_fallthru
          _
        // Predicated region
        $region37: #{tpu_custom_call.1} parent=11 // pred_check
          %p573 = pneg %p257
        $region38: #{tpu_custom_call.1} parent=11 // pred_check_branch
          %575 = sbr.rel (%p573) target = $region40
        $region39: #{tpu_custom_call.1} parent=11 // pred_region
          _
        $region40: #{tpu_custom_call.1} parent=11 // pred_fallthru
          _
        // Predicated region
        $region41: #{tpu_custom_call.1} parent=11 // pred_check
          %p576 = pneg %p278
        $region42: #{tpu_custom_call.1} parent=11 // pred_check_branch
          %578 = sbr.rel (%p576) target = $region44
        $region43: #{tpu_custom_call.1} parent=11 // pred_region
          _
        $region44: #{tpu_custom_call.1} parent=11 // pred_fallthru
          _
        // Predicated region
        $region45: #{tpu_custom_call.1} parent=11 // pred_check
          %p579 = pneg %p299
        $region46: #{tpu_custom_call.1} parent=11 // pred_check_branch
          %581 = sbr.rel (%p579) target = $region48
        $region47: #{tpu_custom_call.1} parent=11 // pred_region
          _
        $region48: #{tpu_custom_call.1} parent=11 // pred_fallthru
          _
        // Predicated region
        $region49: #{tpu_custom_call.1} parent=11 // pred_check
          %p582 = pneg %p320
        $region50: #{tpu_custom_call.1} parent=11 // pred_check_branch
          %584 = sbr.rel (%p582) target = $region52
        $region51: #{tpu_custom_call.1} parent=11 // pred_region
          _
        $region52: #{tpu_custom_call.1} parent=11 // pred_fallthru
          _
        // Predicated region
        $region53: #{tpu_custom_call.1} parent=11 // pred_check
          %p585 = pneg %p341
        $region54: #{tpu_custom_call.1} parent=11 // pred_check_branch
          %587 = sbr.rel (%p585) target = $region56
        $region55: #{tpu_custom_call.1} parent=11 // pred_region
          _
        $region56: #{tpu_custom_call.1} parent=11 // pred_fallthru
          _
        // Predicated region
        $region57: #{tpu_custom_call.1} parent=11 // pred_check
          %p588 = pneg %p362
        $region58: #{tpu_custom_call.1} parent=11 // pred_check_branch
          %590 = sbr.rel (%p588) target = $region60
        $region59: #{tpu_custom_call.1} parent=11 // pred_region
          _
        $region60: #{tpu_custom_call.1} parent=11 // pred_fallthru
          _
        // Predicated region
        $region61: #{tpu_custom_call.1} parent=11 // pred_check
          %p591 = pneg %p383
        $region62: #{tpu_custom_call.1} parent=11 // pred_check_branch
          %593 = sbr.rel (%p591) target = $region64
        $region63: #{tpu_custom_call.1} parent=11 // pred_region
          _
        $region64: #{tpu_custom_call.1} parent=11 // pred_fallthru
          _
        // Predicated region
        $region65: #{tpu_custom_call.1} parent=11 // pred_check
          %p594 = pneg %p404
        $region66: #{tpu_custom_call.1} parent=11 // pred_check_branch
          %596 = sbr.rel (%p594) target = $region68
        $region67: #{tpu_custom_call.1} parent=11 // pred_region
          _
        $region68: #{tpu_custom_call.1} parent=11 // pred_fallthru
          _
        // Predicated region
        $region69: #{tpu_custom_call.1} parent=11 // pred_check
          %p597 = pneg %p425
        $region70: #{tpu_custom_call.1} parent=11 // pred_check_branch
          %599 = sbr.rel (%p597) target = $region72
        $region71: #{tpu_custom_call.1} parent=11 // pred_region
          _
        $region72: #{tpu_custom_call.1} parent=11 // pred_fallthru
          _
        // Predicated region
        $region73: #{tpu_custom_call.1} parent=11 // pred_check
          %p600 = pneg %p446
        $region74: #{tpu_custom_call.1} parent=11 // pred_check_branch
          %602 = sbr.rel (%p600) target = $region76
        $region75: #{tpu_custom_call.1} parent=11 // pred_region
          _
        $region76: #{tpu_custom_call.1} parent=11 // pred_fallthru
          _
        // Predicated region
        $region77: #{tpu_custom_call.1} parent=11 // pred_check
          %p603 = pneg %p467
        $region78: #{tpu_custom_call.1} parent=11 // pred_check_branch
          %605 = sbr.rel (%p603) target = $region80
        $region79: #{tpu_custom_call.1} parent=11 // pred_region
          _
        $region80: #{tpu_custom_call.1} parent=11 // pred_fallthru
          _
        // Predicated region
        $region81: #{tpu_custom_call.1} parent=11 // pred_check
          %p606 = pneg %p488
        $region82: #{tpu_custom_call.1} parent=11 // pred_check_branch
          %608 = sbr.rel (%p606) target = $region84
        $region83: #{tpu_custom_call.1} parent=11 // pred_region
          _
        $region84: #{tpu_custom_call.1} parent=11 // pred_fallthru
          _
      $region12: #{tpu_custom_call.1} parent=5 // pred_fallthru
        _
      %p609 = scmp.lt.s32.totalorder %s32, 2
      // Predicated region
      $region85: #{tpu_custom_call.1} parent=5 // pred_check
        %p610 = pneg %p609
      $region86: #{tpu_custom_call.1} parent=5 // pred_check_branch
        %612 = sbr.rel (%p610) target = $region88
      $region87: #{tpu_custom_call.1} parent=5 // pred_region
        // Predicated region
        $region89: #{tpu_custom_call.1} parent=87 // pred_check
          %p613 = pneg %p52
        $region90: #{tpu_custom_call.1} parent=87 // pred_check_branch
          %615 = sbr.rel (%p613) target = $region92
        $region91: #{tpu_custom_call.1} parent=87 // pred_region
          %p616 = scmp.lt.s32.totalorder %s32, 1
          %s617 = scalar_select %p616, %s32, 1
          %s618 = smul.addr %s617, 4
          %s619 = scalar_lea.vmem %s0, %s618
        $region92: #{tpu_custom_call.1} parent=87 // pred_fallthru
          _
        // Predicated region
        $region93: #{tpu_custom_call.1} parent=87 // pred_check
          %p620 = pneg %p78
        $region94: #{tpu_custom_call.1} parent=87 // pred_check_branch
          %622 = sbr.rel (%p620) target = $region96
        $region95: #{tpu_custom_call.1} parent=87 // pred_region
          %p623 = scmp.lt.s32.totalorder %s32, 1
          %s624 = scalar_select %p623, %s32, 1
          %s625 = smul.addr %s624, 16
          %s626 = smul.addr %s625, 8
          %s627 = scalar_lea.vmem %s1, %s626
        $region96: #{tpu_custom_call.1} parent=87 // pred_fallthru
          _
        // Predicated region
        $region97: #{tpu_custom_call.1} parent=87 // pred_check
          %p628 = pneg %p104
        $region98: #{tpu_custom_call.1} parent=87 // pred_check_branch
          %630 = sbr.rel (%p628) target = $region100
        $region99: #{tpu_custom_call.1} parent=87 // pred_region
          %p631 = scmp.lt.s32.totalorder %s32, 1
          %s632 = scalar_select %p631, %s32, 1
          %s633 = smul.addr %s632, 4
          %s634 = scalar_lea.vmem %s2, %s633
        $region100: #{tpu_custom_call.1} parent=87 // pred_fallthru
          _
      $region88: #{tpu_custom_call.1} parent=5 // pred_fallthru
        _
      %p635 = scmp.le.s32.totalorder 1, %s32
      %p636 = scmp.lt.s32.totalorder %s32, 3
      %p637 = pnand %p635, %p636
      %p638 = pneg %p637
      // Predicated region
      $region101: #{tpu_custom_call.1} parent=5 // pred_check
        _
      $region102: #{tpu_custom_call.1} parent=5 // pred_check_branch
        %640 = sbr.rel (%p637) target = $region104
      $region103: #{tpu_custom_call.1} parent=5 // pred_region
        %s641 = ssub.s32 %s32, 1
        %p642 = scmp.lt.s32.totalorder %s37, 1
        %s643 = scalar_select %p642, %s37, 1
        %s644 = smul.addr %s643, 4
        %s645 = scalar_lea.vmem %s0, %s644
        %p646 = pneg %p58
        %p647 = pneg %p55
        %p648 = scmp.lt.s32.totalorder %s37, 1
        %s649 = scalar_select %p648, %s37, 1
        %s650 = smul.addr %s649, 16
        %s651 = smul.addr %s650, 8
        %s652 = scalar_lea.vmem %s1, %s651
        %p653 = pneg %p84
        %p654 = pneg %p81
        %p655 = scmp.lt.s32.totalorder %s37, 1
        %s656 = scalar_select %p655, %s37, 1
        %s657 = smul.addr %s656, 4
        %s658 = scalar_lea.vmem %s2, %s657
        %p659 = pneg %p110
        %p660 = pneg %p107
        %p661 = pneg %p131
        %p662 = pneg %p128
        %p663 = pneg %p152
        %p664 = pneg %p149
        %p665 = pneg %p173
        %p666 = pneg %p170
        %p667 = pneg %p194
        %p668 = pneg %p191
        %p669 = pneg %p215
        %p670 = pneg %p212
        %p671 = pneg %p236
        %p672 = pneg %p233
        %p673 = pneg %p257
        %p674 = pneg %p254
        %p675 = pneg %p278
        %p676 = pneg %p275
        %p677 = pneg %p299
        %p678 = pneg %p296
        %p679 = pneg %p320
        %p680 = pneg %p317
        %p681 = pneg %p341
        %p682 = pneg %p338
        %p683 = pneg %p362
        %p684 = pneg %p359
        %p685 = pneg %p383
        %p686 = pneg %p380
        %p687 = pneg %p404
        %p688 = pneg %p401
        %p689 = pneg %p425
        %p690 = pneg %p422
        %p691 = pneg %p446
        %p692 = pneg %p443
        %p693 = pneg %p467
        %p694 = pneg %p464
        %p695 = pneg %p488
        %p696 = pneg %p485
        %p697 = pneg %p514
        %p698 = pneg %p511
        %p699 = scmp.lt.s32.totalorder %s37, 1
        %s700 = scalar_select %p699, %s37, 1
        %s701 = smul.addr %s700, 4
        %s702 = scalar_lea.vmem %s21, %s701
        %p703 = pneg %p540
        %p704 = pneg %p537
        %s705 = sand.u32 %s527, 1
        %s706 = scalar_lea.sflag [#allocation3], %s705
        %s707 = sand.u32 %s527, 1
        %s708 = smul.addr %s707, 8
        %s709 = scalar_lea.vmem [#allocation2], %s708
        %p710 = scmp.lt.s32.totalorder %s37, 1
        %s711 = scalar_select %p710, %s37, 1
        %s712 = smul.addr %s711, 4
        %s713 = scalar_lea.vmem %s0, %s712
        %p714 = scmp.lt.s32.totalorder %s37, 1
        %s715 = scalar_select %p714, %s37, 1
        %s716 = smul.addr %s715, 16
        %s717 = smul.addr %s716, 8
        %s718 = scalar_lea.vmem %s1, %s717
        %p719 = scmp.lt.s32.totalorder %s37, 1
        %s720 = scalar_select %p719, %s37, 1
        %s721 = smul.addr %s720, 4
        %s722 = scalar_lea.vmem %s2, %s721
        %p723 = scmp.lt.s32.totalorder %s37, 1
        %s724 = scalar_select %p723, %s37, 1
        %s725 = smul.addr %s724, 4
        %s726 = scalar_lea.vmem %s21, %s725
        %v728 = vld [vmem:[%s713] sm:$0x7]
        %v729 = vld [vmem:[%s718] sm:$0xff]
        %v730 = vld [vmem:[%s718 + $0x8] sm:$0xff]
        %v731 = vld [vmem:[%s718 + $0x10] sm:$0xff]
        %v732 = vld [vmem:[%s718 + $0x18] sm:$0xff]
        %v733 = vld [vmem:[%s718 + $0x20] sm:$0xff]
        %v734 = vld [vmem:[%s718 + $0x28] sm:$0xff]
        %v735 = vld [vmem:[%s718 + $0x30] sm:$0xff]
        %v736 = vld [vmem:[%s718 + $0x38] sm:$0xff]
        %v737 = vld [vmem:[%s718 + $0x40] sm:$0xff]
        %v738 = vld [vmem:[%s718 + $0x48] sm:$0xff]
        %v739 = vld [vmem:[%s718 + $0x50] sm:$0xff]
        %v740 = vld [vmem:[%s718 + $0x58] sm:$0xff]
        %v741 = vld [vmem:[%s718 + $0x60] sm:$0xff]
        %v742 = vld [vmem:[%s718 + $0x68] sm:$0xff]
        %v743 = vld [vmem:[%s718 + $0x70] sm:$0xff]
        %v744 = vld [vmem:[%s718 + $0x78] sm:$0xff]
        %v745 = vld [vmem:[%s722] sm:$0xf]
        %v746 = vmul.f32 %v728, %v728
        %v748 = vrot.slane %v746, 1
        %v750 = vadd.f32 %v746, %v748
        %v751 = vrot.slane %v746, 2
        %v753 = vadd.f32 %v750, %v751
        %v754 = vlaneseq
        %v755 = vand.u32 %v754, 127
        %vm756 = vcmp.ge.s32.totalorder %v755, 48
        %758 = vset.pattern.permute.xlu0 0
        %759 = vperm.xlu0 %758, %v729
        %v760 = vpop.permute.xlu0 %759
        %763 = vset.pattern.permute.xlu0 0
        %764 = vperm.xlu0 %763, %v730
        %v765 = vpop.permute.xlu0 %764
        %768 = vset.pattern.permute.xlu0 0
        %769 = vperm.xlu0 %768, %v731
        %v770 = vpop.permute.xlu0 %769
        %773 = vset.pattern.permute.xlu0 0
        %774 = vperm.xlu0 %773, %v732
        %v775 = vpop.permute.xlu0 %774
        %778 = vset.pattern.permute.xlu0 0
        %779 = vperm.xlu0 %778, %v733
        %v780 = vpop.permute.xlu0 %779
        %783 = vset.pattern.permute.xlu0 0
        %784 = vperm.xlu0 %783, %v734
        %v785 = vpop.permute.xlu0 %784
        %788 = vset.pattern.permute.xlu0 0
        %789 = vperm.xlu0 %788, %v735
        %v790 = vpop.permute.xlu0 %789
        %793 = vset.pattern.permute.xlu0 0
        %794 = vperm.xlu0 %793, %v736
        %v795 = vpop.permute.xlu0 %794
        %798 = vset.pattern.permute.xlu0 0
        %799 = vperm.xlu0 %798, %v737
        %v800 = vpop.permute.xlu0 %799
        %803 = vset.pattern.permute.xlu0 0
        %804 = vperm.xlu0 %803, %v738
        %v805 = vpop.permute.xlu0 %804
        %808 = vset.pattern.permute.xlu0 0
        %809 = vperm.xlu0 %808, %v739
        %v810 = vpop.permute.xlu0 %809
        %813 = vset.pattern.permute.xlu0 0
        %814 = vperm.xlu0 %813, %v740
        %v815 = vpop.permute.xlu0 %814
        %818 = vset.pattern.permute.xlu0 0
        %819 = vperm.xlu0 %818, %v741
        %v820 = vpop.permute.xlu0 %819
        %823 = vset.pattern.permute.xlu0 0
        %824 = vperm.xlu0 %823, %v742
        %v825 = vpop.permute.xlu0 %824
        %828 = vset.pattern.permute.xlu0 0
        %829 = vperm.xlu0 %828, %v743
        %v830 = vpop.permute.xlu0 %829
        %833 = vset.pattern.permute.xlu0 0
        %834 = vperm.xlu0 %833, %v744
        %v835 = vpop.permute.xlu0 %834
        %v837 = vlaneseq
        %v838 = vshrl.u32 %v837, 7
        %v839 = vsub.s32 0, %v838
        %v840 = vrot.slane %v728, %v839
        %v841 = vmul.f32 %v760, %v840
        %v842 = vmul.f32 %v765, %v840
        %v843 = vmul.f32 %v770, %v840
        %v844 = vmul.f32 %v775, %v840
        %v845 = vmul.f32 %v780, %v840
        %v846 = vmul.f32 %v785, %v840
        %v847 = vmul.f32 %v790, %v840
        %v848 = vmul.f32 %v795, %v840
        %v849 = vmul.f32 %v800, %v840
        %v850 = vmul.f32 %v805, %v840
        %v851 = vmul.f32 %v810, %v840
        %v852 = vmul.f32 %v815, %v840
        %v853 = vmul.f32 %v820, %v840
        %v854 = vmul.f32 %v825, %v840
        %v855 = vmul.f32 %v830, %v840
        %v856 = vmul.f32 %v835, %v840
        %857 = vset.pattern.permute.xlu0 1
        %858 = vperm.xlu0 %857, %v729
        %v859 = vpop.permute.xlu0 %858
        %861 = vset.pattern.permute.xlu0 1
        %862 = vperm.xlu0 %861, %v730
        %v863 = vpop.permute.xlu0 %862
        %865 = vset.pattern.permute.xlu0 1
        %866 = vperm.xlu0 %865, %v731
        %v867 = vpop.permute.xlu0 %866
        %869 = vset.pattern.permute.xlu0 1
        %870 = vperm.xlu0 %869, %v732
        %v871 = vpop.permute.xlu0 %870
        %873 = vset.pattern.permute.xlu0 1
        %874 = vperm.xlu0 %873, %v733
        %v875 = vpop.permute.xlu0 %874
        %877 = vset.pattern.permute.xlu0 1
        %878 = vperm.xlu0 %877, %v734
        %v879 = vpop.permute.xlu0 %878
        %881 = vset.pattern.permute.xlu0 1
        %882 = vperm.xlu0 %881, %v735
        %v883 = vpop.permute.xlu0 %882
        %885 = vset.pattern.permute.xlu0 1
        %886 = vperm.xlu0 %885, %v736
        %v887 = vpop.permute.xlu0 %886
        %889 = vset.pattern.permute.xlu0 1
        %890 = vperm.xlu0 %889, %v737
        %v891 = vpop.permute.xlu0 %890
        %893 = vset.pattern.permute.xlu0 1
        %894 = vperm.xlu0 %893, %v738
        %v895 = vpop.permute.xlu0 %894
        %897 = vset.pattern.permute.xlu0 1
        %898 = vperm.xlu0 %897, %v739
        %v899 = vpop.permute.xlu0 %898
        %901 = vset.pattern.permute.xlu0 1
        %902 = vperm.xlu0 %901, %v740
        %v903 = vpop.permute.xlu0 %902
        %905 = vset.pattern.permute.xlu0 1
        %906 = vperm.xlu0 %905, %v741
        %v907 = vpop.permute.xlu0 %906
        %909 = vset.pattern.permute.xlu0 1
        %910 = vperm.xlu0 %909, %v742
        %v911 = vpop.permute.xlu0 %910
        %913 = vset.pattern.permute.xlu0 1
        %914 = vperm.xlu0 %913, %v743
        %v915 = vpop.permute.xlu0 %914
        %917 = vset.pattern.permute.xlu0 1
        %918 = vperm.xlu0 %917, %v744
        %v919 = vpop.permute.xlu0 %918
        %v921 = vlaneseq
        %v922 = vshrl.u32 %v921, 7
        %v923 = vsub.s32 1, %v922
        %v924 = vrot.slane %v728, %v923
        %v925 = vmul.f32 %v859, %v924
        %v926 = vmul.f32 %v863, %v924
        %v927 = vmul.f32 %v867, %v924
        %v928 = vmul.f32 %v871, %v924
        %v929 = vmul.f32 %v875, %v924
        %v930 = vmul.f32 %v879, %v924
        %v931 = vmul.f32 %v883, %v924
        %v932 = vmul.f32 %v887, %v924
        %v933 = vmul.f32 %v891, %v924
        %v934 = vmul.f32 %v895, %v924
        %v935 = vmul.f32 %v899, %v924
        %v936 = vmul.f32 %v903, %v924
        %v937 = vmul.f32 %v907, %v924
        %v938 = vmul.f32 %v911, %v924
        %v939 = vmul.f32 %v915, %v924
        %v940 = vmul.f32 %v919, %v924
        %v941 = vadd.f32 %v841, %v925
        %v942 = vadd.f32 %v842, %v926
        %v943 = vadd.f32 %v843, %v927
        %v944 = vadd.f32 %v844, %v928
        %v945 = vadd.f32 %v845, %v929
        %v946 = vadd.f32 %v846, %v930
        %v947 = vadd.f32 %v847, %v931
        %v948 = vadd.f32 %v848, %v932
        %v949 = vadd.f32 %v849, %v933
        %v950 = vadd.f32 %v850, %v934
        %v951 = vadd.f32 %v851, %v935
        %v952 = vadd.f32 %v852, %v936
        %v953 = vadd.f32 %v853, %v937
        %v954 = vadd.f32 %v854, %v938
        %v955 = vadd.f32 %v855, %v939
        %v956 = vadd.f32 %v856, %v940
        %957 = vset.pattern.permute.xlu0 2
        %958 = vperm.xlu0 %957, %v729
        %v959 = vpop.permute.xlu0 %958
        %961 = vset.pattern.permute.xlu0 2
        %962 = vperm.xlu0 %961, %v730
        %v963 = vpop.permute.xlu0 %962
        %965 = vset.pattern.permute.xlu0 2
        %966 = vperm.xlu0 %965, %v731
        %v967 = vpop.permute.xlu0 %966
        %969 = vset.pattern.permute.xlu0 2
        %970 = vperm.xlu0 %969, %v732
        %v971 = vpop.permute.xlu0 %970
        %973 = vset.pattern.permute.xlu0 2
        %974 = vperm.xlu0 %973, %v733
        %v975 = vpop.permute.xlu0 %974
        %977 = vset.pattern.permute.xlu0 2
        %978 = vperm.xlu0 %977, %v734
        %v979 = vpop.permute.xlu0 %978
        %981 = vset.pattern.permute.xlu0 2
        %982 = vperm.xlu0 %981, %v735
        %v983 = vpop.permute.xlu0 %982
        %985 = vset.pattern.permute.xlu0 2
        %986 = vperm.xlu0 %985, %v736
        %v987 = vpop.permute.xlu0 %986
        %989 = vset.pattern.permute.xlu0 2
        %990 = vperm.xlu0 %989, %v737
        %v991 = vpop.permute.xlu0 %990
        %993 = vset.pattern.permute.xlu0 2
        %994 = vperm.xlu0 %993, %v738
        %v995 = vpop.permute.xlu0 %994
        %997 = vset.pattern.permute.xlu0 2
        %998 = vperm.xlu0 %997, %v739
        %v999 = vpop.permute.xlu0 %998
        %1001 = vset.pattern.permute.xlu0 2
        %1002 = vperm.xlu0 %1001, %v740
        %v1003 = vpop.permute.xlu0 %1002
        %1005 = vset.pattern.permute.xlu0 2
        %1006 = vperm.xlu0 %1005, %v741
        %v1007 = vpop.permute.xlu0 %1006
        %1009 = vset.pattern.permute.xlu0 2
        %1010 = vperm.xlu0 %1009, %v742
        %v1011 = vpop.permute.xlu0 %1010
        %1013 = vset.pattern.permute.xlu0 2
        %1014 = vperm.xlu0 %1013, %v743
        %v1015 = vpop.permute.xlu0 %1014
        %1017 = vset.pattern.permute.xlu0 2
        %1018 = vperm.xlu0 %1017, %v744
        %v1019 = vpop.permute.xlu0 %1018
        %v1021 = vlaneseq
        %v1022 = vshrl.u32 %v1021, 7
        %v1023 = vsub.s32 2, %v1022
        %v1024 = vrot.slane %v728, %v1023
        %v1025 = vmul.f32 %v959, %v1024
        %v1026 = vmul.f32 %v963, %v1024
        %v1027 = vmul.f32 %v967, %v1024
        %v1028 = vmul.f32 %v971, %v1024
        %v1029 = vmul.f32 %v975, %v1024
        %v1030 = vmul.f32 %v979, %v1024
        %v1031 = vmul.f32 %v983, %v1024
        %v1032 = vmul.f32 %v987, %v1024
        %v1033 = vmul.f32 %v991, %v1024
        %v1034 = vmul.f32 %v995, %v1024
        %v1035 = vmul.f32 %v999, %v1024
        %v1036 = vmul.f32 %v1003, %v1024
        %v1037 = vmul.f32 %v1007, %v1024
        %v1038 = vmul.f32 %v1011, %v1024
        %v1039 = vmul.f32 %v1015, %v1024
        %v1040 = vmul.f32 %v1019, %v1024
        %v1041 = vadd.f32 %v941, %v1025
        %v1042 = vadd.f32 %v942, %v1026
        %v1043 = vadd.f32 %v943, %v1027
        %v1044 = vadd.f32 %v944, %v1028
        %v1045 = vadd.f32 %v945, %v1029
        %v1046 = vadd.f32 %v946, %v1030
        %v1047 = vadd.f32 %v947, %v1031
        %v1048 = vadd.f32 %v948, %v1032
        %v1049 = vadd.f32 %v949, %v1033
        %v1050 = vadd.f32 %v950, %v1034
        %v1051 = vadd.f32 %v951, %v1035
        %v1052 = vadd.f32 %v952, %v1036
        %v1053 = vadd.f32 %v953, %v1037
        %v1054 = vadd.f32 %v954, %v1038
        %v1055 = vadd.f32 %v955, %v1039
        %v1056 = vadd.f32 %v956, %v1040
        %v1057 = vmul.f32 %v1041, 2.0
        %v1058 = vmul.f32 %v1042, 2.0
        %v1059 = vmul.f32 %v1043, 2.0
        %v1060 = vmul.f32 %v1044, 2.0
        %v1061 = vmul.f32 %v1045, 2.0
        %v1062 = vmul.f32 %v1046, 2.0
        %v1063 = vmul.f32 %v1047, 2.0
        %v1064 = vmul.f32 %v1048, 2.0
        %v1065 = vmul.f32 %v1049, 2.0
        %v1066 = vmul.f32 %v1050, 2.0
        %v1067 = vmul.f32 %v1051, 2.0
        %v1068 = vmul.f32 %v1052, 2.0
        %v1069 = vmul.f32 %v1053, 2.0
        %v1070 = vmul.f32 %v1054, 2.0
        %v1071 = vmul.f32 %v1055, 2.0
        %v1072 = vmul.f32 %v1056, 2.0
        %v1073 = vlaneseq
        %v1074 = vshrl.u32 %v1073, 7
        %v1075 = vsub.s32 0, %v1074
        %v1076 = vrot.slane %v753, %v1075
        %v1077 = vsub.f32 %v1076, %v1057
        %v1078 = vsub.f32 %v1076, %v1058
        %v1079 = vsub.f32 %v1076, %v1059
        %v1080 = vsub.f32 %v1076, %v1060
        %v1081 = vsub.f32 %v1076, %v1061
        %v1082 = vsub.f32 %v1076, %v1062
        %v1083 = vsub.f32 %v1076, %v1063
        %v1084 = vsub.f32 %v1076, %v1064
        %v1085 = vsub.f32 %v1076, %v1065
        %v1086 = vsub.f32 %v1076, %v1066
        %v1087 = vsub.f32 %v1076, %v1067
        %v1088 = vsub.f32 %v1076, %v1068
        %v1089 = vsub.f32 %v1076, %v1069
        %v1090 = vsub.f32 %v1076, %v1070
        %v1091 = vsub.f32 %v1076, %v1071
        %v1092 = vsub.f32 %v1076, %v1072
        %v1093 = vlaneseq
        %v1094 = vshrl.u32 %v1093, 7
        %v1095 = vadd.s32 %v1094, 8
        %v1096 = vadd.s32 %v1094, 16
        %v1097 = vadd.s32 %v1094, 24
        %v1098 = vadd.s32 %v1094, 32
        %v1099 = vadd.s32 %v1094, 40
        %v1100 = vadd.s32 %v1094, 48
        %v1101 = vadd.s32 %v1094, 56
        %v1102 = vadd.s32 %v1094, 64
        %v1103 = vadd.s32 %v1094, 72
        %v1104 = vadd.s32 %v1094, 80
        %v1105 = vadd.s32 %v1094, 88
        %v1106 = vadd.s32 %v1094, 96
        %v1107 = vadd.s32 %v1094, 104
        %v1108 = vadd.s32 %v1094, 112
        %v1109 = vadd.s32 %v1094, 120
        %vm1110 = vcmp.eq.s32.totalorder %v755, %v1094
        %vm1111 = vcmp.eq.s32.totalorder %v755, %v1095
        %vm1112 = vcmp.eq.s32.totalorder %v755, %v1096
        %vm1113 = vcmp.eq.s32.totalorder %v755, %v1097
        %vm1114 = vcmp.eq.s32.totalorder %v755, %v1098
        %vm1115 = vcmp.eq.s32.totalorder %v755, %v1099
        %vm1116 = vcmp.eq.s32.totalorder %v755, %v1100
        %vm1117 = vcmp.eq.s32.totalorder %v755, %v1101
        %vm1118 = vcmp.eq.s32.totalorder %v755, %v1102
        %vm1119 = vcmp.eq.s32.totalorder %v755, %v1103
        %vm1120 = vcmp.eq.s32.totalorder %v755, %v1104
        %vm1121 = vcmp.eq.s32.totalorder %v755, %v1105
        %vm1122 = vcmp.eq.s32.totalorder %v755, %v1106
        %vm1123 = vcmp.eq.s32.totalorder %v755, %v1107
        %vm1124 = vcmp.eq.s32.totalorder %v755, %v1108
        %vm1125 = vcmp.eq.s32.totalorder %v755, %v1109
        %v1126 = vsel %vm756, 1, 0
        %vm1127 = vcmp.eq.s32.totalorder %v1126, 1
        %vm1128 = vmor %vm1110, %vm1127
        %vm1129 = vmor %vm1111, %vm1127
        %vm1130 = vmor %vm1112, %vm1127
        %vm1131 = vmor %vm1113, %vm1127
        %vm1132 = vmor %vm1114, %vm1127
        %vm1133 = vmor %vm1115, %vm1127
        %vm1134 = vmor %vm1116, %vm1127
        %vm1135 = vmor %vm1117, %vm1127
        %vm1136 = vmor %vm1118, %vm1127
        %vm1137 = vmor %vm1119, %vm1127
        %vm1138 = vmor %vm1120, %vm1127
        %vm1139 = vmor %vm1121, %vm1127
        %vm1140 = vmor %vm1122, %vm1127
        %vm1141 = vmor %vm1123, %vm1127
        %vm1142 = vmor %vm1124, %vm1127
        %vm1143 = vmor %vm1125, %vm1127
        %v1144 = vsel %vm1128, 1e+30, %v1077
        %v1145 = vsel %vm1129, 1e+30, %v1078
        %v1146 = vsel %vm1130, 1e+30, %v1079
        %v1147 = vsel %vm1131, 1e+30, %v1080
        %v1148 = vsel %vm1132, 1e+30, %v1081
        %v1149 = vsel %vm1133, 1e+30, %v1082
        %v1150 = vsel %vm1134, 1e+30, %v1083
        %v1151 = vsel %vm1135, 1e+30, %v1084
        %v1152 = vsel %vm1136, 1e+30, %v1085
        %v1153 = vsel %vm1137, 1e+30, %v1086
        %v1154 = vsel %vm1138, 1e+30, %v1087
        %v1155 = vsel %vm1139, 1e+30, %v1088
        %v1156 = vsel %vm1140, 1e+30, %v1089
        %v1157 = vsel %vm1141, 1e+30, %v1090
        %v1158 = vsel %vm1142, 1e+30, %v1091
        %v1159 = vsel %vm1143, 1e+30, %v1092
        %1160 = vmin.xlane.f32.xlu0 %v1144
        %v1161 = vpop.xlane.xlu0 %1160
        %1162 = vmin.xlane.f32.xlu0 %v1145
        %v1163 = vpop.xlane.xlu0 %1162
        %1164 = vmin.xlane.f32.xlu0 %v1146
        %v1165 = vpop.xlane.xlu0 %1164
        %1166 = vmin.xlane.f32.xlu0 %v1147
        %v1167 = vpop.xlane.xlu0 %1166
        %1168 = vmin.xlane.f32.xlu0 %v1148
        %v1169 = vpop.xlane.xlu0 %1168
        %1170 = vmin.xlane.f32.xlu0 %v1149
        %v1171 = vpop.xlane.xlu0 %1170
        %1172 = vmin.xlane.f32.xlu0 %v1150
        %v1173 = vpop.xlane.xlu0 %1172
        %1174 = vmin.xlane.f32.xlu0 %v1151
        %v1175 = vpop.xlane.xlu0 %1174
        %1176 = vmin.xlane.f32.xlu0 %v1152
        %v1177 = vpop.xlane.xlu0 %1176
        %1178 = vmin.xlane.f32.xlu0 %v1153
        %v1179 = vpop.xlane.xlu0 %1178
        %1180 = vmin.xlane.f32.xlu0 %v1154
        %v1181 = vpop.xlane.xlu0 %1180
        %1182 = vmin.xlane.f32.xlu0 %v1155
        %v1183 = vpop.xlane.xlu0 %1182
        %1184 = vmin.xlane.f32.xlu0 %v1156
        %v1185 = vpop.xlane.xlu0 %1184
        %1186 = vmin.xlane.f32.xlu0 %v1157
        %v1187 = vpop.xlane.xlu0 %1186
        %1188 = vmin.xlane.f32.xlu0 %v1158
        %v1189 = vpop.xlane.xlu0 %1188
        %1190 = vmin.xlane.f32.xlu0 %v1159
        %v1191 = vpop.xlane.xlu0 %1190
        %vm1192 = vcmp.le.f32.partialorder %v1144, %v1161
        %vm1193 = vcmp.le.f32.partialorder %v1145, %v1163
        %vm1194 = vcmp.le.f32.partialorder %v1146, %v1165
        %vm1195 = vcmp.le.f32.partialorder %v1147, %v1167
        %vm1196 = vcmp.le.f32.partialorder %v1148, %v1169
        %vm1197 = vcmp.le.f32.partialorder %v1149, %v1171
        %vm1198 = vcmp.le.f32.partialorder %v1150, %v1173
        %vm1199 = vcmp.le.f32.partialorder %v1151, %v1175
        %vm1200 = vcmp.le.f32.partialorder %v1152, %v1177
        %vm1201 = vcmp.le.f32.partialorder %v1153, %v1179
        %vm1202 = vcmp.le.f32.partialorder %v1154, %v1181
        %vm1203 = vcmp.le.f32.partialorder %v1155, %v1183
        %vm1204 = vcmp.le.f32.partialorder %v1156, %v1185
        %vm1205 = vcmp.le.f32.partialorder %v1157, %v1187
        %vm1206 = vcmp.le.f32.partialorder %v1158, %v1189
        %vm1207 = vcmp.le.f32.partialorder %v1159, %v1191
        %vm1208 = vcmp.lt.f32.partialorder %v1161, 5e+29
        %vm1209 = vcmp.lt.f32.partialorder %v1163, 5e+29
        %vm1210 = vcmp.lt.f32.partialorder %v1165, 5e+29
        %vm1211 = vcmp.lt.f32.partialorder %v1167, 5e+29
        %vm1212 = vcmp.lt.f32.partialorder %v1169, 5e+29
        %vm1213 = vcmp.lt.f32.partialorder %v1171, 5e+29
        %vm1214 = vcmp.lt.f32.partialorder %v1173, 5e+29
        %vm1215 = vcmp.lt.f32.partialorder %v1175, 5e+29
        %vm1216 = vcmp.lt.f32.partialorder %v1177, 5e+29
        %vm1217 = vcmp.lt.f32.partialorder %v1179, 5e+29
        %vm1218 = vcmp.lt.f32.partialorder %v1181, 5e+29
        %vm1219 = vcmp.lt.f32.partialorder %v1183, 5e+29
        %vm1220 = vcmp.lt.f32.partialorder %v1185, 5e+29
        %vm1221 = vcmp.lt.f32.partialorder %v1187, 5e+29
        %vm1222 = vcmp.lt.f32.partialorder %v1189, 5e+29
        %vm1223 = vcmp.lt.f32.partialorder %v1191, 5e+29
        %v1224 = vsel %vm1208, 1, 0
        %v1225 = vsel %vm1209, 1, 0
        %v1226 = vsel %vm1210, 1, 0
        %v1227 = vsel %vm1211, 1, 0
        %v1228 = vsel %vm1212, 1, 0
        %v1229 = vsel %vm1213, 1, 0
        %v1230 = vsel %vm1214, 1, 0
        %v1231 = vsel %vm1215, 1, 0
        %v1232 = vsel %vm1216, 1, 0
        %v1233 = vsel %vm1217, 1, 0
        %v1234 = vsel %vm1218, 1, 0
        %v1235 = vsel %vm1219, 1, 0
        %v1236 = vsel %vm1220, 1, 0
        %v1237 = vsel %vm1221, 1, 0
        %v1238 = vsel %vm1222, 1, 0
        %v1239 = vsel %vm1223, 1, 0
        %vm1240 = vcmp.eq.s32.totalorder %v1224, 1
        %vm1241 = vcmp.eq.s32.totalorder %v1225, 1
        %vm1242 = vcmp.eq.s32.totalorder %v1226, 1
        %vm1243 = vcmp.eq.s32.totalorder %v1227, 1
        %vm1244 = vcmp.eq.s32.totalorder %v1228, 1
        %vm1245 = vcmp.eq.s32.totalorder %v1229, 1
        %vm1246 = vcmp.eq.s32.totalorder %v1230, 1
        %vm1247 = vcmp.eq.s32.totalorder %v1231, 1
        %vm1248 = vcmp.eq.s32.totalorder %v1232, 1
        %vm1249 = vcmp.eq.s32.totalorder %v1233, 1
        %vm1250 = vcmp.eq.s32.totalorder %v1234, 1
        %vm1251 = vcmp.eq.s32.totalorder %v1235, 1
        %vm1252 = vcmp.eq.s32.totalorder %v1236, 1
        %vm1253 = vcmp.eq.s32.totalorder %v1237, 1
        %vm1254 = vcmp.eq.s32.totalorder %v1238, 1
        %vm1255 = vcmp.eq.s32.totalorder %v1239, 1
        %vm1256 = vmand %vm1192, %vm1240
        %vm1257 = vmand %vm1193, %vm1241
        %vm1258 = vmand %vm1194, %vm1242
        %vm1259 = vmand %vm1195, %vm1243
        %vm1260 = vmand %vm1196, %vm1244
        %vm1261 = vmand %vm1197, %vm1245
        %vm1262 = vmand %vm1198, %vm1246
        %vm1263 = vmand %vm1199, %vm1247
        %vm1264 = vmand %vm1200, %vm1248
        %vm1265 = vmand %vm1201, %vm1249
        %vm1266 = vmand %vm1202, %vm1250
        %vm1267 = vmand %vm1203, %vm1251
        %vm1268 = vmand %vm1204, %vm1252
        %vm1269 = vmand %vm1205, %vm1253
        %vm1270 = vmand %vm1206, %vm1254
        %vm1271 = vmand %vm1207, %vm1255
        %v1272 = vsel %vm1256, 1, 0
        %v1273 = vsel %vm1257, 1, 0
        %v1274 = vsel %vm1258, 1, 0
        %v1275 = vsel %vm1259, 1, 0
        %v1276 = vsel %vm1260, 1, 0
        %v1277 = vsel %vm1261, 1, 0
        %v1278 = vsel %vm1262, 1, 0
        %v1279 = vsel %vm1263, 1, 0
        %v1280 = vsel %vm1264, 1, 0
        %v1281 = vsel %vm1265, 1, 0
        %v1282 = vsel %vm1266, 1, 0
        %v1283 = vsel %vm1267, 1, 0
        %v1284 = vsel %vm1268, 1, 0
        %v1285 = vsel %vm1269, 1, 0
        %v1286 = vsel %vm1270, 1, 0
        %v1287 = vsel %vm1271, 1, 0
        %v1288 = vcvt.s32.f32 %v1272
        %v1289 = vcvt.s32.f32 %v1273
        %v1290 = vcvt.s32.f32 %v1274
        %v1291 = vcvt.s32.f32 %v1275
        %v1292 = vcvt.s32.f32 %v1276
        %v1293 = vcvt.s32.f32 %v1277
        %v1294 = vcvt.s32.f32 %v1278
        %v1295 = vcvt.s32.f32 %v1279
        %v1296 = vcvt.s32.f32 %v1280
        %v1297 = vcvt.s32.f32 %v1281
        %v1298 = vcvt.s32.f32 %v1282
        %v1299 = vcvt.s32.f32 %v1283
        %v1300 = vcvt.s32.f32 %v1284
        %v1301 = vcvt.s32.f32 %v1285
        %v1302 = vcvt.s32.f32 %v1286
        %v1303 = vcvt.s32.f32 %v1287
        %v1304 = vadd.f32 %v1288, 0.0
        %v1305 = vadd.f32 %v1289, 0.0
        %v1306 = vadd.f32 %v1290, 0.0
        %v1307 = vadd.f32 %v1291, 0.0
        %v1308 = vadd.f32 %v1292, 0.0
        %v1309 = vadd.f32 %v1293, 0.0
        %v1310 = vadd.f32 %v1294, 0.0
        %v1311 = vadd.f32 %v1295, 0.0
        %v1312 = vadd.f32 %v1296, 0.0
        %v1313 = vadd.f32 %v1297, 0.0
        %v1314 = vadd.f32 %v1298, 0.0
        %v1315 = vadd.f32 %v1299, 0.0
        %v1316 = vadd.f32 %v1300, 0.0
        %v1317 = vadd.f32 %v1301, 0.0
        %v1318 = vadd.f32 %v1302, 0.0
        %v1319 = vadd.f32 %v1303, 0.0
        %v1320 = vsel %vm1256, 1e+30, %v1144
        %v1321 = vsel %vm1257, 1e+30, %v1145
        %v1322 = vsel %vm1258, 1e+30, %v1146
        %v1323 = vsel %vm1259, 1e+30, %v1147
        %v1324 = vsel %vm1260, 1e+30, %v1148
        %v1325 = vsel %vm1261, 1e+30, %v1149
        %v1326 = vsel %vm1262, 1e+30, %v1150
        %v1327 = vsel %vm1263, 1e+30, %v1151
        %v1328 = vsel %vm1264, 1e+30, %v1152
        %v1329 = vsel %vm1265, 1e+30, %v1153
        %v1330 = vsel %vm1266, 1e+30, %v1154
        %v1331 = vsel %vm1267, 1e+30, %v1155
        %v1332 = vsel %vm1268, 1e+30, %v1156
        %v1333 = vsel %vm1269, 1e+30, %v1157
        %v1334 = vsel %vm1270, 1e+30, %v1158
        %v1335 = vsel %vm1271, 1e+30, %v1159
        %1336 = vmin.xlane.f32.xlu0 %v1320
        %v1337 = vpop.xlane.xlu0 %1336
        %1338 = vmin.xlane.f32.xlu0 %v1321
        %v1339 = vpop.xlane.xlu0 %1338
        %1340 = vmin.xlane.f32.xlu0 %v1322
        %v1341 = vpop.xlane.xlu0 %1340
        %1342 = vmin.xlane.f32.xlu0 %v1323
        %v1343 = vpop.xlane.xlu0 %1342
        %1344 = vmin.xlane.f32.xlu0 %v1324
        %v1345 = vpop.xlane.xlu0 %1344
        %1346 = vmin.xlane.f32.xlu0 %v1325
        %v1347 = vpop.xlane.xlu0 %1346
        %1348 = vmin.xlane.f32.xlu0 %v1326
        %v1349 = vpop.xlane.xlu0 %1348
        %1350 = vmin.xlane.f32.xlu0 %v1327
        %v1351 = vpop.xlane.xlu0 %1350
        %1352 = vmin.xlane.f32.xlu0 %v1328
        %v1353 = vpop.xlane.xlu0 %1352
        %1354 = vmin.xlane.f32.xlu0 %v1329
        %v1355 = vpop.xlane.xlu0 %1354
        %1356 = vmin.xlane.f32.xlu0 %v1330
        %v1357 = vpop.xlane.xlu0 %1356
        %1358 = vmin.xlane.f32.xlu0 %v1331
        %v1359 = vpop.xlane.xlu0 %1358
        %1360 = vmin.xlane.f32.xlu0 %v1332
        %v1361 = vpop.xlane.xlu0 %1360
        %1362 = vmin.xlane.f32.xlu0 %v1333
        %v1363 = vpop.xlane.xlu0 %1362
        %1364 = vmin.xlane.f32.xlu0 %v1334
        %v1365 = vpop.xlane.xlu0 %1364
        %1366 = vmin.xlane.f32.xlu0 %v1335
        %v1367 = vpop.xlane.xlu0 %1366
        %vm1368 = vcmp.le.f32.partialorder %v1320, %v1337
        %vm1369 = vcmp.le.f32.partialorder %v1321, %v1339
        %vm1370 = vcmp.le.f32.partialorder %v1322, %v1341
        %vm1371 = vcmp.le.f32.partialorder %v1323, %v1343
        %vm1372 = vcmp.le.f32.partialorder %v1324, %v1345
        %vm1373 = vcmp.le.f32.partialorder %v1325, %v1347
        %vm1374 = vcmp.le.f32.partialorder %v1326, %v1349
        %vm1375 = vcmp.le.f32.partialorder %v1327, %v1351
        %vm1376 = vcmp.le.f32.partialorder %v1328, %v1353
        %vm1377 = vcmp.le.f32.partialorder %v1329, %v1355
        %vm1378 = vcmp.le.f32.partialorder %v1330, %v1357
        %vm1379 = vcmp.le.f32.partialorder %v1331, %v1359
        %vm1380 = vcmp.le.f32.partialorder %v1332, %v1361
        %vm1381 = vcmp.le.f32.partialorder %v1333, %v1363
        %vm1382 = vcmp.le.f32.partialorder %v1334, %v1365
        %vm1383 = vcmp.le.f32.partialorder %v1335, %v1367
        %vm1384 = vcmp.lt.f32.partialorder %v1337, 5e+29
        %vm1385 = vcmp.lt.f32.partialorder %v1339, 5e+29
        %vm1386 = vcmp.lt.f32.partialorder %v1341, 5e+29
        %vm1387 = vcmp.lt.f32.partialorder %v1343, 5e+29
        %vm1388 = vcmp.lt.f32.partialorder %v1345, 5e+29
        %vm1389 = vcmp.lt.f32.partialorder %v1347, 5e+29
        %vm1390 = vcmp.lt.f32.partialorder %v1349, 5e+29
        %vm1391 = vcmp.lt.f32.partialorder %v1351, 5e+29
        %vm1392 = vcmp.lt.f32.partialorder %v1353, 5e+29
        %vm1393 = vcmp.lt.f32.partialorder %v1355, 5e+29
        %vm1394 = vcmp.lt.f32.partialorder %v1357, 5e+29
        %vm1395 = vcmp.lt.f32.partialorder %v1359, 5e+29
        %vm1396 = vcmp.lt.f32.partialorder %v1361, 5e+29
        %vm1397 = vcmp.lt.f32.partialorder %v1363, 5e+29
        %vm1398 = vcmp.lt.f32.partialorder %v1365, 5e+29
        %vm1399 = vcmp.lt.f32.partialorder %v1367, 5e+29
        %v1400 = vsel %vm1384, 1, 0
        %v1401 = vsel %vm1385, 1, 0
        %v1402 = vsel %vm1386, 1, 0
        %v1403 = vsel %vm1387, 1, 0
        %v1404 = vsel %vm1388, 1, 0
        %v1405 = vsel %vm1389, 1, 0
        %v1406 = vsel %vm1390, 1, 0
        %v1407 = vsel %vm1391, 1, 0
        %v1408 = vsel %vm1392, 1, 0
        %v1409 = vsel %vm1393, 1, 0
        %v1410 = vsel %vm1394, 1, 0
        %v1411 = vsel %vm1395, 1, 0
        %v1412 = vsel %vm1396, 1, 0
        %v1413 = vsel %vm1397, 1, 0
        %v1414 = vsel %vm1398, 1, 0
        %v1415 = vsel %vm1399, 1, 0
        %vm1416 = vcmp.eq.s32.totalorder %v1400, 1
        %vm1417 = vcmp.eq.s32.totalorder %v1401, 1
        %vm1418 = vcmp.eq.s32.totalorder %v1402, 1
        %vm1419 = vcmp.eq.s32.totalorder %v1403, 1
        %vm1420 = vcmp.eq.s32.totalorder %v1404, 1
        %vm1421 = vcmp.eq.s32.totalorder %v1405, 1
        %vm1422 = vcmp.eq.s32.totalorder %v1406, 1
        %vm1423 = vcmp.eq.s32.totalorder %v1407, 1
        %vm1424 = vcmp.eq.s32.totalorder %v1408, 1
        %vm1425 = vcmp.eq.s32.totalorder %v1409, 1
        %vm1426 = vcmp.eq.s32.totalorder %v1410, 1
        %vm1427 = vcmp.eq.s32.totalorder %v1411, 1
        %vm1428 = vcmp.eq.s32.totalorder %v1412, 1
        %vm1429 = vcmp.eq.s32.totalorder %v1413, 1
        %vm1430 = vcmp.eq.s32.totalorder %v1414, 1
        %vm1431 = vcmp.eq.s32.totalorder %v1415, 1
        %vm1432 = vmand %vm1368, %vm1416
        %vm1433 = vmand %vm1369, %vm1417
        %vm1434 = vmand %vm1370, %vm1418
        %vm1435 = vmand %vm1371, %vm1419
        %vm1436 = vmand %vm1372, %vm1420
        %vm1437 = vmand %vm1373, %vm1421
        %vm1438 = vmand %vm1374, %vm1422
        %vm1439 = vmand %vm1375, %vm1423
        %vm1440 = vmand %vm1376, %vm1424
        %vm1441 = vmand %vm1377, %vm1425
        %vm1442 = vmand %vm1378, %vm1426
        %vm1443 = vmand %vm1379, %vm1427
        %vm1444 = vmand %vm1380, %vm1428
        %vm1445 = vmand %vm1381, %vm1429
        %vm1446 = vmand %vm1382, %vm1430
        %vm1447 = vmand %vm1383, %vm1431
        %v1448 = vsel %vm1432, 1, 0
        %v1449 = vsel %vm1433, 1, 0
        %v1450 = vsel %vm1434, 1, 0
        %v1451 = vsel %vm1435, 1, 0
        %v1452 = vsel %vm1436, 1, 0
        %v1453 = vsel %vm1437, 1, 0
        %v1454 = vsel %vm1438, 1, 0
        %v1455 = vsel %vm1439, 1, 0
        %v1456 = vsel %vm1440, 1, 0
        %v1457 = vsel %vm1441, 1, 0
        %v1458 = vsel %vm1442, 1, 0
        %v1459 = vsel %vm1443, 1, 0
        %v1460 = vsel %vm1444, 1, 0
        %v1461 = vsel %vm1445, 1, 0
        %v1462 = vsel %vm1446, 1, 0
        %v1463 = vsel %vm1447, 1, 0
        %v1464 = vcvt.s32.f32 %v1448
        %v1465 = vcvt.s32.f32 %v1449
        %v1466 = vcvt.s32.f32 %v1450
        %v1467 = vcvt.s32.f32 %v1451
        %v1468 = vcvt.s32.f32 %v1452
        %v1469 = vcvt.s32.f32 %v1453
        %v1470 = vcvt.s32.f32 %v1454
        %v1471 = vcvt.s32.f32 %v1455
        %v1472 = vcvt.s32.f32 %v1456
        %v1473 = vcvt.s32.f32 %v1457
        %v1474 = vcvt.s32.f32 %v1458
        %v1475 = vcvt.s32.f32 %v1459
        %v1476 = vcvt.s32.f32 %v1460
        %v1477 = vcvt.s32.f32 %v1461
        %v1478 = vcvt.s32.f32 %v1462
        %v1479 = vcvt.s32.f32 %v1463
        %v1480 = vadd.f32 %v1304, %v1464
        %v1481 = vadd.f32 %v1305, %v1465
        %v1482 = vadd.f32 %v1306, %v1466
        %v1483 = vadd.f32 %v1307, %v1467
        %v1484 = vadd.f32 %v1308, %v1468
        %v1485 = vadd.f32 %v1309, %v1469
        %v1486 = vadd.f32 %v1310, %v1470
        %v1487 = vadd.f32 %v1311, %v1471
        %v1488 = vadd.f32 %v1312, %v1472
        %v1489 = vadd.f32 %v1313, %v1473
        %v1490 = vadd.f32 %v1314, %v1474
        %v1491 = vadd.f32 %v1315, %v1475
        %v1492 = vadd.f32 %v1316, %v1476
        %v1493 = vadd.f32 %v1317, %v1477
        %v1494 = vadd.f32 %v1318, %v1478
        %v1495 = vadd.f32 %v1319, %v1479
        %v1496 = vsel %vm1432, 1e+30, %v1320
        %v1497 = vsel %vm1433, 1e+30, %v1321
        %v1498 = vsel %vm1434, 1e+30, %v1322
        %v1499 = vsel %vm1435, 1e+30, %v1323
        %v1500 = vsel %vm1436, 1e+30, %v1324
        %v1501 = vsel %vm1437, 1e+30, %v1325
        %v1502 = vsel %vm1438, 1e+30, %v1326
        %v1503 = vsel %vm1439, 1e+30, %v1327
        %v1504 = vsel %vm1440, 1e+30, %v1328
        %v1505 = vsel %vm1441, 1e+30, %v1329
        %v1506 = vsel %vm1442, 1e+30, %v1330
        %v1507 = vsel %vm1443, 1e+30, %v1331
        %v1508 = vsel %vm1444, 1e+30, %v1332
        %v1509 = vsel %vm1445, 1e+30, %v1333
        %v1510 = vsel %vm1446, 1e+30, %v1334
        %v1511 = vsel %vm1447, 1e+30, %v1335
        %1512 = vmin.xlane.f32.xlu0 %v1496
        %v1513 = vpop.xlane.xlu0 %1512
        %1514 = vmin.xlane.f32.xlu0 %v1497
        %v1515 = vpop.xlane.xlu0 %1514
        %1516 = vmin.xlane.f32.xlu0 %v1498
        %v1517 = vpop.xlane.xlu0 %1516
        %1518 = vmin.xlane.f32.xlu0 %v1499
        %v1519 = vpop.xlane.xlu0 %1518
        %1520 = vmin.xlane.f32.xlu0 %v1500
        %v1521 = vpop.xlane.xlu0 %1520
        %1522 = vmin.xlane.f32.xlu0 %v1501
        %v1523 = vpop.xlane.xlu0 %1522
        %1524 = vmin.xlane.f32.xlu0 %v1502
        %v1525 = vpop.xlane.xlu0 %1524
        %1526 = vmin.xlane.f32.xlu0 %v1503
        %v1527 = vpop.xlane.xlu0 %1526
        %1528 = vmin.xlane.f32.xlu0 %v1504
        %v1529 = vpop.xlane.xlu0 %1528
        %1530 = vmin.xlane.f32.xlu0 %v1505
        %v1531 = vpop.xlane.xlu0 %1530
        %1532 = vmin.xlane.f32.xlu0 %v1506
        %v1533 = vpop.xlane.xlu0 %1532
        %1534 = vmin.xlane.f32.xlu0 %v1507
        %v1535 = vpop.xlane.xlu0 %1534
        %1536 = vmin.xlane.f32.xlu0 %v1508
        %v1537 = vpop.xlane.xlu0 %1536
        %1538 = vmin.xlane.f32.xlu0 %v1509
        %v1539 = vpop.xlane.xlu0 %1538
        %1540 = vmin.xlane.f32.xlu0 %v1510
        %v1541 = vpop.xlane.xlu0 %1540
        %1542 = vmin.xlane.f32.xlu0 %v1511
        %v1543 = vpop.xlane.xlu0 %1542
        %vm1544 = vcmp.le.f32.partialorder %v1496, %v1513
        %vm1545 = vcmp.le.f32.partialorder %v1497, %v1515
        %vm1546 = vcmp.le.f32.partialorder %v1498, %v1517
        %vm1547 = vcmp.le.f32.partialorder %v1499, %v1519
        %vm1548 = vcmp.le.f32.partialorder %v1500, %v1521
        %vm1549 = vcmp.le.f32.partialorder %v1501, %v1523
        %vm1550 = vcmp.le.f32.partialorder %v1502, %v1525
        %vm1551 = vcmp.le.f32.partialorder %v1503, %v1527
        %vm1552 = vcmp.le.f32.partialorder %v1504, %v1529
        %vm1553 = vcmp.le.f32.partialorder %v1505, %v1531
        %vm1554 = vcmp.le.f32.partialorder %v1506, %v1533
        %vm1555 = vcmp.le.f32.partialorder %v1507, %v1535
        %vm1556 = vcmp.le.f32.partialorder %v1508, %v1537
        %vm1557 = vcmp.le.f32.partialorder %v1509, %v1539
        %vm1558 = vcmp.le.f32.partialorder %v1510, %v1541
        %vm1559 = vcmp.le.f32.partialorder %v1511, %v1543
        %vm1560 = vcmp.lt.f32.partialorder %v1513, 5e+29
        %vm1561 = vcmp.lt.f32.partialorder %v1515, 5e+29
        %vm1562 = vcmp.lt.f32.partialorder %v1517, 5e+29
        %vm1563 = vcmp.lt.f32.partialorder %v1519, 5e+29
        %vm1564 = vcmp.lt.f32.partialorder %v1521, 5e+29
        %vm1565 = vcmp.lt.f32.partialorder %v1523, 5e+29
        %vm1566 = vcmp.lt.f32.partialorder %v1525, 5e+29
        %vm1567 = vcmp.lt.f32.partialorder %v1527, 5e+29
        %vm1568 = vcmp.lt.f32.partialorder %v1529, 5e+29
        %vm1569 = vcmp.lt.f32.partialorder %v1531, 5e+29
        %vm1570 = vcmp.lt.f32.partialorder %v1533, 5e+29
        %vm1571 = vcmp.lt.f32.partialorder %v1535, 5e+29
        %vm1572 = vcmp.lt.f32.partialorder %v1537, 5e+29
        %vm1573 = vcmp.lt.f32.partialorder %v1539, 5e+29
        %vm1574 = vcmp.lt.f32.partialorder %v1541, 5e+29
        %vm1575 = vcmp.lt.f32.partialorder %v1543, 5e+29
        %v1576 = vsel %vm1560, 1, 0
        %v1577 = vsel %vm1561, 1, 0
        %v1578 = vsel %vm1562, 1, 0
        %v1579 = vsel %vm1563, 1, 0
        %v1580 = vsel %vm1564, 1, 0
        %v1581 = vsel %vm1565, 1, 0
        %v1582 = vsel %vm1566, 1, 0
        %v1583 = vsel %vm1567, 1, 0
        %v1584 = vsel %vm1568, 1, 0
        %v1585 = vsel %vm1569, 1, 0
        %v1586 = vsel %vm1570, 1, 0
        %v1587 = vsel %vm1571, 1, 0
        %v1588 = vsel %vm1572, 1, 0
        %v1589 = vsel %vm1573, 1, 0
        %v1590 = vsel %vm1574, 1, 0
        %v1591 = vsel %vm1575, 1, 0
        %vm1592 = vcmp.eq.s32.totalorder %v1576, 1
        %vm1593 = vcmp.eq.s32.totalorder %v1577, 1
        %vm1594 = vcmp.eq.s32.totalorder %v1578, 1
        %vm1595 = vcmp.eq.s32.totalorder %v1579, 1
        %vm1596 = vcmp.eq.s32.totalorder %v1580, 1
        %vm1597 = vcmp.eq.s32.totalorder %v1581, 1
        %vm1598 = vcmp.eq.s32.totalorder %v1582, 1
        %vm1599 = vcmp.eq.s32.totalorder %v1583, 1
        %vm1600 = vcmp.eq.s32.totalorder %v1584, 1
        %vm1601 = vcmp.eq.s32.totalorder %v1585, 1
        %vm1602 = vcmp.eq.s32.totalorder %v1586, 1
        %vm1603 = vcmp.eq.s32.totalorder %v1587, 1
        %vm1604 = vcmp.eq.s32.totalorder %v1588, 1
        %vm1605 = vcmp.eq.s32.totalorder %v1589, 1
        %vm1606 = vcmp.eq.s32.totalorder %v1590, 1
        %vm1607 = vcmp.eq.s32.totalorder %v1591, 1
        %vm1608 = vmand %vm1544, %vm1592
        %vm1609 = vmand %vm1545, %vm1593
        %vm1610 = vmand %vm1546, %vm1594
        %vm1611 = vmand %vm1547, %vm1595
        %vm1612 = vmand %vm1548, %vm1596
        %vm1613 = vmand %vm1549, %vm1597
        %vm1614 = vmand %vm1550, %vm1598
        %vm1615 = vmand %vm1551, %vm1599
        %vm1616 = vmand %vm1552, %vm1600
        %vm1617 = vmand %vm1553, %vm1601
        %vm1618 = vmand %vm1554, %vm1602
        %vm1619 = vmand %vm1555, %vm1603
        %vm1620 = vmand %vm1556, %vm1604
        %vm1621 = vmand %vm1557, %vm1605
        %vm1622 = vmand %vm1558, %vm1606
        %vm1623 = vmand %vm1559, %vm1607
        %v1624 = vsel %vm1608, 1, 0
        %v1625 = vsel %vm1609, 1, 0
        %v1626 = vsel %vm1610, 1, 0
        %v1627 = vsel %vm1611, 1, 0
        %v1628 = vsel %vm1612, 1, 0
        %v1629 = vsel %vm1613, 1, 0
        %v1630 = vsel %vm1614, 1, 0
        %v1631 = vsel %vm1615, 1, 0
        %v1632 = vsel %vm1616, 1, 0
        %v1633 = vsel %vm1617, 1, 0
        %v1634 = vsel %vm1618, 1, 0
        %v1635 = vsel %vm1619, 1, 0
        %v1636 = vsel %vm1620, 1, 0
        %v1637 = vsel %vm1621, 1, 0
        %v1638 = vsel %vm1622, 1, 0
        %v1639 = vsel %vm1623, 1, 0
        %v1640 = vcvt.s32.f32 %v1624
        %v1641 = vcvt.s32.f32 %v1625
        %v1642 = vcvt.s32.f32 %v1626
        %v1643 = vcvt.s32.f32 %v1627
        %v1644 = vcvt.s32.f32 %v1628
        %v1645 = vcvt.s32.f32 %v1629
        %v1646 = vcvt.s32.f32 %v1630
        %v1647 = vcvt.s32.f32 %v1631
        %v1648 = vcvt.s32.f32 %v1632
        %v1649 = vcvt.s32.f32 %v1633
        %v1650 = vcvt.s32.f32 %v1634
        %v1651 = vcvt.s32.f32 %v1635
        %v1652 = vcvt.s32.f32 %v1636
        %v1653 = vcvt.s32.f32 %v1637
        %v1654 = vcvt.s32.f32 %v1638
        %v1655 = vcvt.s32.f32 %v1639
        %v1656 = vadd.f32 %v1480, %v1640
        %v1657 = vadd.f32 %v1481, %v1641
        %v1658 = vadd.f32 %v1482, %v1642
        %v1659 = vadd.f32 %v1483, %v1643
        %v1660 = vadd.f32 %v1484, %v1644
        %v1661 = vadd.f32 %v1485, %v1645
        %v1662 = vadd.f32 %v1486, %v1646
        %v1663 = vadd.f32 %v1487, %v1647
        %v1664 = vadd.f32 %v1488, %v1648
        %v1665 = vadd.f32 %v1489, %v1649
        %v1666 = vadd.f32 %v1490, %v1650
        %v1667 = vadd.f32 %v1491, %v1651
        %v1668 = vadd.f32 %v1492, %v1652
        %v1669 = vadd.f32 %v1493, %v1653
        %v1670 = vadd.f32 %v1494, %v1654
        %v1671 = vadd.f32 %v1495, %v1655
        %v1672 = vsel %vm1608, 1e+30, %v1496
        %v1673 = vsel %vm1609, 1e+30, %v1497
        %v1674 = vsel %vm1610, 1e+30, %v1498
        %v1675 = vsel %vm1611, 1e+30, %v1499
        %v1676 = vsel %vm1612, 1e+30, %v1500
        %v1677 = vsel %vm1613, 1e+30, %v1501
        %v1678 = vsel %vm1614, 1e+30, %v1502
        %v1679 = vsel %vm1615, 1e+30, %v1503
        %v1680 = vsel %vm1616, 1e+30, %v1504
        %v1681 = vsel %vm1617, 1e+30, %v1505
        %v1682 = vsel %vm1618, 1e+30, %v1506
        %v1683 = vsel %vm1619, 1e+30, %v1507
        %v1684 = vsel %vm1620, 1e+30, %v1508
        %v1685 = vsel %vm1621, 1e+30, %v1509
        %v1686 = vsel %vm1622, 1e+30, %v1510
        %v1687 = vsel %vm1623, 1e+30, %v1511
        %1688 = vmin.xlane.f32.xlu0 %v1672
        %v1689 = vpop.xlane.xlu0 %1688
        %1690 = vmin.xlane.f32.xlu0 %v1673
        %v1691 = vpop.xlane.xlu0 %1690
        %1692 = vmin.xlane.f32.xlu0 %v1674
        %v1693 = vpop.xlane.xlu0 %1692
        %1694 = vmin.xlane.f32.xlu0 %v1675
        %v1695 = vpop.xlane.xlu0 %1694
        %1696 = vmin.xlane.f32.xlu0 %v1676
        %v1697 = vpop.xlane.xlu0 %1696
        %1698 = vmin.xlane.f32.xlu0 %v1677
        %v1699 = vpop.xlane.xlu0 %1698
        %1700 = vmin.xlane.f32.xlu0 %v1678
        %v1701 = vpop.xlane.xlu0 %1700
        %1702 = vmin.xlane.f32.xlu0 %v1679
        %v1703 = vpop.xlane.xlu0 %1702
        %1704 = vmin.xlane.f32.xlu0 %v1680
        %v1705 = vpop.xlane.xlu0 %1704
        %1706 = vmin.xlane.f32.xlu0 %v1681
        %v1707 = vpop.xlane.xlu0 %1706
        %1708 = vmin.xlane.f32.xlu0 %v1682
        %v1709 = vpop.xlane.xlu0 %1708
        %1710 = vmin.xlane.f32.xlu0 %v1683
        %v1711 = vpop.xlane.xlu0 %1710
        %1712 = vmin.xlane.f32.xlu0 %v1684
        %v1713 = vpop.xlane.xlu0 %1712
        %1714 = vmin.xlane.f32.xlu0 %v1685
        %v1715 = vpop.xlane.xlu0 %1714
        %1716 = vmin.xlane.f32.xlu0 %v1686
        %v1717 = vpop.xlane.xlu0 %1716
        %1718 = vmin.xlane.f32.xlu0 %v1687
        %v1719 = vpop.xlane.xlu0 %1718
        %vm1720 = vcmp.le.f32.partialorder %v1672, %v1689
        %vm1721 = vcmp.le.f32.partialorder %v1673, %v1691
        %vm1722 = vcmp.le.f32.partialorder %v1674, %v1693
        %vm1723 = vcmp.le.f32.partialorder %v1675, %v1695
        %vm1724 = vcmp.le.f32.partialorder %v1676, %v1697
        %vm1725 = vcmp.le.f32.partialorder %v1677, %v1699
        %vm1726 = vcmp.le.f32.partialorder %v1678, %v1701
        %vm1727 = vcmp.le.f32.partialorder %v1679, %v1703
        %vm1728 = vcmp.le.f32.partialorder %v1680, %v1705
        %vm1729 = vcmp.le.f32.partialorder %v1681, %v1707
        %vm1730 = vcmp.le.f32.partialorder %v1682, %v1709
        %vm1731 = vcmp.le.f32.partialorder %v1683, %v1711
        %vm1732 = vcmp.le.f32.partialorder %v1684, %v1713
        %vm1733 = vcmp.le.f32.partialorder %v1685, %v1715
        %vm1734 = vcmp.le.f32.partialorder %v1686, %v1717
        %vm1735 = vcmp.le.f32.partialorder %v1687, %v1719
        %vm1736 = vcmp.lt.f32.partialorder %v1689, 5e+29
        %vm1737 = vcmp.lt.f32.partialorder %v1691, 5e+29
        %vm1738 = vcmp.lt.f32.partialorder %v1693, 5e+29
        %vm1739 = vcmp.lt.f32.partialorder %v1695, 5e+29
        %vm1740 = vcmp.lt.f32.partialorder %v1697, 5e+29
        %vm1741 = vcmp.lt.f32.partialorder %v1699, 5e+29
        %vm1742 = vcmp.lt.f32.partialorder %v1701, 5e+29
        %vm1743 = vcmp.lt.f32.partialorder %v1703, 5e+29
        %vm1744 = vcmp.lt.f32.partialorder %v1705, 5e+29
        %vm1745 = vcmp.lt.f32.partialorder %v1707, 5e+29
        %vm1746 = vcmp.lt.f32.partialorder %v1709, 5e+29
        %vm1747 = vcmp.lt.f32.partialorder %v1711, 5e+29
        %vm1748 = vcmp.lt.f32.partialorder %v1713, 5e+29
        %vm1749 = vcmp.lt.f32.partialorder %v1715, 5e+29
        %vm1750 = vcmp.lt.f32.partialorder %v1717, 5e+29
        %vm1751 = vcmp.lt.f32.partialorder %v1719, 5e+29
        %v1752 = vsel %vm1736, 1, 0
        %v1753 = vsel %vm1737, 1, 0
        %v1754 = vsel %vm1738, 1, 0
        %v1755 = vsel %vm1739, 1, 0
        %v1756 = vsel %vm1740, 1, 0
        %v1757 = vsel %vm1741, 1, 0
        %v1758 = vsel %vm1742, 1, 0
        %v1759 = vsel %vm1743, 1, 0
        %v1760 = vsel %vm1744, 1, 0
        %v1761 = vsel %vm1745, 1, 0
        %v1762 = vsel %vm1746, 1, 0
        %v1763 = vsel %vm1747, 1, 0
        %v1764 = vsel %vm1748, 1, 0
        %v1765 = vsel %vm1749, 1, 0
        %v1766 = vsel %vm1750, 1, 0
        %v1767 = vsel %vm1751, 1, 0
        %vm1768 = vcmp.eq.s32.totalorder %v1752, 1
        %vm1769 = vcmp.eq.s32.totalorder %v1753, 1
        %vm1770 = vcmp.eq.s32.totalorder %v1754, 1
        %vm1771 = vcmp.eq.s32.totalorder %v1755, 1
        %vm1772 = vcmp.eq.s32.totalorder %v1756, 1
        %vm1773 = vcmp.eq.s32.totalorder %v1757, 1
        %vm1774 = vcmp.eq.s32.totalorder %v1758, 1
        %vm1775 = vcmp.eq.s32.totalorder %v1759, 1
        %vm1776 = vcmp.eq.s32.totalorder %v1760, 1
        %vm1777 = vcmp.eq.s32.totalorder %v1761, 1
        %vm1778 = vcmp.eq.s32.totalorder %v1762, 1
        %vm1779 = vcmp.eq.s32.totalorder %v1763, 1
        %vm1780 = vcmp.eq.s32.totalorder %v1764, 1
        %vm1781 = vcmp.eq.s32.totalorder %v1765, 1
        %vm1782 = vcmp.eq.s32.totalorder %v1766, 1
        %vm1783 = vcmp.eq.s32.totalorder %v1767, 1
        %vm1784 = vmand %vm1720, %vm1768
        %vm1785 = vmand %vm1721, %vm1769
        %vm1786 = vmand %vm1722, %vm1770
        %vm1787 = vmand %vm1723, %vm1771
        %vm1788 = vmand %vm1724, %vm1772
        %vm1789 = vmand %vm1725, %vm1773
        %vm1790 = vmand %vm1726, %vm1774
        %vm1791 = vmand %vm1727, %vm1775
        %vm1792 = vmand %vm1728, %vm1776
        %vm1793 = vmand %vm1729, %vm1777
        %vm1794 = vmand %vm1730, %vm1778
        %vm1795 = vmand %vm1731, %vm1779
        %vm1796 = vmand %vm1732, %vm1780
        %vm1797 = vmand %vm1733, %vm1781
        %vm1798 = vmand %vm1734, %vm1782
        %vm1799 = vmand %vm1735, %vm1783
        %v1800 = vsel %vm1784, 1, 0
        %v1801 = vsel %vm1785, 1, 0
        %v1802 = vsel %vm1786, 1, 0
        %v1803 = vsel %vm1787, 1, 0
        %v1804 = vsel %vm1788, 1, 0
        %v1805 = vsel %vm1789, 1, 0
        %v1806 = vsel %vm1790, 1, 0
        %v1807 = vsel %vm1791, 1, 0
        %v1808 = vsel %vm1792, 1, 0
        %v1809 = vsel %vm1793, 1, 0
        %v1810 = vsel %vm1794, 1, 0
        %v1811 = vsel %vm1795, 1, 0
        %v1812 = vsel %vm1796, 1, 0
        %v1813 = vsel %vm1797, 1, 0
        %v1814 = vsel %vm1798, 1, 0
        %v1815 = vsel %vm1799, 1, 0
        %v1816 = vcvt.s32.f32 %v1800
        %v1817 = vcvt.s32.f32 %v1801
        %v1818 = vcvt.s32.f32 %v1802
        %v1819 = vcvt.s32.f32 %v1803
        %v1820 = vcvt.s32.f32 %v1804
        %v1821 = vcvt.s32.f32 %v1805
        %v1822 = vcvt.s32.f32 %v1806
        %v1823 = vcvt.s32.f32 %v1807
        %v1824 = vcvt.s32.f32 %v1808
        %v1825 = vcvt.s32.f32 %v1809
        %v1826 = vcvt.s32.f32 %v1810
        %v1827 = vcvt.s32.f32 %v1811
        %v1828 = vcvt.s32.f32 %v1812
        %v1829 = vcvt.s32.f32 %v1813
        %v1830 = vcvt.s32.f32 %v1814
        %v1831 = vcvt.s32.f32 %v1815
        %v1832 = vadd.f32 %v1656, %v1816
        %v1833 = vadd.f32 %v1657, %v1817
        %v1834 = vadd.f32 %v1658, %v1818
        %v1835 = vadd.f32 %v1659, %v1819
        %v1836 = vadd.f32 %v1660, %v1820
        %v1837 = vadd.f32 %v1661, %v1821
        %v1838 = vadd.f32 %v1662, %v1822
        %v1839 = vadd.f32 %v1663, %v1823
        %v1840 = vadd.f32 %v1664, %v1824
        %v1841 = vadd.f32 %v1665, %v1825
        %v1842 = vadd.f32 %v1666, %v1826
        %v1843 = vadd.f32 %v1667, %v1827
        %v1844 = vadd.f32 %v1668, %v1828
        %v1845 = vadd.f32 %v1669, %v1829
        %v1846 = vadd.f32 %v1670, %v1830
        %v1847 = vadd.f32 %v1671, %v1831
        %v1848 = vpack.c.bf16 %v1833, %v1832
        %v1849 = vpack.c.bf16 %v1835, %v1834
        %v1850 = vpack.c.bf16 %v1837, %v1836
        %v1851 = vpack.c.bf16 %v1839, %v1838
        %v1852 = vpack.c.bf16 %v1841, %v1840
        %v1853 = vpack.c.bf16 %v1843, %v1842
        %v1854 = vpack.c.bf16 %v1845, %v1844
        %v1855 = vpack.c.bf16 %v1847, %v1846
        %v1856 = vpack.c.bf16 %v728, %v728
        %1857 = vmatprep.subr.bf16.mxu0 0
        %1858 = vmatpush1.bf16.xpose.msra.mxu0 %v1848
        %1859 = vmatprep.subr.bf16.mxu0 0
        %1860 = vmatpush1.bf16.xpose.msra.mxu0 %v1849
        %1861 = vmatprep.subr.bf16.mxu0 0
        %1862 = vmatpush1.bf16.xpose.msra.mxu0 %v1850
        %1863 = vmatprep.subr.bf16.mxu0 0
        %1864 = vmatpush1.bf16.xpose.msra.mxu0 %v1851
        %1865 = vmatprep.subr.bf16.mxu0 0
        %1866 = vmatpush1.bf16.xpose.msra.mxu0 %v1852
        %1867 = vmatprep.subr.bf16.mxu0 0
        %1868 = vmatpush1.bf16.xpose.msra.mxu0 %v1853
        %1869 = vmatprep.subr.bf16.mxu0 0
        %1870 = vmatpush1.bf16.xpose.msra.mxu0 %v1854
        %1871 = vmatprep.subr.bf16.mxu0 0
        %1872 = vmatpush1.bf16.xpose.msra.mxu0 %v1855
        %1873 = vmatprep.subr.bf16.mxu0 0
        %1874 = vmatpush1.bf16.xpose.msra.mxu0 0
        %1875 = vmatprep.subr.bf16.mxu0 0
        %1876 = vmatpush1.bf16.xpose.msra.mxu0 0
        %1877 = vmatprep.subr.bf16.mxu0 0
        %1878 = vmatpush1.bf16.xpose.msra.mxu0 0
        %1879 = vmatprep.subr.bf16.mxu0 0
        %1880 = vmatpush1.bf16.xpose.msra.mxu0 0
        %1881 = vmatprep.subr.bf16.mxu0 0
        %1882 = vmatpush1.bf16.xpose.msra.mxu0 0
        %1883 = vmatprep.subr.bf16.mxu0 0
        %1884 = vmatpush1.bf16.xpose.msra.mxu0 0
        %1885 = vmatprep.subr.bf16.mxu0 0
        %1886 = vmatpush1.bf16.xpose.msra.mxu0 0
        %1887 = vmatprep.subr.bf16.mxu0 0
        %1888 = vmatpush1.bf16.xpose.msra.mxu0 0
        %1889 = vmatprep.mubr.bf16.mxu0 0
        %1890 = vmatmul.mubr.bf16.gmra.mrb[0].mxu0 %v1856
        %v1891 = vpop.f32.mrb[0].mxu0
        %v1892 = vadd.f32 0.0, %v1891
        %v1893 = vpop.f32.mrb[0].mxu0
        %v1894 = vpop.f32.mrb[0].mxu0
        %v1895 = vpop.f32.mrb[0].mxu0
        %1896 = vdwg.mxu0
        %v1897 = vpack.c.bf16 %v1892, %v1892
        %v1898 = vld [vmem:[%s3] sm:$0x7]
        %v1899 = vld [vmem:[%s4] sm:$0x7]
        %v1900 = vld [vmem:[%s5] sm:$0x7]
        %v1901 = vld [vmem:[%s6] sm:$0x7]
        %v1902 = vld [vmem:[%s7] sm:$0x3f]
        %v1903 = vpack.c.bf16 %v745, %v745
        %1904 = vmatprep.subr.bf16.mxu0 0
        %1905 = vmatpush1.bf16.xpose.msra.mxu0 %v1848
        %1906 = vmatprep.subr.bf16.mxu0 0
        %1907 = vmatpush1.bf16.xpose.msra.mxu0 %v1849
        %1908 = vmatprep.subr.bf16.mxu0 0
        %1909 = vmatpush1.bf16.xpose.msra.mxu0 %v1850
        %1910 = vmatprep.subr.bf16.mxu0 0
        %1911 = vmatpush1.bf16.xpose.msra.mxu0 %v1851
        %1912 = vmatprep.subr.bf16.mxu0 0
        %1913 = vmatpush1.bf16.xpose.msra.mxu0 %v1852
        %1914 = vmatprep.subr.bf16.mxu0 0
        %1915 = vmatpush1.bf16.xpose.msra.mxu0 %v1853
        %1916 = vmatprep.subr.bf16.mxu0 0
        %1917 = vmatpush1.bf16.xpose.msra.mxu0 %v1854
        %1918 = vmatprep.subr.bf16.mxu0 0
        %1919 = vmatpush1.bf16.xpose.msra.mxu0 %v1855
        %1920 = vmatprep.subr.bf16.mxu0 0
        %1921 = vmatpush1.bf16.xpose.msra.mxu0 0
        %1922 = vmatprep.subr.bf16.mxu0 0
        %1923 = vmatpush1.bf16.xpose.msra.mxu0 0
        %1924 = vmatprep.subr.bf16.mxu0 0
        %1925 = vmatpush1.bf16.xpose.msra.mxu0 0
        %1926 = vmatprep.subr.bf16.mxu0 0
        %1927 = vmatpush1.bf16.xpose.msra.mxu0 0
        %1928 = vmatprep.subr.bf16.mxu0 0
        %1929 = vmatpush1.bf16.xpose.msra.mxu0 0
        %1930 = vmatprep.subr.bf16.mxu0 0
        %1931 = vmatpush1.bf16.xpose.msra.mxu0 0
        %1932 = vmatprep.subr.bf16.mxu0 0
        %1933 = vmatpush1.bf16.xpose.msra.mxu0 0
        %1934 = vmatprep.subr.bf16.mxu0 0
        %1935 = vmatpush1.bf16.xpose.msra.mxu0 0
        %1936 = vmatprep.mubr.bf16.mxu0 0
        %1937 = vmatmul.mubr.bf16.gmra.mrb[0].mxu0 %v1903
        %v1938 = vpop.f32.mrb[0].mxu0
        %v1939 = vadd.f32 0.0, %v1938
        %v1940 = vpop.f32.mrb[0].mxu0
        %v1941 = vpop.f32.mrb[0].mxu0
        %v1942 = vpop.f32.mrb[0].mxu0
        %1943 = vdwg.mxu0
        %v1944 = vpack.c.bf16 %v1939, %v1939
        %vm1945 = vcmask 31744
        %v1947 = vsel %vm1945, %v1899, 0
        %vm1949 = vcmask 1041408
        %v1951 = vsel %vm1949, %v1944, 0
        %1953 = vmatprep.subr.bf16.mxu0 0
        %1954 = vmatpush1.bf16.msra.mxu0 %v1951
        %1955 = vmatprep.subr.bf16.mxu0 0
        %1956 = vmatpush1.bf16.msra.mxu0 0
        %1957 = vmatprep.subr.bf16.mxu0 0
        %1958 = vmatpush1.bf16.msra.mxu0 0
        %1959 = vmatprep.subr.bf16.mxu0 0
        %1960 = vmatpush1.bf16.msra.mxu0 0
        %1961 = vmatprep.subr.bf16.mxu0 0
        %1962 = vmatpush1.bf16.msra.mxu0 0
        %1963 = vmatprep.subr.bf16.mxu0 0
        %1964 = vmatpush1.bf16.msra.mxu0 0
        %1965 = vmatprep.subr.bf16.mxu0 0
        %1966 = vmatpush1.bf16.msra.mxu0 0
        %1967 = vmatprep.subr.bf16.mxu0 0
        %1968 = vmatpush1.bf16.msra.mxu0 0
        %1969 = vmatprep.subr.bf16.mxu0 0
        %1970 = vmatpush1.bf16.msra.mxu0 0
        %1971 = vmatprep.subr.bf16.mxu0 0
        %1972 = vmatpush1.bf16.msra.mxu0 0
        %1973 = vmatprep.subr.bf16.mxu0 0
        %1974 = vmatpush1.bf16.msra.mxu0 0
        %1975 = vmatprep.subr.bf16.mxu0 0
        %1976 = vmatpush1.bf16.msra.mxu0 0
        %1977 = vmatprep.subr.bf16.mxu0 0
        %1978 = vmatpush1.bf16.msra.mxu0 0
        %1979 = vmatprep.subr.bf16.mxu0 0
        %1980 = vmatpush1.bf16.msra.mxu0 0
        %1981 = vmatprep.subr.bf16.mxu0 0
        %1982 = vmatpush1.bf16.msra.mxu0 0
        %1983 = vmatprep.subr.bf16.mxu0 0
        %1984 = vmatpush1.bf16.msra.mxu0 0
        %1985 = vmatprep.mubr.bf16.mxu0 0
        %1986 = vmatmul.mubr.bf16.gmra.mrb[0].mxu0 %v1947
        %v1987 = vpop.f32.mrb[0].mxu0
        %v1988 = vadd.f32 0.0, %v1987
        %v1989 = vpop.f32.mrb[0].mxu0
        %v1990 = vpop.f32.mrb[0].mxu0
        %v1991 = vpop.f32.mrb[0].mxu0
        %1992 = vdwg.mxu0
        %vm1993 = vcmask 23552
        %v1995 = vsel %vm1993, %v1898, 0
        %vm1997 = vcmask 1040384
        %v1998 = vsel %vm1997, 4294967295, 65535
        %v1999 = vsel %vm1949, %v1998, 0
        %v2001 = vand.u32 %v1897, %v1999
        %2003 = vmatprep.subr.bf16.mxu0 0
        %2004 = vmatpush1.bf16.msra.mxu0 %v2001
        %2005 = vmatprep.subr.bf16.mxu0 0
        %2006 = vmatpush1.bf16.msra.mxu0 0
        %2007 = vmatprep.subr.bf16.mxu0 0
        %2008 = vmatpush1.bf16.msra.mxu0 0
        %2009 = vmatprep.subr.bf16.mxu0 0
        %2010 = vmatpush1.bf16.msra.mxu0 0
        %2011 = vmatprep.subr.bf16.mxu0 0
        %2012 = vmatpush1.bf16.msra.mxu0 0
        %2013 = vmatprep.subr.bf16.mxu0 0
        %2014 = vmatpush1.bf16.msra.mxu0 0
        %2015 = vmatprep.subr.bf16.mxu0 0
        %2016 = vmatpush1.bf16.msra.mxu0 0
        %2017 = vmatprep.subr.bf16.mxu0 0
        %2018 = vmatpush1.bf16.msra.mxu0 0
        %2019 = vmatprep.subr.bf16.mxu0 0
        %2020 = vmatpush1.bf16.msra.mxu0 0
        %2021 = vmatprep.subr.bf16.mxu0 0
        %2022 = vmatpush1.bf16.msra.mxu0 0
        %2023 = vmatprep.subr.bf16.mxu0 0
        %2024 = vmatpush1.bf16.msra.mxu0 0
        %2025 = vmatprep.subr.bf16.mxu0 0
        %2026 = vmatpush1.bf16.msra.mxu0 0
        %2027 = vmatprep.subr.bf16.mxu0 0
        %2028 = vmatpush1.bf16.msra.mxu0 0
        %2029 = vmatprep.subr.bf16.mxu0 0
        %2030 = vmatpush1.bf16.msra.mxu0 0
        %2031 = vmatprep.subr.bf16.mxu0 0
        %2032 = vmatpush1.bf16.msra.mxu0 0
        %2033 = vmatprep.subr.bf16.mxu0 0
        %2034 = vmatpush1.bf16.msra.mxu0 0
        %2035 = vmatprep.mubr.bf16.mxu0 0
        %2036 = vmatmul.mubr.bf16.gmra.mrb[0].mxu0 %v1995
        %v2037 = vpop.f32.mrb[0].mxu0
        %v2038 = vadd.f32 %v1988, %v2037
        %v2039 = vpop.f32.mrb[0].mxu0
        %v2040 = vpop.f32.mrb[0].mxu0
        %v2041 = vpop.f32.mrb[0].mxu0
        %2042 = vdwg.mxu0
        %v2044 = vsel %vm1993, %v1900, 0
        %v2047 = vand.u32 %v1856, %v1999
        %2049 = vmatprep.subr.bf16.mxu0 0
        %2050 = vmatpush1.bf16.msra.mxu0 %v2047
        %2051 = vmatprep.subr.bf16.mxu0 0
        %2052 = vmatpush1.bf16.msra.mxu0 0
        %2053 = vmatprep.subr.bf16.mxu0 0
        %2054 = vmatpush1.bf16.msra.mxu0 0
        %2055 = vmatprep.subr.bf16.mxu0 0
        %2056 = vmatpush1.bf16.msra.mxu0 0
        %2057 = vmatprep.subr.bf16.mxu0 0
        %2058 = vmatpush1.bf16.msra.mxu0 0
        %2059 = vmatprep.subr.bf16.mxu0 0
        %2060 = vmatpush1.bf16.msra.mxu0 0
        %2061 = vmatprep.subr.bf16.mxu0 0
        %2062 = vmatpush1.bf16.msra.mxu0 0
        %2063 = vmatprep.subr.bf16.mxu0 0
        %2064 = vmatpush1.bf16.msra.mxu0 0
        %2065 = vmatprep.subr.bf16.mxu0 0
        %2066 = vmatpush1.bf16.msra.mxu0 0
        %2067 = vmatprep.subr.bf16.mxu0 0
        %2068 = vmatpush1.bf16.msra.mxu0 0
        %2069 = vmatprep.subr.bf16.mxu0 0
        %2070 = vmatpush1.bf16.msra.mxu0 0
        %2071 = vmatprep.subr.bf16.mxu0 0
        %2072 = vmatpush1.bf16.msra.mxu0 0
        %2073 = vmatprep.subr.bf16.mxu0 0
        %2074 = vmatpush1.bf16.msra.mxu0 0
        %2075 = vmatprep.subr.bf16.mxu0 0
        %2076 = vmatpush1.bf16.msra.mxu0 0
        %2077 = vmatprep.subr.bf16.mxu0 0
        %2078 = vmatpush1.bf16.msra.mxu0 0
        %2079 = vmatprep.subr.bf16.mxu0 0
        %2080 = vmatpush1.bf16.msra.mxu0 0
        %2081 = vmatprep.mubr.bf16.mxu0 0
        %2082 = vmatmul.mubr.bf16.gmra.mrb[0].mxu0 %v2044
        %v2083 = vpop.f32.mrb[0].mxu0
        %v2084 = vadd.f32 0.0, %v2083
        %v2085 = vpop.f32.mrb[0].mxu0
        %v2086 = vpop.f32.mrb[0].mxu0
        %v2087 = vpop.f32.mrb[0].mxu0
        %2088 = vdwg.mxu0
        %v2089 = vadd.f32 %v2038, %v2084
        %v2091 = vsel %vm1945, %v1901, 0
        %v2094 = vsel %vm1949, %v1903, 0
        %2096 = vmatprep.subr.bf16.mxu0 0
        %2097 = vmatpush1.bf16.msra.mxu0 %v2094
        %2098 = vmatprep.subr.bf16.mxu0 0
        %2099 = vmatpush1.bf16.msra.mxu0 0
        %2100 = vmatprep.subr.bf16.mxu0 0
        %2101 = vmatpush1.bf16.msra.mxu0 0
        %2102 = vmatprep.subr.bf16.mxu0 0
        %2103 = vmatpush1.bf16.msra.mxu0 0
        %2104 = vmatprep.subr.bf16.mxu0 0
        %2105 = vmatpush1.bf16.msra.mxu0 0
        %2106 = vmatprep.subr.bf16.mxu0 0
        %2107 = vmatpush1.bf16.msra.mxu0 0
        %2108 = vmatprep.subr.bf16.mxu0 0
        %2109 = vmatpush1.bf16.msra.mxu0 0
        %2110 = vmatprep.subr.bf16.mxu0 0
        %2111 = vmatpush1.bf16.msra.mxu0 0
        %2112 = vmatprep.subr.bf16.mxu0 0
        %2113 = vmatpush1.bf16.msra.mxu0 0
        %2114 = vmatprep.subr.bf16.mxu0 0
        %2115 = vmatpush1.bf16.msra.mxu0 0
        %2116 = vmatprep.subr.bf16.mxu0 0
        %2117 = vmatpush1.bf16.msra.mxu0 0
        %2118 = vmatprep.subr.bf16.mxu0 0
        %2119 = vmatpush1.bf16.msra.mxu0 0
        %2120 = vmatprep.subr.bf16.mxu0 0
        %2121 = vmatpush1.bf16.msra.mxu0 0
        %2122 = vmatprep.subr.bf16.mxu0 0
        %2123 = vmatpush1.bf16.msra.mxu0 0
        %2124 = vmatprep.subr.bf16.mxu0 0
        %2125 = vmatpush1.bf16.msra.mxu0 0
        %2126 = vmatprep.subr.bf16.mxu0 0
        %2127 = vmatpush1.bf16.msra.mxu0 0
        %2128 = vmatprep.mubr.bf16.mxu0 0
        %2129 = vmatmul.mubr.bf16.gmra.mrb[0].mxu0 %v2091
        %v2130 = vpop.f32.mrb[0].mxu0
        %v2131 = vadd.f32 0.0, %v2130
        %v2132 = vpop.f32.mrb[0].mxu0
        %v2133 = vpop.f32.mrb[0].mxu0
        %v2134 = vpop.f32.mrb[0].mxu0
        %2135 = vdwg.mxu0
        %v2136 = vadd.f32 %v2089, %v2131
        %2138 = vset.pattern.permute.xlu0 0
        %2139 = vperm.xlu0 %2138, %v1902
        %v2140 = vpop.permute.xlu0 %2139
        %v2142 = vadd.f32 %v2136, %v2140
        %v2143 = vmax.f32 %v2142, 0.0
        %v2144 = vld [vmem:[%s8] sm:$0x7]
        %v2145 = vld [vmem:[%s9] sm:$0x7]
        %v2146 = vld [vmem:[%s10] sm:$0x7]
        %v2147 = vld [vmem:[%s11] sm:$0x7]
        %v2148 = vld [vmem:[%s12] sm:$0x3f]
        %v2149 = vpack.c.bf16 %v2143, %v2143
        %2150 = vmatprep.subr.bf16.mxu0 0
        %2151 = vmatpush1.bf16.xpose.msra.mxu0 %v1848
        %2152 = vmatprep.subr.bf16.mxu0 0
        %2153 = vmatpush1.bf16.xpose.msra.mxu0 %v1849
        %2154 = vmatprep.subr.bf16.mxu0 0
        %2155 = vmatpush1.bf16.xpose.msra.mxu0 %v1850
        %2156 = vmatprep.subr.bf16.mxu0 0
        %2157 = vmatpush1.bf16.xpose.msra.mxu0 %v1851
        %2158 = vmatprep.subr.bf16.mxu0 0
        %2159 = vmatpush1.bf16.xpose.msra.mxu0 %v1852
        %2160 = vmatprep.subr.bf16.mxu0 0
        %2161 = vmatpush1.bf16.xpose.msra.mxu0 %v1853
        %2162 = vmatprep.subr.bf16.mxu0 0
        %2163 = vmatpush1.bf16.xpose.msra.mxu0 %v1854
        %2164 = vmatprep.subr.bf16.mxu0 0
        %2165 = vmatpush1.bf16.xpose.msra.mxu0 %v1855
        %2166 = vmatprep.subr.bf16.mxu0 0
        %2167 = vmatpush1.bf16.xpose.msra.mxu0 0
        %2168 = vmatprep.subr.bf16.mxu0 0
        %2169 = vmatpush1.bf16.xpose.msra.mxu0 0
        %2170 = vmatprep.subr.bf16.mxu0 0
        %2171 = vmatpush1.bf16.xpose.msra.mxu0 0
        %2172 = vmatprep.subr.bf16.mxu0 0
        %2173 = vmatpush1.bf16.xpose.msra.mxu0 0
        %2174 = vmatprep.subr.bf16.mxu0 0
        %2175 = vmatpush1.bf16.xpose.msra.mxu0 0
        %2176 = vmatprep.subr.bf16.mxu0 0
        %2177 = vmatpush1.bf16.xpose.msra.mxu0 0
        %2178 = vmatprep.subr.bf16.mxu0 0
        %2179 = vmatpush1.bf16.xpose.msra.mxu0 0
        %2180 = vmatprep.subr.bf16.mxu0 0
        %2181 = vmatpush1.bf16.xpose.msra.mxu0 0
        %2182 = vmatprep.mubr.bf16.mxu0 0
        %2183 = vmatmul.mubr.bf16.gmra.mrb[0].mxu0 %v2149
        %v2184 = vpop.f32.mrb[0].mxu0
        %v2185 = vadd.f32 0.0, %v2184
        %v2186 = vpop.f32.mrb[0].mxu0
        %v2187 = vpop.f32.mrb[0].mxu0
        %v2188 = vpop.f32.mrb[0].mxu0
        %2189 = vdwg.mxu0
        %v2190 = vpack.c.bf16 %v2185, %v2185
        %vm2191 = vcmask 48128
        %v2193 = vsel %vm2191, %v2145, 0
        %vm2195 = vcmask 1042432
        %v2197 = vsel %vm2195, %v2190, 0
        %2199 = vmatprep.subr.bf16.mxu0 0
        %2200 = vmatpush1.bf16.msra.mxu0 %v2197
        %2201 = vmatprep.subr.bf16.mxu0 0
        %2202 = vmatpush1.bf16.msra.mxu0 0
        %2203 = vmatprep.subr.bf16.mxu0 0
        %2204 = vmatpush1.bf16.msra.mxu0 0
        %2205 = vmatprep.subr.bf16.mxu0 0
        %2206 = vmatpush1.bf16.msra.mxu0 0
        %2207 = vmatprep.subr.bf16.mxu0 0
        %2208 = vmatpush1.bf16.msra.mxu0 0
        %2209 = vmatprep.subr.bf16.mxu0 0
        %2210 = vmatpush1.bf16.msra.mxu0 0
        %2211 = vmatprep.subr.bf16.mxu0 0
        %2212 = vmatpush1.bf16.msra.mxu0 0
        %2213 = vmatprep.subr.bf16.mxu0 0
        %2214 = vmatpush1.bf16.msra.mxu0 0
        %2215 = vmatprep.subr.bf16.mxu0 0
        %2216 = vmatpush1.bf16.msra.mxu0 0
        %2217 = vmatprep.subr.bf16.mxu0 0
        %2218 = vmatpush1.bf16.msra.mxu0 0
        %2219 = vmatprep.subr.bf16.mxu0 0
        %2220 = vmatpush1.bf16.msra.mxu0 0
        %2221 = vmatprep.subr.bf16.mxu0 0
        %2222 = vmatpush1.bf16.msra.mxu0 0
        %2223 = vmatprep.subr.bf16.mxu0 0
        %2224 = vmatpush1.bf16.msra.mxu0 0
        %2225 = vmatprep.subr.bf16.mxu0 0
        %2226 = vmatpush1.bf16.msra.mxu0 0
        %2227 = vmatprep.subr.bf16.mxu0 0
        %2228 = vmatpush1.bf16.msra.mxu0 0
        %2229 = vmatprep.subr.bf16.mxu0 0
        %2230 = vmatpush1.bf16.msra.mxu0 0
        %2231 = vmatprep.mubr.bf16.mxu0 0
        %2232 = vmatmul.mubr.bf16.gmra.mrb[0].mxu0 %v2193
        %v2233 = vpop.f32.mrb[0].mxu0
        %v2234 = vadd.f32 0.0, %v2233
        %v2235 = vpop.f32.mrb[0].mxu0
        %v2236 = vpop.f32.mrb[0].mxu0
        %v2237 = vpop.f32.mrb[0].mxu0
        %2238 = vdwg.mxu0
        %v2240 = vsel %vm1993, %v2144, 0
        %2242 = vmatprep.subr.bf16.mxu0 0
        %2243 = vmatpush1.bf16.msra.mxu0 %v2001
        %2244 = vmatprep.subr.bf16.mxu0 0
        %2245 = vmatpush1.bf16.msra.mxu0 0
        %2246 = vmatprep.subr.bf16.mxu0 0
        %2247 = vmatpush1.bf16.msra.mxu0 0
        %2248 = vmatprep.subr.bf16.mxu0 0
        %2249 = vmatpush1.bf16.msra.mxu0 0
        %2250 = vmatprep.subr.bf16.mxu0 0
        %2251 = vmatpush1.bf16.msra.mxu0 0
        %2252 = vmatprep.subr.bf16.mxu0 0
        %2253 = vmatpush1.bf16.msra.mxu0 0
        %2254 = vmatprep.subr.bf16.mxu0 0
        %2255 = vmatpush1.bf16.msra.mxu0 0
        %2256 = vmatprep.subr.bf16.mxu0 0
        %2257 = vmatpush1.bf16.msra.mxu0 0
        %2258 = vmatprep.subr.bf16.mxu0 0
        %2259 = vmatpush1.bf16.msra.mxu0 0
        %2260 = vmatprep.subr.bf16.mxu0 0
        %2261 = vmatpush1.bf16.msra.mxu0 0
        %2262 = vmatprep.subr.bf16.mxu0 0
        %2263 = vmatpush1.bf16.msra.mxu0 0
        %2264 = vmatprep.subr.bf16.mxu0 0
        %2265 = vmatpush1.bf16.msra.mxu0 0
        %2266 = vmatprep.subr.bf16.mxu0 0
        %2267 = vmatpush1.bf16.msra.mxu0 0
        %2268 = vmatprep.subr.bf16.mxu0 0
        %2269 = vmatpush1.bf16.msra.mxu0 0
        %2270 = vmatprep.subr.bf16.mxu0 0
        %2271 = vmatpush1.bf16.msra.mxu0 0
        %2272 = vmatprep.subr.bf16.mxu0 0
        %2273 = vmatpush1.bf16.msra.mxu0 0
        %2274 = vmatprep.mubr.bf16.mxu0 0
        %2275 = vmatmul.mubr.bf16.gmra.mrb[0].mxu0 %v2240
        %v2276 = vpop.f32.mrb[0].mxu0
        %v2277 = vadd.f32 %v2234, %v2276
        %v2278 = vpop.f32.mrb[0].mxu0
        %v2279 = vpop.f32.mrb[0].mxu0
        %v2280 = vpop.f32.mrb[0].mxu0
        %2281 = vdwg.mxu0
        %v2283 = vsel %vm1993, %v2146, 0
        %2285 = vmatprep.subr.bf16.mxu0 0
        %2286 = vmatpush1.bf16.msra.mxu0 %v2047
        %2287 = vmatprep.subr.bf16.mxu0 0
        %2288 = vmatpush1.bf16.msra.mxu0 0
        %2289 = vmatprep.subr.bf16.mxu0 0
        %2290 = vmatpush1.bf16.msra.mxu0 0
        %2291 = vmatprep.subr.bf16.mxu0 0
        %2292 = vmatpush1.bf16.msra.mxu0 0
        %2293 = vmatprep.subr.bf16.mxu0 0
        %2294 = vmatpush1.bf16.msra.mxu0 0
        %2295 = vmatprep.subr.bf16.mxu0 0
        %2296 = vmatpush1.bf16.msra.mxu0 0
        %2297 = vmatprep.subr.bf16.mxu0 0
        %2298 = vmatpush1.bf16.msra.mxu0 0
        %2299 = vmatprep.subr.bf16.mxu0 0
        %2300 = vmatpush1.bf16.msra.mxu0 0
        %2301 = vmatprep.subr.bf16.mxu0 0
        %2302 = vmatpush1.bf16.msra.mxu0 0
        %2303 = vmatprep.subr.bf16.mxu0 0
        %2304 = vmatpush1.bf16.msra.mxu0 0
        %2305 = vmatprep.subr.bf16.mxu0 0
        %2306 = vmatpush1.bf16.msra.mxu0 0
        %2307 = vmatprep.subr.bf16.mxu0 0
        %2308 = vmatpush1.bf16.msra.mxu0 0
        %2309 = vmatprep.subr.bf16.mxu0 0
        %2310 = vmatpush1.bf16.msra.mxu0 0
        %2311 = vmatprep.subr.bf16.mxu0 0
        %2312 = vmatpush1.bf16.msra.mxu0 0
        %2313 = vmatprep.subr.bf16.mxu0 0
        %2314 = vmatpush1.bf16.msra.mxu0 0
        %2315 = vmatprep.subr.bf16.mxu0 0
        %2316 = vmatpush1.bf16.msra.mxu0 0
        %2317 = vmatprep.mubr.bf16.mxu0 0
        %2318 = vmatmul.mubr.bf16.gmra.mrb[0].mxu0 %v2283
        %v2319 = vpop.f32.mrb[0].mxu0
        %v2320 = vadd.f32 0.0, %v2319
        %v2321 = vpop.f32.mrb[0].mxu0
        %v2322 = vpop.f32.mrb[0].mxu0
        %v2323 = vpop.f32.mrb[0].mxu0
        %2324 = vdwg.mxu0
        %v2325 = vadd.f32 %v2277, %v2320
        %v2327 = vsel %vm2191, %v2147, 0
        %v2330 = vsel %vm2195, %v2149, 0
        %2332 = vmatprep.subr.bf16.mxu0 0
        %2333 = vmatpush1.bf16.msra.mxu0 %v2330
        %2334 = vmatprep.subr.bf16.mxu0 0
        %2335 = vmatpush1.bf16.msra.mxu0 0
        %2336 = vmatprep.subr.bf16.mxu0 0
        %2337 = vmatpush1.bf16.msra.mxu0 0
        %2338 = vmatprep.subr.bf16.mxu0 0
        %2339 = vmatpush1.bf16.msra.mxu0 0
        %2340 = vmatprep.subr.bf16.mxu0 0
        %2341 = vmatpush1.bf16.msra.mxu0 0
        %2342 = vmatprep.subr.bf16.mxu0 0
        %2343 = vmatpush1.bf16.msra.mxu0 0
        %2344 = vmatprep.subr.bf16.mxu0 0
        %2345 = vmatpush1.bf16.msra.mxu0 0
        %2346 = vmatprep.subr.bf16.mxu0 0
        %2347 = vmatpush1.bf16.msra.mxu0 0
        %2348 = vmatprep.subr.bf16.mxu0 0
        %2349 = vmatpush1.bf16.msra.mxu0 0
        %2350 = vmatprep.subr.bf16.mxu0 0
        %2351 = vmatpush1.bf16.msra.mxu0 0
        %2352 = vmatprep.subr.bf16.mxu0 0
        %2353 = vmatpush1.bf16.msra.mxu0 0
        %2354 = vmatprep.subr.bf16.mxu0 0
        %2355 = vmatpush1.bf16.msra.mxu0 0
        %2356 = vmatprep.subr.bf16.mxu0 0
        %2357 = vmatpush1.bf16.msra.mxu0 0
        %2358 = vmatprep.subr.bf16.mxu0 0
        %2359 = vmatpush1.bf16.msra.mxu0 0
        %2360 = vmatprep.subr.bf16.mxu0 0
        %2361 = vmatpush1.bf16.msra.mxu0 0
        %2362 = vmatprep.subr.bf16.mxu0 0
        %2363 = vmatpush1.bf16.msra.mxu0 0
        %2364 = vmatprep.mubr.bf16.mxu0 0
        %2365 = vmatmul.mubr.bf16.gmra.mrb[0].mxu0 %v2327
        %v2366 = vpop.f32.mrb[0].mxu0
        %v2367 = vadd.f32 0.0, %v2366
        %v2368 = vpop.f32.mrb[0].mxu0
        %v2369 = vpop.f32.mrb[0].mxu0
        %v2370 = vpop.f32.mrb[0].mxu0
        %2371 = vdwg.mxu0
        %v2372 = vadd.f32 %v2325, %v2367
        %2374 = vset.pattern.permute.xlu0 0
        %2375 = vperm.xlu0 %2374, %v2148
        %v2376 = vpop.permute.xlu0 %2375
        %v2378 = vadd.f32 %v2372, %v2376
        %v2379 = vmax.f32 %v2378, 0.0
        %v2380 = vld [vmem:[%s13] sm:$0xf]
        %v2381 = vld [vmem:[%s14] sm:$0xf]
        %v2382 = vld [vmem:[%s15] sm:$0xf]
        %v2383 = vld [vmem:[%s16] sm:$0xf]
        %v2384 = vld [vmem:[%s17] sm:$0xff]
        %v2385 = vpack.c.bf16 %v2379, %v2379
        %2386 = vmatprep.subr.bf16.mxu0 0
        %2387 = vmatpush1.bf16.xpose.msra.mxu0 %v1848
        %2388 = vmatprep.subr.bf16.mxu0 0
        %2389 = vmatpush1.bf16.xpose.msra.mxu0 %v1849
        %2390 = vmatprep.subr.bf16.mxu0 0
        %2391 = vmatpush1.bf16.xpose.msra.mxu0 %v1850
        %2392 = vmatprep.subr.bf16.mxu0 0
        %2393 = vmatpush1.bf16.xpose.msra.mxu0 %v1851
        %2394 = vmatprep.subr.bf16.mxu0 0
        %2395 = vmatpush1.bf16.xpose.msra.mxu0 %v1852
        %2396 = vmatprep.subr.bf16.mxu0 0
        %2397 = vmatpush1.bf16.xpose.msra.mxu0 %v1853
        %2398 = vmatprep.subr.bf16.mxu0 0
        %2399 = vmatpush1.bf16.xpose.msra.mxu0 %v1854
        %2400 = vmatprep.subr.bf16.mxu0 0
        %2401 = vmatpush1.bf16.xpose.msra.mxu0 %v1855
        %2402 = vmatprep.subr.bf16.mxu0 0
        %2403 = vmatpush1.bf16.xpose.msra.mxu0 0
        %2404 = vmatprep.subr.bf16.mxu0 0
        %2405 = vmatpush1.bf16.xpose.msra.mxu0 0
        %2406 = vmatprep.subr.bf16.mxu0 0
        %2407 = vmatpush1.bf16.xpose.msra.mxu0 0
        %2408 = vmatprep.subr.bf16.mxu0 0
        %2409 = vmatpush1.bf16.xpose.msra.mxu0 0
        %2410 = vmatprep.subr.bf16.mxu0 0
        %2411 = vmatpush1.bf16.xpose.msra.mxu0 0
        %2412 = vmatprep.subr.bf16.mxu0 0
        %2413 = vmatpush1.bf16.xpose.msra.mxu0 0
        %2414 = vmatprep.subr.bf16.mxu0 0
        %2415 = vmatpush1.bf16.xpose.msra.mxu0 0
        %2416 = vmatprep.subr.bf16.mxu0 0
        %2417 = vmatpush1.bf16.xpose.msra.mxu0 0
        %2418 = vmatprep.mubr.bf16.mxu0 0
        %2419 = vmatmul.mubr.bf16.gmra.mrb[0].mxu0 %v2385
        %v2420 = vpop.f32.mrb[0].mxu0
        %v2421 = vadd.f32 0.0, %v2420
        %v2422 = vpop.f32.mrb[0].mxu0
        %v2423 = vpop.f32.mrb[0].mxu0
        %v2424 = vpop.f32.mrb[0].mxu0
        %2425 = vdwg.mxu0
        %v2426 = vpack.c.bf16 %v2421, %v2421
        %v2428 = vsel %vm2191, %v2381, 0
        %v2431 = vsel %vm2195, %v2426, 0
        %2433 = vmatprep.subr.bf16.mxu0 0
        %2434 = vmatpush1.bf16.msra.mxu0 %v2431
        %2435 = vmatprep.subr.bf16.mxu0 0
        %2436 = vmatpush1.bf16.msra.mxu0 0
        %2437 = vmatprep.subr.bf16.mxu0 0
        %2438 = vmatpush1.bf16.msra.mxu0 0
        %2439 = vmatprep.subr.bf16.mxu0 0
        %2440 = vmatpush1.bf16.msra.mxu0 0
        %2441 = vmatprep.subr.bf16.mxu0 0
        %2442 = vmatpush1.bf16.msra.mxu0 0
        %2443 = vmatprep.subr.bf16.mxu0 0
        %2444 = vmatpush1.bf16.msra.mxu0 0
        %2445 = vmatprep.subr.bf16.mxu0 0
        %2446 = vmatpush1.bf16.msra.mxu0 0
        %2447 = vmatprep.subr.bf16.mxu0 0
        %2448 = vmatpush1.bf16.msra.mxu0 0
        %2449 = vmatprep.subr.bf16.mxu0 0
        %2450 = vmatpush1.bf16.msra.mxu0 0
        %2451 = vmatprep.subr.bf16.mxu0 0
        %2452 = vmatpush1.bf16.msra.mxu0 0
        %2453 = vmatprep.subr.bf16.mxu0 0
        %2454 = vmatpush1.bf16.msra.mxu0 0
        %2455 = vmatprep.subr.bf16.mxu0 0
        %2456 = vmatpush1.bf16.msra.mxu0 0
        %2457 = vmatprep.subr.bf16.mxu0 0
        %2458 = vmatpush1.bf16.msra.mxu0 0
        %2459 = vmatprep.subr.bf16.mxu0 0
        %2460 = vmatpush1.bf16.msra.mxu0 0
        %2461 = vmatprep.subr.bf16.mxu0 0
        %2462 = vmatpush1.bf16.msra.mxu0 0
        %2463 = vmatprep.subr.bf16.mxu0 0
        %2464 = vmatpush1.bf16.msra.mxu0 0
        %2465 = vmatprep.mubr.bf16.mxu0 0
        %2466 = vmatmul.mubr.bf16.gmra.mrb[0].mxu0 %v2428
        %v2467 = vpop.f32.mrb[0].mxu0
        %v2468 = vadd.f32 0.0, %v2467
        %v2469 = vpop.f32.mrb[0].mxu0
        %v2470 = vpop.f32.mrb[0].mxu0
        %v2471 = vpop.f32.mrb[0].mxu0
        %2472 = vdwg.mxu0
        %v2474 = vsel %vm1993, %v2380, 0
        %2476 = vmatprep.subr.bf16.mxu0 0
        %2477 = vmatpush1.bf16.msra.mxu0 %v2001
        %2478 = vmatprep.subr.bf16.mxu0 0
        %2479 = vmatpush1.bf16.msra.mxu0 0
        %2480 = vmatprep.subr.bf16.mxu0 0
        %2481 = vmatpush1.bf16.msra.mxu0 0
        %2482 = vmatprep.subr.bf16.mxu0 0
        %2483 = vmatpush1.bf16.msra.mxu0 0
        %2484 = vmatprep.subr.bf16.mxu0 0
        %2485 = vmatpush1.bf16.msra.mxu0 0
        %2486 = vmatprep.subr.bf16.mxu0 0
        %2487 = vmatpush1.bf16.msra.mxu0 0
        %2488 = vmatprep.subr.bf16.mxu0 0
        %2489 = vmatpush1.bf16.msra.mxu0 0
        %2490 = vmatprep.subr.bf16.mxu0 0
        %2491 = vmatpush1.bf16.msra.mxu0 0
        %2492 = vmatprep.subr.bf16.mxu0 0
        %2493 = vmatpush1.bf16.msra.mxu0 0
        %2494 = vmatprep.subr.bf16.mxu0 0
        %2495 = vmatpush1.bf16.msra.mxu0 0
        %2496 = vmatprep.subr.bf16.mxu0 0
        %2497 = vmatpush1.bf16.msra.mxu0 0
        %2498 = vmatprep.subr.bf16.mxu0 0
        %2499 = vmatpush1.bf16.msra.mxu0 0
        %2500 = vmatprep.subr.bf16.mxu0 0
        %2501 = vmatpush1.bf16.msra.mxu0 0
        %2502 = vmatprep.subr.bf16.mxu0 0
        %2503 = vmatpush1.bf16.msra.mxu0 0
        %2504 = vmatprep.subr.bf16.mxu0 0
        %2505 = vmatpush1.bf16.msra.mxu0 0
        %2506 = vmatprep.subr.bf16.mxu0 0
        %2507 = vmatpush1.bf16.msra.mxu0 0
        %2508 = vmatprep.mubr.bf16.mxu0 0
        %2509 = vmatmul.mubr.bf16.gmra.mrb[0].mxu0 %v2474
        %v2510 = vpop.f32.mrb[0].mxu0
        %v2511 = vadd.f32 %v2468, %v2510
        %v2512 = vpop.f32.mrb[0].mxu0
        %v2513 = vpop.f32.mrb[0].mxu0
        %v2514 = vpop.f32.mrb[0].mxu0
        %2515 = vdwg.mxu0
        %v2517 = vsel %vm1993, %v2382, 0
        %2519 = vmatprep.subr.bf16.mxu0 0
        %2520 = vmatpush1.bf16.msra.mxu0 %v2047
        %2521 = vmatprep.subr.bf16.mxu0 0
        %2522 = vmatpush1.bf16.msra.mxu0 0
        %2523 = vmatprep.subr.bf16.mxu0 0
        %2524 = vmatpush1.bf16.msra.mxu0 0
        %2525 = vmatprep.subr.bf16.mxu0 0
        %2526 = vmatpush1.bf16.msra.mxu0 0
        %2527 = vmatprep.subr.bf16.mxu0 0
        %2528 = vmatpush1.bf16.msra.mxu0 0
        %2529 = vmatprep.subr.bf16.mxu0 0
        %2530 = vmatpush1.bf16.msra.mxu0 0
        %2531 = vmatprep.subr.bf16.mxu0 0
        %2532 = vmatpush1.bf16.msra.mxu0 0
        %2533 = vmatprep.subr.bf16.mxu0 0
        %2534 = vmatpush1.bf16.msra.mxu0 0
        %2535 = vmatprep.subr.bf16.mxu0 0
        %2536 = vmatpush1.bf16.msra.mxu0 0
        %2537 = vmatprep.subr.bf16.mxu0 0
        %2538 = vmatpush1.bf16.msra.mxu0 0
        %2539 = vmatprep.subr.bf16.mxu0 0
        %2540 = vmatpush1.bf16.msra.mxu0 0
        %2541 = vmatprep.subr.bf16.mxu0 0
        %2542 = vmatpush1.bf16.msra.mxu0 0
        %2543 = vmatprep.subr.bf16.mxu0 0
        %2544 = vmatpush1.bf16.msra.mxu0 0
        %2545 = vmatprep.subr.bf16.mxu0 0
        %2546 = vmatpush1.bf16.msra.mxu0 0
        %2547 = vmatprep.subr.bf16.mxu0 0
        %2548 = vmatpush1.bf16.msra.mxu0 0
        %2549 = vmatprep.subr.bf16.mxu0 0
        %2550 = vmatpush1.bf16.msra.mxu0 0
        %2551 = vmatprep.mubr.bf16.mxu0 0
        %2552 = vmatmul.mubr.bf16.gmra.mrb[0].mxu0 %v2517
        %v2553 = vpop.f32.mrb[0].mxu0
        %v2554 = vadd.f32 0.0, %v2553
        %v2555 = vpop.f32.mrb[0].mxu0
        %v2556 = vpop.f32.mrb[0].mxu0
        %v2557 = vpop.f32.mrb[0].mxu0
        %2558 = vdwg.mxu0
        %v2559 = vadd.f32 %v2511, %v2554
        %v2561 = vsel %vm2191, %v2383, 0
        %v2564 = vsel %vm2195, %v2385, 0
        %2566 = vmatprep.subr.bf16.mxu0 0
        %2567 = vmatpush1.bf16.msra.mxu0 %v2564
        %2568 = vmatprep.subr.bf16.mxu0 0
        %2569 = vmatpush1.bf16.msra.mxu0 0
        %2570 = vmatprep.subr.bf16.mxu0 0
        %2571 = vmatpush1.bf16.msra.mxu0 0
        %2572 = vmatprep.subr.bf16.mxu0 0
        %2573 = vmatpush1.bf16.msra.mxu0 0
        %2574 = vmatprep.subr.bf16.mxu0 0
        %2575 = vmatpush1.bf16.msra.mxu0 0
        %2576 = vmatprep.subr.bf16.mxu0 0
        %2577 = vmatpush1.bf16.msra.mxu0 0
        %2578 = vmatprep.subr.bf16.mxu0 0
        %2579 = vmatpush1.bf16.msra.mxu0 0
        %2580 = vmatprep.subr.bf16.mxu0 0
        %2581 = vmatpush1.bf16.msra.mxu0 0
        %2582 = vmatprep.subr.bf16.mxu0 0
        %2583 = vmatpush1.bf16.msra.mxu0 0
        %2584 = vmatprep.subr.bf16.mxu0 0
        %2585 = vmatpush1.bf16.msra.mxu0 0
        %2586 = vmatprep.subr.bf16.mxu0 0
        %2587 = vmatpush1.bf16.msra.mxu0 0
        %2588 = vmatprep.subr.bf16.mxu0 0
        %2589 = vmatpush1.bf16.msra.mxu0 0
        %2590 = vmatprep.subr.bf16.mxu0 0
        %2591 = vmatpush1.bf16.msra.mxu0 0
        %2592 = vmatprep.subr.bf16.mxu0 0
        %2593 = vmatpush1.bf16.msra.mxu0 0
        %2594 = vmatprep.subr.bf16.mxu0 0
        %2595 = vmatpush1.bf16.msra.mxu0 0
        %2596 = vmatprep.subr.bf16.mxu0 0
        %2597 = vmatpush1.bf16.msra.mxu0 0
        %2598 = vmatprep.mubr.bf16.mxu0 0
        %2599 = vmatmul.mubr.bf16.gmra.mrb[0].mxu0 %v2561
        %v2600 = vpop.f32.mrb[0].mxu0
        %v2601 = vadd.f32 0.0, %v2600
        %v2602 = vpop.f32.mrb[0].mxu0
        %v2603 = vpop.f32.mrb[0].mxu0
        %v2604 = vpop.f32.mrb[0].mxu0
        %2605 = vdwg.mxu0
        %v2606 = vadd.f32 %v2559, %v2601
        %2608 = vset.pattern.permute.xlu0 0
        %2609 = vperm.xlu0 %2608, %v2384
        %v2610 = vpop.permute.xlu0 %2609
        %v2612 = vadd.f32 %v2606, %v2610
        %v2613 = vmax.f32 %v2612, 0.0
        %v2614 = vpack.c.bf16 %v2613, %v2613
        %v2615 = vld [vmem:[%s18] sm:$0x3]
        %v2616 = vld [vmem:[%s19] sm:$0x3]
        %vm2617 = vcmask 64512
        %v2619 = vsel %vm2617, %v2616, 0
        %vm2621 = vcmask 1043456
        %v2623 = vsel %vm2621, %v2614, 0
        %2625 = vmatprep.subr.bf16.mxu0 0
        %2626 = vmatpush1.bf16.msra.mxu0 %v2623
        %2627 = vmatprep.subr.bf16.mxu0 0
        %2628 = vmatpush1.bf16.msra.mxu0 0
        %2629 = vmatprep.subr.bf16.mxu0 0
        %2630 = vmatpush1.bf16.msra.mxu0 0
        %2631 = vmatprep.subr.bf16.mxu0 0
        %2632 = vmatpush1.bf16.msra.mxu0 0
        %2633 = vmatprep.subr.bf16.mxu0 0
        %2634 = vmatpush1.bf16.msra.mxu0 0
        %2635 = vmatprep.subr.bf16.mxu0 0
        %2636 = vmatpush1.bf16.msra.mxu0 0
        %2637 = vmatprep.subr.bf16.mxu0 0
        %2638 = vmatpush1.bf16.msra.mxu0 0
        %2639 = vmatprep.subr.bf16.mxu0 0
        %2640 = vmatpush1.bf16.msra.mxu0 0
        %2641 = vmatprep.subr.bf16.mxu0 0
        %2642 = vmatpush1.bf16.msra.mxu0 0
        %2643 = vmatprep.subr.bf16.mxu0 0
        %2644 = vmatpush1.bf16.msra.mxu0 0
        %2645 = vmatprep.subr.bf16.mxu0 0
        %2646 = vmatpush1.bf16.msra.mxu0 0
        %2647 = vmatprep.subr.bf16.mxu0 0
        %2648 = vmatpush1.bf16.msra.mxu0 0
        %2649 = vmatprep.subr.bf16.mxu0 0
        %2650 = vmatpush1.bf16.msra.mxu0 0
        %2651 = vmatprep.subr.bf16.mxu0 0
        %2652 = vmatpush1.bf16.msra.mxu0 0
        %2653 = vmatprep.subr.bf16.mxu0 0
        %2654 = vmatpush1.bf16.msra.mxu0 0
        %2655 = vmatprep.subr.bf16.mxu0 0
        %2656 = vmatpush1.bf16.msra.mxu0 0
        %2657 = vmatprep.mubr.bf16.mxu0 0
        %2658 = vmatmul.mubr.bf16.gmra.mrb[0].mxu0 %v2619
        %v2659 = vpop.f32.mrb[0].mxu0
        %v2660 = vadd.f32 0.0, %v2659
        %v2661 = vpop.f32.mrb[0].mxu0
        %v2662 = vpop.f32.mrb[0].mxu0
        %v2663 = vpop.f32.mrb[0].mxu0
        %2664 = vdwg.mxu0
        %v2666 = vsel %vm1993, %v2615, 0
        %2668 = vmatprep.subr.bf16.mxu0 0
        %2669 = vmatpush1.bf16.msra.mxu0 %v2047
        %2670 = vmatprep.subr.bf16.mxu0 0
        %2671 = vmatpush1.bf16.msra.mxu0 0
        %2672 = vmatprep.subr.bf16.mxu0 0
        %2673 = vmatpush1.bf16.msra.mxu0 0
        %2674 = vmatprep.subr.bf16.mxu0 0
        %2675 = vmatpush1.bf16.msra.mxu0 0
        %2676 = vmatprep.subr.bf16.mxu0 0
        %2677 = vmatpush1.bf16.msra.mxu0 0
        %2678 = vmatprep.subr.bf16.mxu0 0
        %2679 = vmatpush1.bf16.msra.mxu0 0
        %2680 = vmatprep.subr.bf16.mxu0 0
        %2681 = vmatpush1.bf16.msra.mxu0 0
        %2682 = vmatprep.subr.bf16.mxu0 0
        %2683 = vmatpush1.bf16.msra.mxu0 0
        %2684 = vmatprep.subr.bf16.mxu0 0
        %2685 = vmatpush1.bf16.msra.mxu0 0
        %2686 = vmatprep.subr.bf16.mxu0 0
        %2687 = vmatpush1.bf16.msra.mxu0 0
        %2688 = vmatprep.subr.bf16.mxu0 0
        %2689 = vmatpush1.bf16.msra.mxu0 0
        %2690 = vmatprep.subr.bf16.mxu0 0
        %2691 = vmatpush1.bf16.msra.mxu0 0
        %2692 = vmatprep.subr.bf16.mxu0 0
        %2693 = vmatpush1.bf16.msra.mxu0 0
        %2694 = vmatprep.subr.bf16.mxu0 0
        %2695 = vmatpush1.bf16.msra.mxu0 0
        %2696 = vmatprep.subr.bf16.mxu0 0
        %2697 = vmatpush1.bf16.msra.mxu0 0
        %2698 = vmatprep.subr.bf16.mxu0 0
        %2699 = vmatpush1.bf16.msra.mxu0 0
        %2700 = vmatprep.mubr.bf16.mxu0 0
        %2701 = vmatmul.mubr.bf16.gmra.mrb[0].mxu0 %v2666
        %v2702 = vpop.f32.mrb[0].mxu0
        %v2703 = vadd.f32 %v2660, %v2702
        %v2704 = vpop.f32.mrb[0].mxu0
        %v2705 = vpop.f32.mrb[0].mxu0
        %v2706 = vpop.f32.mrb[0].mxu0
        %2707 = vdwg.mxu0
        %v2708 = vld [vmem:[%s20] sm:$0x7]
        %2710 = vset.pattern.permute.xlu0 0
        %2711 = vperm.xlu0 %2710, %v2708
        %v2712 = vpop.permute.xlu0 %2711
        %v2714 = vadd.f32 %v2703, %v2712
        %v2715 = vtanh.pop %v2714
        %v2716 = vadd.f32 %v728, %v2715
        %2717 = vst [vmem:[%s726] sm:$0x7] %v2716
        %2718 = vst [vmem:[%s709] sm:$0xff] %v2613
        %p2719 = scmp.lt.s32.totalorder %s37, 1
        %s2720 = scalar_select %p2719, %s37, 1
        %s2721 = smul.addr %s2720, 4
        %s2722 = scalar_lea.vmem %s21, %s2721
        %s2723 = sand.u32 %s527, 1
        %s2724 = scalar_lea.sflag [#allocation3], %s2723
        %s2725 = sand.u32 %s527, 1
        %s2726 = smul.addr %s2725, 8
        %s2727 = scalar_lea.vmem [#allocation2], %s2726
        // Predicated region
        $region105: #{tpu_custom_call.1} parent=103 // pred_check
          %p2728 = pneg %p511
        $region106: #{tpu_custom_call.1} parent=103 // pred_check_branch
          %2730 = sbr.rel (%p2728) target = $region108
        $region107: #{tpu_custom_call.1} parent=103 // pred_region
          _
        $region108: #{tpu_custom_call.1} parent=103 // pred_fallthru
          _
        // Predicated region
        $region109: #{tpu_custom_call.1} parent=103 // pred_check
          %p2731 = pneg %p537
        $region110: #{tpu_custom_call.1} parent=103 // pred_check_branch
          %2733 = sbr.rel (%p2731) target = $region112
        $region111: #{tpu_custom_call.1} parent=103 // pred_region
          %s2735 = ssub.s32 128, 128
          %2736 = vsyncadd %s2724, %s2735
          %s2737 = smul.addr %s37, 128
          %s2738 = scalar_lea.hbm %s22, %s2737
          %s2740 = sshll.u32 %s2727, 4
          %s2741 = int_to_ptr.vmem [resolvable:$true] %s2740
          %2743 = dma.vmem_to_hbm [thread:$0]  %s2741, 128, %s2738, %s2724
        $region112: #{tpu_custom_call.1} parent=103 // pred_fallthru
          _
      $region104: #{tpu_custom_call.1} parent=5 // pred_fallthru
        _
      %p2744 = scmp.le.s32.totalorder 2, %s32
      // Predicated region
      $region113: #{tpu_custom_call.1} parent=5 // pred_check
        %p2745 = pneg %p2744
      $region114: #{tpu_custom_call.1} parent=5 // pred_check_branch
        %2747 = sbr.rel (%p2745) target = $region116
      $region115: #{tpu_custom_call.1} parent=5 // pred_region
        %s2748 = ssub.s32 %s32, 2
        // Predicated region
        $region117: #{tpu_custom_call.1} parent=115 // pred_check
          %p2749 = pneg %p517
        $region118: #{tpu_custom_call.1} parent=115 // pred_check_branch
          %2751 = sbr.rel (%p2749) target = $region120
        $region119: #{tpu_custom_call.1} parent=115 // pred_region
          %p2752 = scmp.lt.s32.totalorder %s38, 1
          %s2753 = scalar_select %p2752, %s38, 1
          %s2754 = smul.addr %s2753, 4
          %s2755 = scalar_lea.vmem %s21, %s2754
        $region120: #{tpu_custom_call.1} parent=115 // pred_fallthru
          _
        // Predicated region
        $region121: #{tpu_custom_call.1} parent=115 // pred_check
          %p2756 = pneg %p543
        $region122: #{tpu_custom_call.1} parent=115 // pred_check_branch
          %2758 = sbr.rel (%p2756) target = $region124
        $region123: #{tpu_custom_call.1} parent=115 // pred_region
          %s2759 = sand.u32 %s528, 1
          %s2760 = scalar_lea.sflag [#allocation3], %s2759
          %s2761 = sand.u32 %s528, 1
          %s2762 = smul.addr %s2761, 8
          %s2763 = scalar_lea.vmem [#allocation2], %s2762
          %2764 = dma.done %s2760, 128
        $region124: #{tpu_custom_call.1} parent=115 // pred_fallthru
          _
      $region116: #{tpu_custom_call.1} parent=5 // pred_fallthru
        _
    $region6: #{tpu_custom_call.1} parent=1 // loop_footer
      %s36 = sadd.s32 1, %s32
    $region7: #{tpu_custom_call.1} parent=1 // loop_footer_branch
      %31 = sbr.rel target = $region3
    $region8: #{tpu_custom_call.1} parent=1 // loop_exit
      _
    %2765 = vsyncpa [#allocation3], 1
    %s2766 = scalar_lea.sflag [#allocation3], 1
    %2767 = vsyncpa %s2766, 1

</llo_original>
